<compile_context>
chip_gen: v7x
topology: tpu7x:2x2x1
jax: 0.10.0
libtpu: 0.0.40
codegen_flags: <defaults>
</compile_context>

<pallas_src>
import numpy as np
import jax
import jax.numpy as jnp
from jax import lax
from jax.experimental import pallas as pl
from jax.experimental.pallas import tpu as pltpu


# --------------------------------------------------------------------------
# Pallas kernel (channel-major, lane-packed (C, B_TILE*HW) layout)
# --------------------------------------------------------------------------
def _make_edanet_kernel(H, W, C_IN_P, WIDTH, NUM_CLASSES, B_TILE, use_bf16, eps=1e-6):
    HW = H * W
    L = B_TILE * HW
    DW = 2 * WIDTH            # dw_channel
    HALF = WIDTH              # dw_channel // 2
    FFN = 2 * WIDTH
    f32 = jnp.float32
    cdt = jnp.bfloat16 if use_bf16 else jnp.float32   # matmul-operand dtype

    # packed vector-bank column indices (must match convert_params ordering)
    (INTRO_B, N1_W, N1_B, C1_B, C2_B, SSA_B, SCA_B, C3_B, BETA,
     N2_W, N2_B, C4_B, C5_B, GAMMA, END_B) = range(15)

    def kernel(x_ref, masks_ref, bank_ref,
               introw_ref, c1w_ref, dww_ref, ssaw_ref, scaw_ref,
               c3w_ref, c4w_ref, c5w_ref, endw_ref, out_ref):

        # ---- resident border masks (built host-side, DMA'd once) ----------
        masks = masks_ref[...]                                     # (16, L) f32
        mh = {d: (None if d == 0 else masks[3 + d:4 + d, :]) for d in range(-3, 4)}
        mw = {d: (None if d == 0 else masks[10 + d:11 + d, :]) for d in range(-3, 4)}
        mhc = {d: (None if mh[d] is None else mh[d].astype(cdt)) for d in (-1, 0, 1)}
        mwc = {d: (None if mw[d] is None else mw[d].astype(cdt)) for d in (-1, 0, 1)}

        def mask_mul(x, m):
            return x if m is None else x * m

        _prod = {}

        def tap_mask(dy, dx):
            if dy == 0:
                return mw[dx]
            if dx == 0:
                return mh[dy]
            if (dy, dx) not in _prod:
                _prod[(dy, dx)] = mh[dy] * mw[dx]
            return _prod[(dy, dx)]

        def lane_roll(x, d):
            # result[:, p] = x[:, (p + d) mod L]; out-of-image lanes get masked to 0,
            # which also kills wrap-around between lane-packed images.
            return pltpu.roll(x, shift=(-d) % L, axis=1) if d % L else x

        def shift2d(x, dy, dx):
            return mask_mul(lane_roll(x, dy * W + dx), tap_mask(dy, dx))

        # ---- packed per-channel vectors (columns, broadcast over lanes) ----
        bank = bank_ref[...]                                       # (32, 15) f32

        def col(idx, n):
            return bank[0:n, idx:idx + 1]                          # (n, 1)

        intro_b = col(INTRO_B, WIDTH)
        n1_w, n1_b = col(N1_W, WIDTH), col(N1_B, WIDTH)
        c1_b, c2_b = col(C1_B, DW), col(C2_B, DW)
        ssa_b = col(SSA_B, 1)
        sca_b = col(SCA_B, HALF)
        c3_b = col(C3_B, WIDTH)
        beta = col(BETA, WIDTH)
        n2_w, n2_b = col(N2_W, WIDTH), col(N2_B, WIDTH)
        c4_b = col(C4_B, FFN)
        c5_b = col(C5_B, WIDTH)
        gamma = col(GAMMA, WIDTH)
        end_b = col(END_B, NUM_CLASSES)

        # ---- matrix weights (loaded once) ----------------------------------
        w_c1 = c1w_ref[...]          # (DW, WIDTH)       cdt
        w_dw = dww_ref[...]          # (DW, 9)           f32 (VPU)
        w_ssa = ssaw_ref[...]        # (14, 7)           f32 (VPU)
        w_sca = scaw_ref[...]        # (HALF, HALF)      cdt
        w_c3 = c3w_ref[...]          # (WIDTH, HALF)     cdt
        w_c4 = c4w_ref[...]          # (FFN, WIDTH)      cdt
        w_c5 = c5w_ref[...]          # (WIDTH, FFN//2)   cdt
        # introw_ref: (3, WIDTH, 3*C_IN_P) cdt ; endw_ref: (3, NUM_CLASSES, 3*WIDTH) cdt

        def conv3x3_dense(x, w3_ref, b_col):
            # dx-grouped dense 3x3: build the dy-stack once (2 rolls), then 3 matmuls
            # with K = 3*Cin (2 more rolls).  Avoids the (9*Cin, L) im2col concat.
            xc = x.astype(cdt)
            parts = [mask_mul(lane_roll(xc, dy * W), mhc[dy]) for dy in (-1, 0, 1)]
            s = jnp.concatenate(parts, axis=0)                     # (3*Cin, L)
            acc = None
            for dxi, dx in enumerate((-1, 0, 1)):
                r = mask_mul(lane_roll(s, dx), mwc[dx])
                t = jnp.dot(w3_ref[dxi], r, preferred_element_type=f32)
                acc = t if acc is None else acc + t
            return acc + b_col

        def layer_norm(x, w_col, b_col):
            mu = jnp.mean(x, axis=0, keepdims=True)
            xc = x - mu
            var = jnp.mean(xc * xc, axis=0, keepdims=True)
            return xc * lax.rsqrt(var + eps) * w_col + b_col

        def pw_conv(w, x, b_col):     # 1x1 conv = MXU matmul (bf16 operands, f32 acc)
            return jnp.dot(w, x.astype(cdt), preferred_element_type=f32) + b_col

        x_in = x_ref[...]                                          # (C_IN_P, L) f32

        # ---- intro: 3x3 conv C_IN -> WIDTH ---------------------------------
        inp = conv3x3_dense(x_in, introw_ref, intro_b)             # (WIDTH, L)

        # ---- EDABlock -------------------------------------------------------
        x = layer_norm(inp, n1_w, n1_b)
        x = pw_conv(w_c1, x, c1_b)                                 # (DW, L)

        # depthwise 3x3 (groups == DW), pure VPU.  Kept as 9 taps: (32, L) operands
        # already fill vregs, so dy/dx separation would only add live range.
        acc = None
        t = 0
        for dy in (-1, 0, 1):
            for dx in (-1, 0, 1):
                term = shift2d(x, dy, dx) * w_dw[:, t:t + 1]
                acc = term if acc is None else acc + term
                t += 1
        x = acc + c2_b                                             # (DW, L)

        # 7x7 spatial attention over stacked [channel-avg; channel-max],
        # dy/dx-separated: 7 dy-rolls of the (2, L) map, 7 dx-rolls of the (14, L) stack.
        avg = jnp.mean(x, axis=0, keepdims=True)                   # (1, L)
        mx = jnp.max(x, axis=0, keepdims=True)                     # (1, L)
        am = jnp.concatenate([avg, mx], axis=0)                    # (2, L)
        parts = [mask_mul(lane_roll(am, dy * W), mh[dy]) for dy in range(-3, 4)]
        stack = jnp.concatenate(parts, axis=0)                     # (14, L)
        acc = None
        for dxi, dx in enumerate(range(-3, 4)):
            r = mask_mul(lane_roll(stack, dx), mw[dx]) * w_ssa[:, dxi:dxi + 1]
            acc = r if acc is None else acc + r
        wmap = jnp.sum(acc, axis=0, keepdims=True) + ssa_b         # (1, L)

        # SimpleGate + spatial attention weighting
        x = x[:HALF] * x[HALF:]                                    # (HALF, L)
        x = x * wmap

        # simplified channel attention: per-image global average pool, one batched matmul
        if B_TILE == 1:
            pooled = jnp.mean(x, axis=1, keepdims=True)            # (HALF, 1)
        else:
            pooled = jnp.concatenate(
                [jnp.mean(x[:, b * HW:(b + 1) * HW], axis=1, keepdims=True)
                 for b in range(B_TILE)], axis=1)                  # (HALF, B_TILE)
        sca = jnp.dot(w_sca, pooled.astype(cdt), preferred_element_type=f32) + sca_b
        if B_TILE == 1:
            x = x * sca
        else:
            sca_map = jnp.concatenate(
                [jnp.broadcast_to(sca[:, b:b + 1], (HALF, HW)) for b in range(B_TILE)],
                axis=1)                                            # (HALF, L)
            x = x * sca_map

        x = pw_conv(w_c3, x, c3_b)                                 # (WIDTH, L)
        y = inp + x * beta                                         # dropout1 = Identity

        x = layer_norm(y, n2_w, n2_b)
        x = pw_conv(w_c4, x, c4_b)                                 # (FFN, L)
        x = x[:WIDTH] * x[WIDTH:]
        x = pw_conv(w_c5, x, c5_b)                                 # (WIDTH, L)
        y = y + x * gamma                                          # dropout2 = Identity

        # ---- ending: 3x3 conv WIDTH -> NUM_CLASSES --------------------------
        out = conv3x3_dense(y, endw_ref, end_b)                    # (NC, L)
        out_ref[...] = out.astype(out_ref.dtype)

    return kernel


# --------------------------------------------------------------------------
# Host-side helpers
# --------------------------------------------------------------------------
def _build_masks(H, W, B_TILE):
    """(16, B_TILE*HW): rows 0..6 = mask_h(dy=-3..3), rows 7..13 = mask_w(dx=-3..3)."""
    HW = H * W
    h = np.arange(HW) // W
    w = np.arange(HW) % W
    rows = [((h + d >= 0) & (h + d < H)).astype(np.float32) for d in range(-3, 4)]
    rows += [((w + d >= 0) & (w + d < W)).astype(np.float32) for d in range(-3, 4)]
    rows += [np.zeros(HW, np.float32)] * 2
    m = np.stack(rows, axis=0)                                     # (16, HW)
    return jnp.asarray(np.tile(m, (1, B_TILE)))                    # (16, B_TILE*HW)


def init_params(key, in_channels=3, width=16, num_classes=5):
    c, dw, ffn = width, 2 * width, 2 * width
    shapes = {
        'intro_w': (c, in_channels, 3, 3), 'intro_b': (c,),
        'n1_w': (c,), 'n1_b': (c,),
        'c1_w': (dw, c, 1, 1), 'c1_b': (dw,),
        'c2_w': (dw, 1, 3, 3), 'c2_b': (dw,),
        'ssa_w': (1, 2, 7, 7), 'ssa_b': (1,),
        'sca_w': (dw // 2, dw // 2, 1, 1), 'sca_b': (dw // 2,),
        'c3_w': (c, dw // 2, 1, 1), 'c3_b': (c,),
        'n2_w': (c,), 'n2_b': (c,),
        'c4_w': (ffn, c, 1, 1), 'c4_b': (ffn,),
        'c5_w': (c, ffn // 2, 1, 1), 'c5_b': (c,),
        'beta': (1, c, 1, 1), 'gamma': (1, c, 1, 1),
        'end_w': (num_classes, c, 3, 3), 'end_b': (num_classes,),
    }
    params = {}
    keys = jax.random.split(key, len(shapes))
    for k_, (name, shp) in zip(keys, sorted(shapes.items())):
        params[name] = 0.1 * jax.random.normal(k_, shp, jnp.float32)
    params['n1_w'] = params['n1_w'] + 1.0        # LayerNorm scales ~ torch default (ones)
    params['n2_w'] = params['n2_w'] + 1.0
    return params


def convert_params(tp, in_channels, width, num_classes, cin_pad, use_bf16):
    dw = 2 * width
    wdt = jnp.bfloat16 if use_bf16 else jnp.float32

    def conv3x3_w(w, cin, cin_p):
        # torch (O, I, 3, 3) -> (KW, O, 3*I_pad): each [kx] slab is one MXU operand
        # whose columns are ordered (ky, channel) to match the kernel's dy-stack.
        o = w.shape[0]
        w = jnp.pad(w, ((0, 0), (0, cin_p - cin), (0, 0), (0, 0)))
        return jnp.transpose(w, (3, 0, 2, 1)).reshape(3, o, 3 * cin_p).astype(wdt)

    def pw(w):  # (O, I, 1, 1) -> (O, I)
        return w[:, :, 0, 0].astype(wdt)

    kp = {
        'intro_w': conv3x3_w(tp['intro_w'], in_channels, cin_pad),
        'end_w': conv3x3_w(tp['end_w'], width, width),
        'c1_w': pw(tp['c1_w']),
        'dw_w': tp['c2_w'][:, 0].reshape(dw, 9).astype(jnp.float32),
        'ssa_w': jnp.transpose(tp['ssa_w'][0], (1, 0, 2)).reshape(14, 7).astype(jnp.float32),
        'sca_w': pw(tp['sca_w']),
        'c3_w': pw(tp['c3_w']),
        'c4_w': pw(tp['c4_w']),
        'c5_w': pw(tp['c5_w']),
    }

    # packed per-channel vector bank: one f32 column per parameter vector, 32 rows
    vecs = [
        tp['intro_b'],
        tp['n1_w'], tp['n1_b'],
        tp['c1_b'], tp['c2_b'],
        tp['ssa_b'],
        tp['sca_b'], tp['c3_b'],
        tp['beta'].reshape(-1),
        tp['n2_w'], tp['n2_b'],
        tp['c4_b'], tp['c5_b'],
        tp['gamma'].reshape(-1),
        tp['end_b'],
    ]
    rows = max(dw, 8)
    cols = [jnp.pad(v.reshape(-1), (0, rows - v.reshape(-1).shape[0])) for v in vecs]
    kp['bank'] = jnp.stack(cols, axis=1).astype(jnp.float32)       # (32, 15)
    return kp


# --------------------------------------------------------------------------
# Wrapper around pallas_call
# --------------------------------------------------------------------------
def edanet_pallas(x_nchw, torch_params, num_classes, width, images_per_step=1,
                  use_bf16=True):
    B, C_IN, H, W = x_nchw.shape
    HW = H * W
    CIN_P = ((C_IN + 7) // 8) * 8
    assert B % images_per_step == 0
    B_TILE = images_per_step
    L = B_TILE * HW

    kp = convert_params(torch_params, C_IN, width, num_classes, CIN_P, use_bf16)

    # NCHW -> lane-packed channel-major (C, B*HW); each image owns a contiguous HW block
    x_flat = x_nchw.reshape(B, C_IN, HW)
    if CIN_P != C_IN:
        x_flat = jnp.pad(x_flat, ((0, 0), (0, CIN_P - C_IN), (0, 0)))
    x_packed = jnp.transpose(x_flat, (1, 0, 2)).reshape(CIN_P, B * HW)

    masks = _build_masks(H, W, B_TILE)

    kernel = _make_edanet_kernel(H, W, CIN_P, width, num_classes, B_TILE, use_bf16)

    weight_args = [masks, kp['bank'], kp['intro_w'], kp['c1_w'], kp['dw_w'], kp['ssa_w'],
                   kp['sca_w'], kp['c3_w'], kp['c4_w'], kp['c5_w'], kp['end_w']]

    in_specs = [pl.BlockSpec((CIN_P, L), lambda g: (0, g))]
    for a in weight_args:
        if a.ndim == 3:
            in_specs.append(pl.BlockSpec(a.shape, lambda g: (0, 0, 0)))
        else:
            in_specs.append(pl.BlockSpec(a.shape, lambda g: (0, 0)))
    out_spec = pl.BlockSpec((num_classes, L), lambda g: (0, g))

    out = pl.pallas_call(
        kernel,
        out_shape=jax.ShapeDtypeStruct((num_classes, B * HW), jnp.float32),
        grid=(B // B_TILE,),
        in_specs=in_specs,
        out_specs=out_spec,
        compiler_params=pltpu.CompilerParams(dimension_semantics=("parallel",)),
    )(x_packed, *weight_args)

    out = jnp.transpose(out.reshape(num_classes, B, HW), (1, 0, 2))
    return out.reshape(B, num_classes, H, W)


# --------------------------------------------------------------------------
# Pure-JAX reference (mirrors the PyTorch forward, NCHW) for verification
# --------------------------------------------------------------------------
def _conv2d(x, w, b=None, padding=0, groups=1):
    out = lax.conv_general_dilated(
        x, w, window_strides=(1, 1),
        padding=[(padding, padding), (padding, padding)],
        dimension_numbers=('NCHW', 'OIHW', 'NCHW'),
        feature_group_count=groups,
        precision=lax.Precision.HIGHEST)
    if b is not None:
        out = out + b.reshape(1, -1, 1, 1)
    return out


def _layer_norm2d(x, w, b, eps=1e-6):
    mu = jnp.mean(x, axis=1, keepdims=True)
    var = jnp.mean((x - mu) ** 2, axis=1, keepdims=True)
    y = (x - mu) / jnp.sqrt(var + eps)
    return w.reshape(1, -1, 1, 1) * y + b.reshape(1, -1, 1, 1)


def edanet_ref(x, tp):
    inp = _conv2d(x, tp['intro_w'], tp['intro_b'], padding=1)
    z = _layer_norm2d(inp, tp['n1_w'], tp['n1_b'])
    z = _conv2d(z, tp['c1_w'], tp['c1_b'])
    z = _conv2d(z, tp['c2_w'], tp['c2_b'], padding=1, groups=tp['c2_w'].shape[0])
    avg = jnp.mean(z, axis=1, keepdims=True)
    mx = jnp.max(z, axis=1, keepdims=True)
    wmap = _conv2d(jnp.concatenate([avg, mx], axis=1), tp['ssa_w'], tp['ssa_b'], padding=3)
    z1, z2 = jnp.split(z, 2, axis=1)
    z = z1 * z2
    z = z * wmap
    pooled = jnp.mean(z, axis=(2, 3), keepdims=True)
    z = z * _conv2d(pooled, tp['sca_w'], tp['sca_b'])
    z = _conv2d(z, tp['c3_w'], tp['c3_b'])
    y = inp + z * tp['beta']
    z = _layer_norm2d(y, tp['n2_w'], tp['n2_b'])
    z = _conv2d(z, tp['c4_w'], tp['c4_b'])
    z1, z2 = jnp.split(z, 2, axis=1)
    z = z1 * z2
    z = _conv2d(z, tp['c5_w'], tp['c5_b'])
    y = y + z * tp['gamma']
    return _conv2d(y, tp['end_w'], tp['end_b'], padding=1)


# --------------------------------------------------------------------------
if __name__ == "__main__":
    B, C_IN, H, W = 2, 3, 16, 16
    WIDTH, NUM_CLASSES = 16, 5

    key = jax.random.PRNGKey(0)
    kx, kparams = jax.random.split(key)
    x = jax.random.normal(kx, (B, C_IN, H, W), jnp.float32)
    tp = init_params(kparams, C_IN, WIDTH, NUM_CLASSES)

    ref = jax.block_until_ready(edanet_ref(x, tp))

    # (1) f32 MXU path, both images lane-packed into one fat grid step
    #     (single-TC v5e/v6e configuration; also exercises cross-image roll masking).
    out_f32 = jax.block_until_ready(
        edanet_pallas(x, tp, NUM_CLASSES, WIDTH, images_per_step=2, use_bf16=False))
    np.testing.assert_allclose(np.asarray(out_f32), np.asarray(ref), atol=2e-3, rtol=2e-3)

    # (2) bf16-operand MXU path, one image per step -> 2 "parallel" grid steps
    #     (v7x megacore split).  Only matmul operands are bf16; elementwise stays f32.
    out_bf16 = jax.block_until_ready(
        edanet_pallas(x, tp, NUM_CLASSES, WIDTH, images_per_step=1, use_bf16=True))
    np.testing.assert_allclose(np.asarray(out_bf16), np.asarray(ref), atol=4e-2, rtol=4e-2)

    print("KERNEL_OK")
</pallas_src>

<mosaic_0001>
module attributes {stable_mosaic.version = 11 : i64} {
  func.func @kernel(%arg0: i32, %arg1: memref<8x512xf32, #tpu.memory_space<vmem>>, %arg2: memref<16x512xf32, #tpu.memory_space<vmem>>, %arg3: memref<32x15xf32, #tpu.memory_space<vmem>>, %arg4: memref<3x16x24xf32, #tpu.memory_space<vmem>>, %arg5: memref<32x16xf32, #tpu.memory_space<vmem>>, %arg6: memref<32x9xf32, #tpu.memory_space<vmem>>, %arg7: memref<14x7xf32, #tpu.memory_space<vmem>>, %arg8: memref<16x16xf32, #tpu.memory_space<vmem>>, %arg9: memref<16x16xf32, #tpu.memory_space<vmem>>, %arg10: memref<32x16xf32, #tpu.memory_space<vmem>>, %arg11: memref<16x16xf32, #tpu.memory_space<vmem>>, %arg12: memref<3x5x48xf32, #tpu.memory_space<vmem>>, %arg13: memref<5x512xf32, #tpu.memory_space<vmem>>) attributes {dimension_semantics = [#tpu.dimension_semantics<parallel>], iteration_bounds = array<i64: 1>, scalar_prefetch = 0 : i64, scratch_operands = 0 : i64, tpu.core_type = #tpu.core_type<tc>, window_params = [{transform_indices = @transform_0, window_bounds = array<i64: 8, 512>}, {pipeline_mode = #tpu.pipeline_mode<synchronous>, transform_indices = @transform_1, window_bounds = array<i64: 16, 512>}, {pipeline_mode = #tpu.pipeline_mode<synchronous>, transform_indices = @transform_2, window_bounds = array<i64: 32, 15>}, {pipeline_mode = #tpu.pipeline_mode<synchronous>, transform_indices = @transform_3, window_bounds = array<i64: 3, 16, 24>}, {pipeline_mode = #tpu.pipeline_mode<synchronous>, transform_indices = @transform_4, window_bounds = array<i64: 32, 16>}, {pipeline_mode = #tpu.pipeline_mode<synchronous>, transform_indices = @transform_5, window_bounds = array<i64: 32, 9>}, {pipeline_mode = #tpu.pipeline_mode<synchronous>, transform_indices = @transform_6, window_bounds = array<i64: 14, 7>}, {pipeline_mode = #tpu.pipeline_mode<synchronous>, transform_indices = @transform_7, window_bounds = array<i64: 16, 16>}, {pipeline_mode = #tpu.pipeline_mode<synchronous>, transform_indices = @transform_8, window_bounds = array<i64: 16, 16>}, {pipeline_mode = #tpu.pipeline_mode<synchronous>, transform_indices = @transform_9, window_bounds = array<i64: 32, 16>}, {pipeline_mode = #tpu.pipeline_mode<synchronous>, transform_indices = @transform_10, window_bounds = array<i64: 16, 16>}, {pipeline_mode = #tpu.pipeline_mode<synchronous>, transform_indices = @transform_11, window_bounds = array<i64: 3, 5, 48>}, {transform_indices = @transform_12, window_bounds = array<i64: 5, 512>}]} {
    %c0 = arith.constant 0 : index
    %c0_0 = arith.constant 0 : index
    %0 = vector.load %arg2[%c0, %c0_0] : memref<16x512xf32, #tpu.memory_space<vmem>>, vector<16x512xf32>
    %1 = vector.extract_strided_slice %0 {offsets = [0, 0], sizes = [1, 512], strides = [1, 1]} : vector<16x512xf32> to vector<1x512xf32>
    %2 = vector.extract_strided_slice %0 {offsets = [1, 0], sizes = [1, 512], strides = [1, 1]} : vector<16x512xf32> to vector<1x512xf32>
    %3 = vector.extract_strided_slice %0 {offsets = [2, 0], sizes = [1, 512], strides = [1, 1]} : vector<16x512xf32> to vector<1x512xf32>
    %4 = vector.extract_strided_slice %0 {offsets = [4, 0], sizes = [1, 512], strides = [1, 1]} : vector<16x512xf32> to vector<1x512xf32>
    %5 = vector.extract_strided_slice %0 {offsets = [5, 0], sizes = [1, 512], strides = [1, 1]} : vector<16x512xf32> to vector<1x512xf32>
    %6 = vector.extract_strided_slice %0 {offsets = [6, 0], sizes = [1, 512], strides = [1, 1]} : vector<16x512xf32> to vector<1x512xf32>
    %7 = vector.extract_strided_slice %0 {offsets = [7, 0], sizes = [1, 512], strides = [1, 1]} : vector<16x512xf32> to vector<1x512xf32>
    %8 = vector.extract_strided_slice %0 {offsets = [8, 0], sizes = [1, 512], strides = [1, 1]} : vector<16x512xf32> to vector<1x512xf32>
    %9 = vector.extract_strided_slice %0 {offsets = [9, 0], sizes = [1, 512], strides = [1, 1]} : vector<16x512xf32> to vector<1x512xf32>
    %10 = vector.extract_strided_slice %0 {offsets = [11, 0], sizes = [1, 512], strides = [1, 1]} : vector<16x512xf32> to vector<1x512xf32>
    %11 = vector.extract_strided_slice %0 {offsets = [12, 0], sizes = [1, 512], strides = [1, 1]} : vector<16x512xf32> to vector<1x512xf32>
    %12 = vector.extract_strided_slice %0 {offsets = [13, 0], sizes = [1, 512], strides = [1, 1]} : vector<16x512xf32> to vector<1x512xf32>
    %c0_1 = arith.constant 0 : index
    %c0_2 = arith.constant 0 : index
    %13 = vector.load %arg3[%c0_1, %c0_2] : memref<32x15xf32, #tpu.memory_space<vmem>>, vector<32x15xf32>
    %14 = vector.extract_strided_slice %13 {offsets = [0, 0], sizes = [16, 1], strides = [1, 1]} : vector<32x15xf32> to vector<16x1xf32>
    %15 = vector.extract_strided_slice %13 {offsets = [0, 1], sizes = [16, 1], strides = [1, 1]} : vector<32x15xf32> to vector<16x1xf32>
    %16 = vector.extract_strided_slice %13 {offsets = [0, 2], sizes = [16, 1], strides = [1, 1]} : vector<32x15xf32> to vector<16x1xf32>
    %17 = vector.extract_strided_slice %13 {offsets = [0, 3], sizes = [32, 1], strides = [1, 1]} : vector<32x15xf32> to vector<32x1xf32>
    %18 = vector.extract_strided_slice %13 {offsets = [0, 4], sizes = [32, 1], strides = [1, 1]} : vector<32x15xf32> to vector<32x1xf32>
    %19 = vector.extract_strided_slice %13 {offsets = [0, 5], sizes = [1, 1], strides = [1, 1]} : vector<32x15xf32> to vector<1x1xf32>
    %20 = vector.extract_strided_slice %13 {offsets = [0, 6], sizes = [16, 1], strides = [1, 1]} : vector<32x15xf32> to vector<16x1xf32>
    %21 = vector.extract_strided_slice %13 {offsets = [0, 7], sizes = [16, 1], strides = [1, 1]} : vector<32x15xf32> to vector<16x1xf32>
    %22 = vector.extract_strided_slice %13 {offsets = [0, 8], sizes = [16, 1], strides = [1, 1]} : vector<32x15xf32> to vector<16x1xf32>
    %23 = vector.extract_strided_slice %13 {offsets = [0, 9], sizes = [16, 1], strides = [1, 1]} : vector<32x15xf32> to vector<16x1xf32>
    %24 = vector.extract_strided_slice %13 {offsets = [0, 10], sizes = [16, 1], strides = [1, 1]} : vector<32x15xf32> to vector<16x1xf32>
    %25 = vector.extract_strided_slice %13 {offsets = [0, 11], sizes = [32, 1], strides = [1, 1]} : vector<32x15xf32> to vector<32x1xf32>
    %26 = vector.extract_strided_slice %13 {offsets = [0, 12], sizes = [16, 1], strides = [1, 1]} : vector<32x15xf32> to vector<16x1xf32>
    %27 = vector.extract_strided_slice %13 {offsets = [0, 13], sizes = [16, 1], strides = [1, 1]} : vector<32x15xf32> to vector<16x1xf32>
    %28 = vector.extract_strided_slice %13 {offsets = [0, 14], sizes = [5, 1], strides = [1, 1]} : vector<32x15xf32> to vector<5x1xf32>
    %c0_3 = arith.constant 0 : index
    %c0_4 = arith.constant 0 : index
    %29 = vector.load %arg5[%c0_3, %c0_4] : memref<32x16xf32, #tpu.memory_space<vmem>>, vector<32x16xf32>
    %c0_5 = arith.constant 0 : index
    %c0_6 = arith.constant 0 : index
    %30 = vector.load %arg6[%c0_5, %c0_6] : memref<32x9xf32, #tpu.memory_space<vmem>>, vector<32x9xf32>
    %c0_7 = arith.constant 0 : index
    %c0_8 = arith.constant 0 : index
    %31 = vector.load %arg7[%c0_7, %c0_8] : memref<14x7xf32, #tpu.memory_space<vmem>>, vector<14x7xf32>
    %c0_9 = arith.constant 0 : index
    %c0_10 = arith.constant 0 : index
    %32 = vector.load %arg8[%c0_9, %c0_10] : memref<16x16xf32, #tpu.memory_space<vmem>>, vector<16x16xf32>
    %c0_11 = arith.constant 0 : index
    %c0_12 = arith.constant 0 : index
    %33 = vector.load %arg9[%c0_11, %c0_12] : memref<16x16xf32, #tpu.memory_space<vmem>>, vector<16x16xf32>
    %c0_13 = arith.constant 0 : index
    %c0_14 = arith.constant 0 : index
    %34 = vector.load %arg10[%c0_13, %c0_14] : memref<32x16xf32, #tpu.memory_space<vmem>>, vector<32x16xf32>
    %c0_15 = arith.constant 0 : index
    %c0_16 = arith.constant 0 : index
    %35 = vector.load %arg11[%c0_15, %c0_16] : memref<16x16xf32, #tpu.memory_space<vmem>>, vector<16x16xf32>
    %c0_17 = arith.constant 0 : index
    %c0_18 = arith.constant 0 : index
    %36 = vector.load %arg1[%c0_17, %c0_18] : memref<8x512xf32, #tpu.memory_space<vmem>>, vector<8x512xf32>
    %c16_i32 = arith.constant 16 : i32
    %37 = tpu.dynamic_rotate %36 by %c16_i32 dim 1 : vector<8x512xf32>, i32 -> vector<8x512xf32>
    %38 = vector.broadcast %3 : vector<1x512xf32> to vector<8x512xf32>
    %39 = arith.mulf %37, %38 : vector<8x512xf32>
    %c496_i32 = arith.constant 496 : i32
    %40 = tpu.dynamic_rotate %36 by %c496_i32 dim 1 : vector<8x512xf32>, i32 -> vector<8x512xf32>
    %41 = vector.broadcast %4 : vector<1x512xf32> to vector<8x512xf32>
    %42 = arith.mulf %40, %41 : vector<8x512xf32>
    %43 = tpu.concatenate %39, %36, %42 in 0 : vector<8x512xf32>, vector<8x512xf32>, vector<8x512xf32> -> vector<24x512xf32>
    %c1_i32 = arith.constant 1 : i32
    %44 = tpu.dynamic_rotate %43 by %c1_i32 dim 1 : vector<24x512xf32>, i32 -> vector<24x512xf32>
    %45 = vector.broadcast %9 : vector<1x512xf32> to vector<24x512xf32>
    %46 = arith.mulf %44, %45 : vector<24x512xf32>
    %c0_19 = arith.constant 0 : index
    %c0_20 = arith.constant 0 : index
    %c0_21 = arith.constant 0 : index
    %47 = vector.load %arg4[%c0_19, %c0_20, %c0_21] : memref<3x16x24xf32, #tpu.memory_space<vmem>>, vector<1x16x24xf32>
    %48 = vector.shape_cast %47 : vector<1x16x24xf32> to vector<16x24xf32>
    %cst = arith.constant dense<0.000000e+00> : vector<16x512xf32>
    %49 = tpu.matmul %48, %46, %cst {dimension_numbers = #tpu.dot_dimension_numbers<[1], [0], [0], [1], [0, 0, 1, 1], [], []>} : vector<16x24xf32>, vector<24x512xf32>, vector<16x512xf32> -> vector<16x512xf32>
    %c1 = arith.constant 1 : index
    %c0_22 = arith.constant 0 : index
    %c0_23 = arith.constant 0 : index
    %50 = vector.load %arg4[%c1, %c0_22, %c0_23] : memref<3x16x24xf32, #tpu.memory_space<vmem>>, vector<1x16x24xf32>
    %51 = vector.shape_cast %50 : vector<1x16x24xf32> to vector<16x24xf32>
    %cst_24 = arith.constant dense<0.000000e+00> : vector<16x512xf32>
    %52 = tpu.matmul %51, %43, %cst_24 {dimension_numbers = #tpu.dot_dimension_numbers<[1], [0], [0], [1], [0, 0, 1, 1], [], []>} : vector<16x24xf32>, vector<24x512xf32>, vector<16x512xf32> -> vector<16x512xf32>
    %53 = arith.addf %49, %52 : vector<16x512xf32>
    %c511_i32 = arith.constant 511 : i32
    %54 = tpu.dynamic_rotate %43 by %c511_i32 dim 1 : vector<24x512xf32>, i32 -> vector<24x512xf32>
    %55 = vector.broadcast %10 : vector<1x512xf32> to vector<24x512xf32>
    %56 = arith.mulf %54, %55 : vector<24x512xf32>
    %c2 = arith.constant 2 : index
    %c0_25 = arith.constant 0 : index
    %c0_26 = arith.constant 0 : index
    %57 = vector.load %arg4[%c2, %c0_25, %c0_26] : memref<3x16x24xf32, #tpu.memory_space<vmem>>, vector<1x16x24xf32>
    %58 = vector.shape_cast %57 : vector<1x16x24xf32> to vector<16x24xf32>
    %cst_27 = arith.constant dense<0.000000e+00> : vector<16x512xf32>
    %59 = tpu.matmul %58, %56, %cst_27 {dimension_numbers = #tpu.dot_dimension_numbers<[1], [0], [0], [1], [0, 0, 1, 1], [], []>} : vector<16x24xf32>, vector<24x512xf32>, vector<16x512xf32> -> vector<16x512xf32>
    %60 = arith.addf %53, %59 : vector<16x512xf32>
    %61 = vector.broadcast %14 : vector<16x1xf32> to vector<16x512xf32>
    %62 = arith.addf %60, %61 : vector<16x512xf32>
    %cst_28 = arith.constant dense<0.000000e+00> : vector<512xf32>
    %63 = vector.multi_reduction <add>, %62, %cst_28 [0] : vector<16x512xf32> to vector<512xf32>
    %64 = vector.shape_cast %63 : vector<512xf32> to vector<1x512xf32>
    %cst_29 = arith.constant 1.600000e+01 : f32
    %65 = vector.broadcast %cst_29 : f32 to vector<1x512xf32>
    %66 = arith.divf %64, %65 : vector<1x512xf32>
    %67 = vector.broadcast %66 : vector<1x512xf32> to vector<16x512xf32>
    %68 = arith.subf %62, %67 : vector<16x512xf32>
    %69 = arith.mulf %68, %68 : vector<16x512xf32>
    %cst_30 = arith.constant dense<0.000000e+00> : vector<512xf32>
    %70 = vector.multi_reduction <add>, %69, %cst_30 [0] : vector<16x512xf32> to vector<512xf32>
    %71 = vector.shape_cast %70 : vector<512xf32> to vector<1x512xf32>
    %cst_31 = arith.constant 1.600000e+01 : f32
    %72 = vector.broadcast %cst_31 : f32 to vector<1x512xf32>
    %73 = arith.divf %71, %72 : vector<1x512xf32>
    %cst_32 = arith.constant 9.99999997E-7 : f32
    %74 = vector.broadcast %cst_32 : f32 to vector<1x512xf32>
    %75 = arith.addf %73, %74 : vector<1x512xf32>
    %76 = math.rsqrt %75 : vector<1x512xf32>
    %77 = vector.broadcast %76 : vector<1x512xf32> to vector<16x512xf32>
    %78 = arith.mulf %68, %77 : vector<16x512xf32>
    %79 = vector.broadcast %15 : vector<16x1xf32> to vector<16x512xf32>
    %80 = arith.mulf %78, %79 : vector<16x512xf32>
    %81 = vector.broadcast %16 : vector<16x1xf32> to vector<16x512xf32>
    %82 = arith.addf %80, %81 : vector<16x512xf32>
    %cst_33 = arith.constant dense<0.000000e+00> : vector<32x512xf32>
    %83 = tpu.matmul %29, %82, %cst_33 {dimension_numbers = #tpu.dot_dimension_numbers<[1], [0], [0], [1], [0, 0, 1, 1], [], []>} : vector<32x16xf32>, vector<16x512xf32>, vector<32x512xf32> -> vector<32x512xf32>
    %84 = vector.broadcast %17 : vector<32x1xf32> to vector<32x512xf32>
    %85 = arith.addf %83, %84 : vector<32x512xf32>
    %c17_i32 = arith.constant 17 : i32
    %86 = tpu.dynamic_rotate %85 by %c17_i32 dim 1 : vector<32x512xf32>, i32 -> vector<32x512xf32>
    %87 = arith.mulf %3, %9 : vector<1x512xf32>
    %88 = vector.broadcast %87 : vector<1x512xf32> to vector<32x512xf32>
    %89 = arith.mulf %86, %88 : vector<32x512xf32>
    %90 = vector.extract_strided_slice %30 {offsets = [0, 0], sizes = [32, 1], strides = [1, 1]} : vector<32x9xf32> to vector<32x1xf32>
    %91 = vector.broadcast %90 : vector<32x1xf32> to vector<32x512xf32>
    %92 = arith.mulf %89, %91 : vector<32x512xf32>
    %c16_i32_34 = arith.constant 16 : i32
    %93 = tpu.dynamic_rotate %85 by %c16_i32_34 dim 1 : vector<32x512xf32>, i32 -> vector<32x512xf32>
    %94 = vector.broadcast %3 : vector<1x512xf32> to vector<32x512xf32>
    %95 = arith.mulf %93, %94 : vector<32x512xf32>
    %96 = vector.extract_strided_slice %30 {offsets = [0, 1], sizes = [32, 1], strides = [1, 1]} : vector<32x9xf32> to vector<32x1xf32>
    %97 = vector.broadcast %96 : vector<32x1xf32> to vector<32x512xf32>
    %98 = arith.mulf %95, %97 : vector<32x512xf32>
    %99 = arith.addf %92, %98 : vector<32x512xf32>
    %c15_i32 = arith.constant 15 : i32
    %100 = tpu.dynamic_rotate %85 by %c15_i32 dim 1 : vector<32x512xf32>, i32 -> vector<32x512xf32>
    %101 = arith.mulf %3, %10 : vector<1x512xf32>
    %102 = vector.broadcast %101 : vector<1x512xf32> to vector<32x512xf32>
    %103 = arith.mulf %100, %102 : vector<32x512xf32>
    %104 = vector.extract_strided_slice %30 {offsets = [0, 2], sizes = [32, 1], strides = [1, 1]} : vector<32x9xf32> to vector<32x1xf32>
    %105 = vector.broadcast %104 : vector<32x1xf32> to vector<32x512xf32>
    %106 = arith.mulf %103, %105 : vector<32x512xf32>
    %107 = arith.addf %99, %106 : vector<32x512xf32>
    %c1_i32_35 = arith.constant 1 : i32
    %108 = tpu.dynamic_rotate %85 by %c1_i32_35 dim 1 : vector<32x512xf32>, i32 -> vector<32x512xf32>
    %109 = vector.broadcast %9 : vector<1x512xf32> to vector<32x512xf32>
    %110 = arith.mulf %108, %109 : vector<32x512xf32>
    %111 = vector.extract_strided_slice %30 {offsets = [0, 3], sizes = [32, 1], strides = [1, 1]} : vector<32x9xf32> to vector<32x1xf32>
    %112 = vector.broadcast %111 : vector<32x1xf32> to vector<32x512xf32>
    %113 = arith.mulf %110, %112 : vector<32x512xf32>
    %114 = arith.addf %107, %113 : vector<32x512xf32>
    %115 = vector.extract_strided_slice %30 {offsets = [0, 4], sizes = [32, 1], strides = [1, 1]} : vector<32x9xf32> to vector<32x1xf32>
    %116 = vector.broadcast %115 : vector<32x1xf32> to vector<32x512xf32>
    %117 = arith.mulf %85, %116 : vector<32x512xf32>
    %118 = arith.addf %114, %117 : vector<32x512xf32>
    %c511_i32_36 = arith.constant 511 : i32
    %119 = tpu.dynamic_rotate %85 by %c511_i32_36 dim 1 : vector<32x512xf32>, i32 -> vector<32x512xf32>
    %120 = vector.broadcast %10 : vector<1x512xf32> to vector<32x512xf32>
    %121 = arith.mulf %119, %120 : vector<32x512xf32>
    %122 = vector.extract_strided_slice %30 {offsets = [0, 5], sizes = [32, 1], strides = [1, 1]} : vector<32x9xf32> to vector<32x1xf32>
    %123 = vector.broadcast %122 : vector<32x1xf32> to vector<32x512xf32>
    %124 = arith.mulf %121, %123 : vector<32x512xf32>
    %125 = arith.addf %118, %124 : vector<32x512xf32>
    %c497_i32 = arith.constant 497 : i32
    %126 = tpu.dynamic_rotate %85 by %c497_i32 dim 1 : vector<32x512xf32>, i32 -> vector<32x512xf32>
    %127 = arith.mulf %4, %9 : vector<1x512xf32>
    %128 = vector.broadcast %127 : vector<1x512xf32> to vector<32x512xf32>
    %129 = arith.mulf %126, %128 : vector<32x512xf32>
    %130 = vector.extract_strided_slice %30 {offsets = [0, 6], sizes = [32, 1], strides = [1, 1]} : vector<32x9xf32> to vector<32x1xf32>
    %131 = vector.broadcast %130 : vector<32x1xf32> to vector<32x512xf32>
    %132 = arith.mulf %129, %131 : vector<32x512xf32>
    %133 = arith.addf %125, %132 : vector<32x512xf32>
    %c496_i32_37 = arith.constant 496 : i32
    %134 = tpu.dynamic_rotate %85 by %c496_i32_37 dim 1 : vector<32x512xf32>, i32 -> vector<32x512xf32>
    %135 = vector.broadcast %4 : vector<1x512xf32> to vector<32x512xf32>
    %136 = arith.mulf %134, %135 : vector<32x512xf32>
    %137 = vector.extract_strided_slice %30 {offsets = [0, 7], sizes = [32, 1], strides = [1, 1]} : vector<32x9xf32> to vector<32x1xf32>
    %138 = vector.broadcast %137 : vector<32x1xf32> to vector<32x512xf32>
    %139 = arith.mulf %136, %138 : vector<32x512xf32>
    %140 = arith.addf %133, %139 : vector<32x512xf32>
    %c495_i32 = arith.constant 495 : i32
    %141 = tpu.dynamic_rotate %85 by %c495_i32 dim 1 : vector<32x512xf32>, i32 -> vector<32x512xf32>
    %142 = arith.mulf %4, %10 : vector<1x512xf32>
    %143 = vector.broadcast %142 : vector<1x512xf32> to vector<32x512xf32>
    %144 = arith.mulf %141, %143 : vector<32x512xf32>
    %145 = vector.extract_strided_slice %30 {offsets = [0, 8], sizes = [32, 1], strides = [1, 1]} : vector<32x9xf32> to vector<32x1xf32>
    %146 = vector.broadcast %145 : vector<32x1xf32> to vector<32x512xf32>
    %147 = arith.mulf %144, %146 : vector<32x512xf32>
    %148 = arith.addf %140, %147 : vector<32x512xf32>
    %149 = vector.broadcast %18 : vector<32x1xf32> to vector<32x512xf32>
    %150 = arith.addf %148, %149 : vector<32x512xf32>
    %cst_38 = arith.constant dense<0.000000e+00> : vector<512xf32>
    %151 = vector.multi_reduction <add>, %150, %cst_38 [0] : vector<32x512xf32> to vector<512xf32>
    %152 = vector.shape_cast %151 : vector<512xf32> to vector<1x512xf32>
    %cst_39 = arith.constant 3.200000e+01 : f32
    %153 = vector.broadcast %cst_39 : f32 to vector<1x512xf32>
    %154 = arith.divf %152, %153 : vector<1x512xf32>
    %cst_40 = arith.constant dense<0xFF800000> : vector<512xf32>
    %155 = vector.multi_reduction <maximumf>, %150, %cst_40 [0] : vector<32x512xf32> to vector<512xf32>
    %156 = vector.shape_cast %155 : vector<512xf32> to vector<1x512xf32>
    %157 = tpu.concatenate %154, %156 in 0 : vector<1x512xf32>, vector<1x512xf32> -> vector<2x512xf32>
    %c48_i32 = arith.constant 48 : i32
    %158 = tpu.dynamic_rotate %157 by %c48_i32 dim 1 : vector<2x512xf32>, i32 -> vector<2x512xf32>
    %159 = vector.broadcast %1 : vector<1x512xf32> to vector<2x512xf32>
    %160 = arith.mulf %158, %159 : vector<2x512xf32>
    %c32_i32 = arith.constant 32 : i32
    %161 = tpu.dynamic_rotate %157 by %c32_i32 dim 1 : vector<2x512xf32>, i32 -> vector<2x512xf32>
    %162 = vector.broadcast %2 : vector<1x512xf32> to vector<2x512xf32>
    %163 = arith.mulf %161, %162 : vector<2x512xf32>
    %c16_i32_41 = arith.constant 16 : i32
    %164 = tpu.dynamic_rotate %157 by %c16_i32_41 dim 1 : vector<2x512xf32>, i32 -> vector<2x512xf32>
    %165 = vector.broadcast %3 : vector<1x512xf32> to vector<2x512xf32>
    %166 = arith.mulf %164, %165 : vector<2x512xf32>
    %c496_i32_42 = arith.constant 496 : i32
    %167 = tpu.dynamic_rotate %157 by %c496_i32_42 dim 1 : vector<2x512xf32>, i32 -> vector<2x512xf32>
    %168 = vector.broadcast %4 : vector<1x512xf32> to vector<2x512xf32>
    %169 = arith.mulf %167, %168 : vector<2x512xf32>
    %c480_i32 = arith.constant 480 : i32
    %170 = tpu.dynamic_rotate %157 by %c480_i32 dim 1 : vector<2x512xf32>, i32 -> vector<2x512xf32>
    %171 = vector.broadcast %5 : vector<1x512xf32> to vector<2x512xf32>
    %172 = arith.mulf %170, %171 : vector<2x512xf32>
    %c464_i32 = arith.constant 464 : i32
    %173 = tpu.dynamic_rotate %157 by %c464_i32 dim 1 : vector<2x512xf32>, i32 -> vector<2x512xf32>
    %174 = vector.broadcast %6 : vector<1x512xf32> to vector<2x512xf32>
    %175 = arith.mulf %173, %174 : vector<2x512xf32>
    %176 = tpu.concatenate %160, %163, %166, %157, %169, %172, %175 in 0 : vector<2x512xf32>, vector<2x512xf32>, vector<2x512xf32>, vector<2x512xf32>, vector<2x512xf32>, vector<2x512xf32>, vector<2x512xf32> -> vector<14x512xf32>
    %c3_i32 = arith.constant 3 : i32
    %177 = tpu.dynamic_rotate %176 by %c3_i32 dim 1 : vector<14x512xf32>, i32 -> vector<14x512xf32>
    %178 = vector.broadcast %7 : vector<1x512xf32> to vector<14x512xf32>
    %179 = arith.mulf %177, %178 : vector<14x512xf32>
    %180 = vector.extract_strided_slice %31 {offsets = [0, 0], sizes = [14, 1], strides = [1, 1]} : vector<14x7xf32> to vector<14x1xf32>
    %181 = vector.broadcast %180 : vector<14x1xf32> to vector<14x512xf32>
    %182 = arith.mulf %179, %181 : vector<14x512xf32>
    %c2_i32 = arith.constant 2 : i32
    %183 = tpu.dynamic_rotate %176 by %c2_i32 dim 1 : vector<14x512xf32>, i32 -> vector<14x512xf32>
    %184 = vector.broadcast %8 : vector<1x512xf32> to vector<14x512xf32>
    %185 = arith.mulf %183, %184 : vector<14x512xf32>
    %186 = vector.extract_strided_slice %31 {offsets = [0, 1], sizes = [14, 1], strides = [1, 1]} : vector<14x7xf32> to vector<14x1xf32>
    %187 = vector.broadcast %186 : vector<14x1xf32> to vector<14x512xf32>
    %188 = arith.mulf %185, %187 : vector<14x512xf32>
    %189 = arith.addf %182, %188 : vector<14x512xf32>
    %c1_i32_43 = arith.constant 1 : i32
    %190 = tpu.dynamic_rotate %176 by %c1_i32_43 dim 1 : vector<14x512xf32>, i32 -> vector<14x512xf32>
    %191 = vector.broadcast %9 : vector<1x512xf32> to vector<14x512xf32>
    %192 = arith.mulf %190, %191 : vector<14x512xf32>
    %193 = vector.extract_strided_slice %31 {offsets = [0, 2], sizes = [14, 1], strides = [1, 1]} : vector<14x7xf32> to vector<14x1xf32>
    %194 = vector.broadcast %193 : vector<14x1xf32> to vector<14x512xf32>
    %195 = arith.mulf %192, %194 : vector<14x512xf32>
    %196 = arith.addf %189, %195 : vector<14x512xf32>
    %197 = vector.extract_strided_slice %31 {offsets = [0, 3], sizes = [14, 1], strides = [1, 1]} : vector<14x7xf32> to vector<14x1xf32>
    %198 = vector.broadcast %197 : vector<14x1xf32> to vector<14x512xf32>
    %199 = arith.mulf %176, %198 : vector<14x512xf32>
    %200 = arith.addf %196, %199 : vector<14x512xf32>
    %c511_i32_44 = arith.constant 511 : i32
    %201 = tpu.dynamic_rotate %176 by %c511_i32_44 dim 1 : vector<14x512xf32>, i32 -> vector<14x512xf32>
    %202 = vector.broadcast %10 : vector<1x512xf32> to vector<14x512xf32>
    %203 = arith.mulf %201, %202 : vector<14x512xf32>
    %204 = vector.extract_strided_slice %31 {offsets = [0, 4], sizes = [14, 1], strides = [1, 1]} : vector<14x7xf32> to vector<14x1xf32>
    %205 = vector.broadcast %204 : vector<14x1xf32> to vector<14x512xf32>
    %206 = arith.mulf %203, %205 : vector<14x512xf32>
    %207 = arith.addf %200, %206 : vector<14x512xf32>
    %c510_i32 = arith.constant 510 : i32
    %208 = tpu.dynamic_rotate %176 by %c510_i32 dim 1 : vector<14x512xf32>, i32 -> vector<14x512xf32>
    %209 = vector.broadcast %11 : vector<1x512xf32> to vector<14x512xf32>
    %210 = arith.mulf %208, %209 : vector<14x512xf32>
    %211 = vector.extract_strided_slice %31 {offsets = [0, 5], sizes = [14, 1], strides = [1, 1]} : vector<14x7xf32> to vector<14x1xf32>
    %212 = vector.broadcast %211 : vector<14x1xf32> to vector<14x512xf32>
    %213 = arith.mulf %210, %212 : vector<14x512xf32>
    %214 = arith.addf %207, %213 : vector<14x512xf32>
    %c509_i32 = arith.constant 509 : i32
    %215 = tpu.dynamic_rotate %176 by %c509_i32 dim 1 : vector<14x512xf32>, i32 -> vector<14x512xf32>
    %216 = vector.broadcast %12 : vector<1x512xf32> to vector<14x512xf32>
    %217 = arith.mulf %215, %216 : vector<14x512xf32>
    %218 = vector.extract_strided_slice %31 {offsets = [0, 6], sizes = [14, 1], strides = [1, 1]} : vector<14x7xf32> to vector<14x1xf32>
    %219 = vector.broadcast %218 : vector<14x1xf32> to vector<14x512xf32>
    %220 = arith.mulf %217, %219 : vector<14x512xf32>
    %221 = arith.addf %214, %220 : vector<14x512xf32>
    %cst_45 = arith.constant dense<0.000000e+00> : vector<512xf32>
    %222 = vector.multi_reduction <add>, %221, %cst_45 [0] : vector<14x512xf32> to vector<512xf32>
    %223 = vector.shape_cast %222 : vector<512xf32> to vector<1x512xf32>
    %224 = vector.broadcast %19 : vector<1x1xf32> to vector<1x512xf32>
    %225 = arith.addf %223, %224 : vector<1x512xf32>
    %226 = vector.extract_strided_slice %150 {offsets = [0, 0], sizes = [16, 512], strides = [1, 1]} : vector<32x512xf32> to vector<16x512xf32>
    %227 = vector.extract_strided_slice %150 {offsets = [16, 0], sizes = [16, 512], strides = [1, 1]} : vector<32x512xf32> to vector<16x512xf32>
    %228 = arith.mulf %226, %227 : vector<16x512xf32>
    %229 = vector.broadcast %225 : vector<1x512xf32> to vector<16x512xf32>
    %230 = arith.mulf %228, %229 : vector<16x512xf32>
    %231 = vector.extract_strided_slice %230 {offsets = [0, 0], sizes = [16, 256], strides = [1, 1]} : vector<16x512xf32> to vector<16x256xf32>
    %cst_46 = arith.constant dense<0.000000e+00> : vector<16xf32>
    %232 = vector.multi_reduction <add>, %231, %cst_46 [1] : vector<16x256xf32> to vector<16xf32>
    %233 = vector.shape_cast %232 : vector<16xf32> to vector<16x1xf32>
    %cst_47 = arith.constant 2.560000e+02 : f32
    %234 = vector.broadcast %cst_47 : f32 to vector<16x1xf32>
    %235 = arith.divf %233, %234 : vector<16x1xf32>
    %236 = vector.extract_strided_slice %230 {offsets = [0, 256], sizes = [16, 256], strides = [1, 1]} : vector<16x512xf32> to vector<16x256xf32>
    %cst_48 = arith.constant dense<0.000000e+00> : vector<16xf32>
    %237 = vector.multi_reduction <add>, %236, %cst_48 [1] : vector<16x256xf32> to vector<16xf32>
    %238 = vector.shape_cast %237 : vector<16xf32> to vector<16x1xf32>
    %cst_49 = arith.constant 2.560000e+02 : f32
    %239 = vector.broadcast %cst_49 : f32 to vector<16x1xf32>
    %240 = arith.divf %238, %239 : vector<16x1xf32>
    %241 = tpu.concatenate %235, %240 in 1 : vector<16x1xf32>, vector<16x1xf32> -> vector<16x2xf32>
    %cst_50 = arith.constant dense<0.000000e+00> : vector<16x2xf32>
    %242 = tpu.matmul %32, %241, %cst_50 {dimension_numbers = #tpu.dot_dimension_numbers<[1], [0], [0], [1], [0, 0, 1, 1], [], []>} : vector<16x16xf32>, vector<16x2xf32>, vector<16x2xf32> -> vector<16x2xf32>
    %243 = vector.broadcast %20 : vector<16x1xf32> to vector<16x2xf32>
    %244 = arith.addf %242, %243 : vector<16x2xf32>
    %245 = vector.extract_strided_slice %244 {offsets = [0, 0], sizes = [16, 1], strides = [1, 1]} : vector<16x2xf32> to vector<16x1xf32>
    %246 = vector.shape_cast %245 : vector<16x1xf32> to vector<16x1xf32>
    %247 = vector.broadcast %246 : vector<16x1xf32> to vector<16x256xf32>
    %248 = vector.extract_strided_slice %244 {offsets = [0, 1], sizes = [16, 1], strides = [1, 1]} : vector<16x2xf32> to vector<16x1xf32>
    %249 = vector.shape_cast %248 : vector<16x1xf32> to vector<16x1xf32>
    %250 = vector.broadcast %249 : vector<16x1xf32> to vector<16x256xf32>
    %251 = tpu.concatenate %247, %250 in 1 : vector<16x256xf32>, vector<16x256xf32> -> vector<16x512xf32>
    %252 = arith.mulf %230, %251 : vector<16x512xf32>
    %cst_51 = arith.constant dense<0.000000e+00> : vector<16x512xf32>
    %253 = tpu.matmul %33, %252, %cst_51 {dimension_numbers = #tpu.dot_dimension_numbers<[1], [0], [0], [1], [0, 0, 1, 1], [], []>} : vector<16x16xf32>, vector<16x512xf32>, vector<16x512xf32> -> vector<16x512xf32>
    %254 = vector.broadcast %21 : vector<16x1xf32> to vector<16x512xf32>
    %255 = arith.addf %253, %254 : vector<16x512xf32>
    %256 = vector.broadcast %22 : vector<16x1xf32> to vector<16x512xf32>
    %257 = arith.mulf %255, %256 : vector<16x512xf32>
    %258 = arith.addf %62, %257 : vector<16x512xf32>
    %cst_52 = arith.constant dense<0.000000e+00> : vector<512xf32>
    %259 = vector.multi_reduction <add>, %258, %cst_52 [0] : vector<16x512xf32> to vector<512xf32>
    %260 = vector.shape_cast %259 : vector<512xf32> to vector<1x512xf32>
    %cst_53 = arith.constant 1.600000e+01 : f32
    %261 = vector.broadcast %cst_53 : f32 to vector<1x512xf32>
    %262 = arith.divf %260, %261 : vector<1x512xf32>
    %263 = vector.broadcast %262 : vector<1x512xf32> to vector<16x512xf32>
    %264 = arith.subf %258, %263 : vector<16x512xf32>
    %265 = arith.mulf %264, %264 : vector<16x512xf32>
    %cst_54 = arith.constant dense<0.000000e+00> : vector<512xf32>
    %266 = vector.multi_reduction <add>, %265, %cst_54 [0] : vector<16x512xf32> to vector<512xf32>
    %267 = vector.shape_cast %266 : vector<512xf32> to vector<1x512xf32>
    %cst_55 = arith.constant 1.600000e+01 : f32
    %268 = vector.broadcast %cst_55 : f32 to vector<1x512xf32>
    %269 = arith.divf %267, %268 : vector<1x512xf32>
    %cst_56 = arith.constant 9.99999997E-7 : f32
    %270 = vector.broadcast %cst_56 : f32 to vector<1x512xf32>
    %271 = arith.addf %269, %270 : vector<1x512xf32>
    %272 = math.rsqrt %271 : vector<1x512xf32>
    %273 = vector.broadcast %272 : vector<1x512xf32> to vector<16x512xf32>
    %274 = arith.mulf %264, %273 : vector<16x512xf32>
    %275 = vector.broadcast %23 : vector<16x1xf32> to vector<16x512xf32>
    %276 = arith.mulf %274, %275 : vector<16x512xf32>
    %277 = vector.broadcast %24 : vector<16x1xf32> to vector<16x512xf32>
    %278 = arith.addf %276, %277 : vector<16x512xf32>
    %cst_57 = arith.constant dense<0.000000e+00> : vector<32x512xf32>
    %279 = tpu.matmul %34, %278, %cst_57 {dimension_numbers = #tpu.dot_dimension_numbers<[1], [0], [0], [1], [0, 0, 1, 1], [], []>} : vector<32x16xf32>, vector<16x512xf32>, vector<32x512xf32> -> vector<32x512xf32>
    %280 = vector.broadcast %25 : vector<32x1xf32> to vector<32x512xf32>
    %281 = arith.addf %279, %280 : vector<32x512xf32>
    %282 = vector.extract_strided_slice %281 {offsets = [0, 0], sizes = [16, 512], strides = [1, 1]} : vector<32x512xf32> to vector<16x512xf32>
    %283 = vector.extract_strided_slice %281 {offsets = [16, 0], sizes = [16, 512], strides = [1, 1]} : vector<32x512xf32> to vector<16x512xf32>
    %284 = arith.mulf %282, %283 : vector<16x512xf32>
    %cst_58 = arith.constant dense<0.000000e+00> : vector<16x512xf32>
    %285 = tpu.matmul %35, %284, %cst_58 {dimension_numbers = #tpu.dot_dimension_numbers<[1], [0], [0], [1], [0, 0, 1, 1], [], []>} : vector<16x16xf32>, vector<16x512xf32>, vector<16x512xf32> -> vector<16x512xf32>
    %286 = vector.broadcast %26 : vector<16x1xf32> to vector<16x512xf32>
    %287 = arith.addf %285, %286 : vector<16x512xf32>
    %288 = vector.broadcast %27 : vector<16x1xf32> to vector<16x512xf32>
    %289 = arith.mulf %287, %288 : vector<16x512xf32>
    %290 = arith.addf %258, %289 : vector<16x512xf32>
    %c16_i32_59 = arith.constant 16 : i32
    %291 = tpu.dynamic_rotate %290 by %c16_i32_59 dim 1 : vector<16x512xf32>, i32 -> vector<16x512xf32>
    %292 = vector.broadcast %3 : vector<1x512xf32> to vector<16x512xf32>
    %293 = arith.mulf %291, %292 : vector<16x512xf32>
    %c496_i32_60 = arith.constant 496 : i32
    %294 = tpu.dynamic_rotate %290 by %c496_i32_60 dim 1 : vector<16x512xf32>, i32 -> vector<16x512xf32>
    %295 = vector.broadcast %4 : vector<1x512xf32> to vector<16x512xf32>
    %296 = arith.mulf %294, %295 : vector<16x512xf32>
    %297 = tpu.concatenate %293, %290, %296 in 0 : vector<16x512xf32>, vector<16x512xf32>, vector<16x512xf32> -> vector<48x512xf32>
    %c1_i32_61 = arith.constant 1 : i32
    %298 = tpu.dynamic_rotate %297 by %c1_i32_61 dim 1 : vector<48x512xf32>, i32 -> vector<48x512xf32>
    %299 = vector.broadcast %9 : vector<1x512xf32> to vector<48x512xf32>
    %300 = arith.mulf %298, %299 : vector<48x512xf32>
    %c0_62 = arith.constant 0 : index
    %c0_63 = arith.constant 0 : index
    %c0_64 = arith.constant 0 : index
    %301 = vector.load %arg12[%c0_62, %c0_63, %c0_64] : memref<3x5x48xf32, #tpu.memory_space<vmem>>, vector<1x5x48xf32>
    %302 = vector.shape_cast %301 : vector<1x5x48xf32> to vector<5x48xf32>
    %cst_65 = arith.constant dense<0.000000e+00> : vector<5x512xf32>
    %303 = tpu.matmul %302, %300, %cst_65 {dimension_numbers = #tpu.dot_dimension_numbers<[1], [0], [0], [1], [0, 0, 1, 1], [], []>} : vector<5x48xf32>, vector<48x512xf32>, vector<5x512xf32> -> vector<5x512xf32>
    %c1_66 = arith.constant 1 : index
    %c0_67 = arith.constant 0 : index
    %c0_68 = arith.constant 0 : index
    %304 = vector.load %arg12[%c1_66, %c0_67, %c0_68] : memref<3x5x48xf32, #tpu.memory_space<vmem>>, vector<1x5x48xf32>
    %305 = vector.shape_cast %304 : vector<1x5x48xf32> to vector<5x48xf32>
    %cst_69 = arith.constant dense<0.000000e+00> : vector<5x512xf32>
    %306 = tpu.matmul %305, %297, %cst_69 {dimension_numbers = #tpu.dot_dimension_numbers<[1], [0], [0], [1], [0, 0, 1, 1], [], []>} : vector<5x48xf32>, vector<48x512xf32>, vector<5x512xf32> -> vector<5x512xf32>
    %307 = arith.addf %303, %306 : vector<5x512xf32>
    %c511_i32_70 = arith.constant 511 : i32
    %308 = tpu.dynamic_rotate %297 by %c511_i32_70 dim 1 : vector<48x512xf32>, i32 -> vector<48x512xf32>
    %309 = vector.broadcast %10 : vector<1x512xf32> to vector<48x512xf32>
    %310 = arith.mulf %308, %309 : vector<48x512xf32>
    %c2_71 = arith.constant 2 : index
    %c0_72 = arith.constant 0 : index
    %c0_73 = arith.constant 0 : index
    %311 = vector.load %arg12[%c2_71, %c0_72, %c0_73] : memref<3x5x48xf32, #tpu.memory_space<vmem>>, vector<1x5x48xf32>
    %312 = vector.shape_cast %311 : vector<1x5x48xf32> to vector<5x48xf32>
    %cst_74 = arith.constant dense<0.000000e+00> : vector<5x512xf32>
    %313 = tpu.matmul %312, %310, %cst_74 {dimension_numbers = #tpu.dot_dimension_numbers<[1], [0], [0], [1], [0, 0, 1, 1], [], []>} : vector<5x48xf32>, vector<48x512xf32>, vector<5x512xf32> -> vector<5x512xf32>
    %314 = arith.addf %307, %313 : vector<5x512xf32>
    %315 = vector.broadcast %28 : vector<5x1xf32> to vector<5x512xf32>
    %316 = arith.addf %314, %315 : vector<5x512xf32>
    %c0_75 = arith.constant 0 : index
    %c0_76 = arith.constant 0 : index
    %317 = vector.load %arg13[%c0_75, %c0_76] : memref<5x512xf32, #tpu.memory_space<vmem>>, vector<5x512xf32>
    tpu.vector_store %arg13[%c0_75, %c0_76], %316 {strides = array<i32>} : memref<5x512xf32, #tpu.memory_space<vmem>>, vector<5x512xf32>,
    return
  }
  func.func @transform_0(%arg0: i32) -> (i32, i32) {
    %c0_i32 = arith.constant 0 : i32
    %c0_i32_0 = arith.constant 0 : i32
    return %c0_i32, %arg0 : i32, i32
  }
  func.func @transform_1(%arg0: i32) -> (i32, i32) {
    %c0_i32 = arith.constant 0 : i32
    %c0_i32_0 = arith.constant 0 : i32
    %c0_i32_1 = arith.constant 0 : i32
    return %c0_i32, %c0_i32_0 : i32, i32
  }
  func.func @transform_2(%arg0: i32) -> (i32, i32) {
    %c0_i32 = arith.constant 0 : i32
    %c0_i32_0 = arith.constant 0 : i32
    %c0_i32_1 = arith.constant 0 : i32
    return %c0_i32, %c0_i32_0 : i32, i32
  }
  func.func @transform_3(%arg0: i32) -> (i32, i32, i32) {
    %c0_i32 = arith.constant 0 : i32
    %c0_i32_0 = arith.constant 0 : i32
    %c0_i32_1 = arith.constant 0 : i32
    %c0_i32_2 = arith.constant 0 : i32
    return %c0_i32, %c0_i32_0, %c0_i32_1 : i32, i32, i32
  }
  func.func @transform_4(%arg0: i32) -> (i32, i32) {
    %c0_i32 = arith.constant 0 : i32
    %c0_i32_0 = arith.constant 0 : i32
    %c0_i32_1 = arith.constant 0 : i32
    return %c0_i32, %c0_i32_0 : i32, i32
  }
  func.func @transform_5(%arg0: i32) -> (i32, i32) {
    %c0_i32 = arith.constant 0 : i32
    %c0_i32_0 = arith.constant 0 : i32
    %c0_i32_1 = arith.constant 0 : i32
    return %c0_i32, %c0_i32_0 : i32, i32
  }
  func.func @transform_6(%arg0: i32) -> (i32, i32) {
    %c0_i32 = arith.constant 0 : i32
    %c0_i32_0 = arith.constant 0 : i32
    %c0_i32_1 = arith.constant 0 : i32
    return %c0_i32, %c0_i32_0 : i32, i32
  }
  func.func @transform_7(%arg0: i32) -> (i32, i32) {
    %c0_i32 = arith.constant 0 : i32
    %c0_i32_0 = arith.constant 0 : i32
    %c0_i32_1 = arith.constant 0 : i32
    return %c0_i32, %c0_i32_0 : i32, i32
  }
  func.func @transform_8(%arg0: i32) -> (i32, i32) {
    %c0_i32 = arith.constant 0 : i32
    %c0_i32_0 = arith.constant 0 : i32
    %c0_i32_1 = arith.constant 0 : i32
    return %c0_i32, %c0_i32_0 : i32, i32
  }
  func.func @transform_9(%arg0: i32) -> (i32, i32) {
    %c0_i32 = arith.constant 0 : i32
    %c0_i32_0 = arith.constant 0 : i32
    %c0_i32_1 = arith.constant 0 : i32
    return %c0_i32, %c0_i32_0 : i32, i32
  }
  func.func @transform_10(%arg0: i32) -> (i32, i32) {
    %c0_i32 = arith.constant 0 : i32
    %c0_i32_0 = arith.constant 0 : i32
    %c0_i32_1 = arith.constant 0 : i32
    return %c0_i32, %c0_i32_0 : i32, i32
  }
  func.func @transform_11(%arg0: i32) -> (i32, i32, i32) {
    %c0_i32 = arith.constant 0 : i32
    %c0_i32_0 = arith.constant 0 : i32
    %c0_i32_1 = arith.constant 0 : i32
    %c0_i32_2 = arith.constant 0 : i32
    return %c0_i32, %c0_i32_0, %c0_i32_1 : i32, i32, i32
  }
  func.func @transform_12(%arg0: i32) -> (i32, i32) {
    %c0_i32 = arith.constant 0 : i32
    %c0_i32_0 = arith.constant 0 : i32
    return %c0_i32, %arg0 : i32, i32
  }
}

</mosaic_0001>

<llo_original>
// kernel: tpu_custom_call.1
$region0: #{tpu_custom_call.1}
  #allocation0 [shape = 'u32[]', space=smem, size = 0x4, offset = 0x4, fixed_abs, tag = 'smem constant byte address 0x4 - core index']
  #allocation1 [shape = 'u32[144,128]{1,0:T(1,128)}', space=vmem, size = 0x12000, scoped, tag = 'internal scratch']
  %s0 = inlined_call_operand.vmem [shape: f32[8,512], index: 0, kind: input, shape index: {}]
  %s1 = inlined_call_operand.vmem [shape: f32[16,512], index: 1, kind: input, shape index: {}]
  %s2 = inlined_call_operand.vmem [shape: f32[32,15], index: 2, kind: input, shape index: {}]
  %s3 = inlined_call_operand.vmem [shape: f32[3,16,24], index: 3, kind: input, shape index: {}]
  %s4 = inlined_call_operand.vmem [shape: f32[32,16], index: 4, kind: input, shape index: {}]
  %s5 = inlined_call_operand.vmem [shape: f32[32,9], index: 5, kind: input, shape index: {}]
  %s6 = inlined_call_operand.vmem [shape: f32[14,7], index: 6, kind: input, shape index: {}]
  %s7 = inlined_call_operand.vmem [shape: f32[16,16], index: 7, kind: input, shape index: {}]
  %s8 = inlined_call_operand.vmem [shape: f32[16,16], index: 8, kind: input, shape index: {}]
  %s9 = inlined_call_operand.vmem [shape: f32[32,16], index: 9, kind: input, shape index: {}]
  %s10 = inlined_call_operand.vmem [shape: f32[16,16], index: 10, kind: input, shape index: {}]
  %s11 = inlined_call_operand.vmem [shape: f32[3,5,48], index: 11, kind: input, shape index: {}]
  %s12 = inlined_call_operand.hbm [shape: f32[5,512], index: 12, kind: output, shape index: {}]
  %s13 = sld [smem:[#allocation0]]
  $region58: #{tpu_custom_call.1} parent=0
    _
  %s15 = ssub.s32 1, %s13
  %s16 = scalar_select 0, %s15, %s13
  $region1: #{tpu_custom_call.1} parent=0
    #allocation2 [shape = 'u8[16384]{0}', space=vmem, size = 0x4000, scoped, tag = 'output window, operand 0, single buffered']
    #allocation3 [shape = 's32[1]{0}', space=sflag, size = 0x4, scoped, tag = 'scoped memory for tpu_custom_call.1']
    %17 = vsyncpa [#allocation3], 0
    // Predicated region
    $region2: #{tpu_custom_call.1} parent=1 // pred_check
      _
    $region3: #{tpu_custom_call.1} parent=1 // pred_check_branch
      %19 = sbr.rel (0) target = $region5
    $region4: #{tpu_custom_call.1} parent=1 // pred_region
      _
    $region5: #{tpu_custom_call.1} parent=1 // pred_fallthru
      _
    // Predicated region
    $region6: #{tpu_custom_call.1} parent=1 // pred_check
      _
    $region7: #{tpu_custom_call.1} parent=1 // pred_check_branch
      %21 = sbr.rel (0) target = $region9
    $region8: #{tpu_custom_call.1} parent=1 // pred_region
      _
    $region9: #{tpu_custom_call.1} parent=1 // pred_fallthru
      _
    // Predicated region
    $region10: #{tpu_custom_call.1} parent=1 // pred_check
      _
    $region11: #{tpu_custom_call.1} parent=1 // pred_check_branch
      %23 = sbr.rel (0) target = $region13
    $region12: #{tpu_custom_call.1} parent=1 // pred_region
      _
    $region13: #{tpu_custom_call.1} parent=1 // pred_fallthru
      _
    // Predicated region
    $region14: #{tpu_custom_call.1} parent=1 // pred_check
      _
    $region15: #{tpu_custom_call.1} parent=1 // pred_check_branch
      %25 = sbr.rel (0) target = $region17
    $region16: #{tpu_custom_call.1} parent=1 // pred_region
      _
    $region17: #{tpu_custom_call.1} parent=1 // pred_fallthru
      _
    // Predicated region
    $region18: #{tpu_custom_call.1} parent=1 // pred_check
      _
    $region19: #{tpu_custom_call.1} parent=1 // pred_check_branch
      %27 = sbr.rel (0) target = $region21
    $region20: #{tpu_custom_call.1} parent=1 // pred_region
      _
    $region21: #{tpu_custom_call.1} parent=1 // pred_fallthru
      _
    // Predicated region
    $region22: #{tpu_custom_call.1} parent=1 // pred_check
      _
    $region23: #{tpu_custom_call.1} parent=1 // pred_check_branch
      %29 = sbr.rel (0) target = $region25
    $region24: #{tpu_custom_call.1} parent=1 // pred_region
      _
    $region25: #{tpu_custom_call.1} parent=1 // pred_fallthru
      _
    // Predicated region
    $region26: #{tpu_custom_call.1} parent=1 // pred_check
      _
    $region27: #{tpu_custom_call.1} parent=1 // pred_check_branch
      %31 = sbr.rel (0) target = $region29
    $region28: #{tpu_custom_call.1} parent=1 // pred_region
      _
    $region29: #{tpu_custom_call.1} parent=1 // pred_fallthru
      _
    // Predicated region
    $region30: #{tpu_custom_call.1} parent=1 // pred_check
      _
    $region31: #{tpu_custom_call.1} parent=1 // pred_check_branch
      %33 = sbr.rel (0) target = $region33
    $region32: #{tpu_custom_call.1} parent=1 // pred_region
      _
    $region33: #{tpu_custom_call.1} parent=1 // pred_fallthru
      _
    // Predicated region
    $region34: #{tpu_custom_call.1} parent=1 // pred_check
      _
    $region35: #{tpu_custom_call.1} parent=1 // pred_check_branch
      %35 = sbr.rel (0) target = $region37
    $region36: #{tpu_custom_call.1} parent=1 // pred_region
      _
    $region37: #{tpu_custom_call.1} parent=1 // pred_fallthru
      _
    // Predicated region
    $region38: #{tpu_custom_call.1} parent=1 // pred_check
      _
    $region39: #{tpu_custom_call.1} parent=1 // pred_check_branch
      %37 = sbr.rel (0) target = $region41
    $region40: #{tpu_custom_call.1} parent=1 // pred_region
      _
    $region41: #{tpu_custom_call.1} parent=1 // pred_fallthru
      _
    // Predicated region
    $region42: #{tpu_custom_call.1} parent=1 // pred_check
      _
    $region43: #{tpu_custom_call.1} parent=1 // pred_check_branch
      %39 = sbr.rel (0) target = $region45
    $region44: #{tpu_custom_call.1} parent=1 // pred_region
      _
    $region45: #{tpu_custom_call.1} parent=1 // pred_fallthru
      _
    // Predicated region
    $region46: #{tpu_custom_call.1} parent=1 // pred_check
      _
    $region47: #{tpu_custom_call.1} parent=1 // pred_check_branch
      %41 = sbr.rel (0) target = $region49
    $region48: #{tpu_custom_call.1} parent=1 // pred_region
      _
    $region49: #{tpu_custom_call.1} parent=1 // pred_fallthru
      _
    %v42 = vld [vmem:[%s1] sm:$0xff]
    %v43 = vld [vmem:[%s1 + $0x8] sm:$0xff]
    %v44 = vld [vmem:[%s1 + $0x10] sm:$0xff]
    %v45 = vld [vmem:[%s1 + $0x18] sm:$0xff]
    %v46 = vld [vmem:[%s1 + $0x20] sm:$0xff]
    %v47 = vld [vmem:[%s1 + $0x28] sm:$0xff]
    %v48 = vld [vmem:[%s1 + $0x30] sm:$0xff]
    %v49 = vld [vmem:[%s1 + $0x38] sm:$0xff]
    %v50 = vld [vmem:[%s2] sm:$0xff]
    %v51 = vld [vmem:[%s2 + $0x8] sm:$0xff]
    %v52 = vld [vmem:[%s2 + $0x10] sm:$0xff]
    %v53 = vld [vmem:[%s2 + $0x18] sm:$0xff]
    %v54 = vld [vmem:[%s4] sm:$0xff]
    %v55 = vld [vmem:[%s4 + $0x8] sm:$0xff]
    %v56 = vld [vmem:[%s4 + $0x10] sm:$0xff]
    %v57 = vld [vmem:[%s4 + $0x18] sm:$0xff]
    %v58 = vld [vmem:[%s5] sm:$0xff]
    %v59 = vld [vmem:[%s5 + $0x8] sm:$0xff]
    %v60 = vld [vmem:[%s5 + $0x10] sm:$0xff]
    %v61 = vld [vmem:[%s5 + $0x18] sm:$0xff]
    %v62 = vld [vmem:[%s6] sm:$0xff]
    %v63 = vld [vmem:[%s6 + $0x8] sm:$0x3f]
    %v64 = vld [vmem:[%s7] sm:$0xff]
    %v65 = vld [vmem:[%s7 + $0x8] sm:$0xff]
    %v66 = vld [vmem:[%s8] sm:$0xff]
    %v67 = vld [vmem:[%s8 + $0x8] sm:$0xff]
    %v68 = vld [vmem:[%s9] sm:$0xff]
    %v69 = vld [vmem:[%s9 + $0x8] sm:$0xff]
    %v70 = vld [vmem:[%s9 + $0x10] sm:$0xff]
    %v71 = vld [vmem:[%s9 + $0x18] sm:$0xff]
    %v72 = vld [vmem:[%s10] sm:$0xff]
    %v73 = vld [vmem:[%s10 + $0x8] sm:$0xff]
    %v74 = vld [vmem:[%s0] sm:$0xff]
    %v75 = vld [vmem:[%s0 + $0x8] sm:$0xff]
    %v76 = vld [vmem:[%s0 + $0x10] sm:$0xff]
    %v77 = vld [vmem:[%s0 + $0x18] sm:$0xff]
    %78 = vrot.lane.b32.xlu0 %v74, 16
    %v79 = vpop.permute.xlu0 %78
    %80 = vrot.lane.b32.xlu0 %v75, 16
    %v81 = vpop.permute.xlu0 %80
    %82 = vrot.lane.b32.xlu0 %v76, 16
    %v83 = vpop.permute.xlu0 %82
    %84 = vrot.lane.b32.xlu0 %v77, 16
    %v85 = vpop.permute.xlu0 %84
    %v86 = vlaneseq
    %v87 = vand.u32 %v86, 127
    %vm88 = vcmp.lt.s32.totalorder %v87, 16
    %v89 = vsel %vm88, %v83, %v85
    %v90 = vsel %vm88, %v81, %v83
    %v91 = vsel %vm88, %v79, %v81
    %v92 = vsel %vm88, %v85, %v79
    %v93 = vlaneseq
    %v94 = vshrl.u32 %v93, 7
    %v95 = vsub.s32 2, %v94
    %v96 = vrot.slane %v42, %v95
    %v97 = vlaneseq
    %v98 = vshrl.u32 %v97, 7
    %v99 = vsub.s32 2, %v98
    %v100 = vrot.slane %v43, %v99
    %v101 = vlaneseq
    %v102 = vshrl.u32 %v101, 7
    %v103 = vsub.s32 2, %v102
    %v104 = vrot.slane %v44, %v103
    %v105 = vlaneseq
    %v106 = vshrl.u32 %v105, 7
    %v107 = vsub.s32 2, %v106
    %v108 = vrot.slane %v45, %v107
    %v109 = vmul.f32 %v92, %v96
    %v110 = vmul.f32 %v91, %v100
    %v111 = vmul.f32 %v90, %v104
    %v112 = vmul.f32 %v89, %v108
    %113 = vrot.lane.b32.xlu0 %v74, 112
    %v114 = vpop.permute.xlu0 %113
    %115 = vrot.lane.b32.xlu0 %v75, 112
    %v116 = vpop.permute.xlu0 %115
    %117 = vrot.lane.b32.xlu0 %v76, 112
    %v118 = vpop.permute.xlu0 %117
    %119 = vrot.lane.b32.xlu0 %v77, 112
    %v120 = vpop.permute.xlu0 %119
    %vm121 = vcmp.lt.s32.totalorder %v87, 112
    %v122 = vsel %vm121, %v118, %v120
    %v123 = vsel %vm121, %v116, %v118
    %v124 = vsel %vm121, %v114, %v116
    %v125 = vsel %vm121, %v120, %v114
    %v126 = vlaneseq
    %v127 = vshrl.u32 %v126, 7
    %v128 = vsub.s32 4, %v127
    %v129 = vrot.slane %v42, %v128
    %v130 = vlaneseq
    %v131 = vshrl.u32 %v130, 7
    %v132 = vsub.s32 4, %v131
    %v133 = vrot.slane %v43, %v132
    %v134 = vlaneseq
    %v135 = vshrl.u32 %v134, 7
    %v136 = vsub.s32 4, %v135
    %v137 = vrot.slane %v44, %v136
    %v138 = vlaneseq
    %v139 = vshrl.u32 %v138, 7
    %v140 = vsub.s32 4, %v139
    %v141 = vrot.slane %v45, %v140
    %v142 = vmul.f32 %v124, %v129
    %v143 = vmul.f32 %v123, %v133
    %v144 = vmul.f32 %v122, %v137
    %v145 = vmul.f32 %v125, %v141
    %146 = vrot.lane.b32.xlu0 %v109, 1
    %v147 = vpop.permute.xlu0 %146
    %148 = vrot.lane.b32.xlu0 %v74, 1
    %v149 = vpop.permute.xlu0 %148
    %150 = vrot.lane.b32.xlu0 %v142, 1
    %v151 = vpop.permute.xlu0 %150
    %152 = vrot.lane.b32.xlu0 %v110, 1
    %v153 = vpop.permute.xlu0 %152
    %154 = vrot.lane.b32.xlu0 %v75, 1
    %v155 = vpop.permute.xlu0 %154
    %156 = vrot.lane.b32.xlu0 %v143, 1
    %v157 = vpop.permute.xlu0 %156
    %158 = vrot.lane.b32.xlu0 %v111, 1
    %v159 = vpop.permute.xlu0 %158
    %160 = vrot.lane.b32.xlu0 %v76, 1
    %v161 = vpop.permute.xlu0 %160
    %162 = vrot.lane.b32.xlu0 %v144, 1
    %v163 = vpop.permute.xlu0 %162
    %164 = vrot.lane.b32.xlu0 %v112, 1
    %v165 = vpop.permute.xlu0 %164
    %166 = vrot.lane.b32.xlu0 %v77, 1
    %v167 = vpop.permute.xlu0 %166
    %168 = vrot.lane.b32.xlu0 %v145, 1
    %v169 = vpop.permute.xlu0 %168
    %vm170 = vcmp.lt.s32.totalorder %v87, 1
    %v171 = vsel %vm170, %v159, %v165
    %v172 = vsel %vm170, %v161, %v167
    %v173 = vsel %vm170, %v163, %v169
    %v174 = vsel %vm170, %v153, %v159
    %v175 = vsel %vm170, %v155, %v161
    %v176 = vsel %vm170, %v157, %v163
    %v177 = vsel %vm170, %v147, %v153
    %v178 = vsel %vm170, %v149, %v155
    %v179 = vsel %vm170, %v151, %v157
    %v180 = vsel %vm170, %v165, %v147
    %v181 = vsel %vm170, %v167, %v149
    %v182 = vsel %vm170, %v169, %v151
    %v183 = vlaneseq
    %v184 = vshrl.u32 %v183, 7
    %v185 = vsub.s32 1, %v184
    %v186 = vrot.slane %v46, %v185
    %v187 = vlaneseq
    %v188 = vshrl.u32 %v187, 7
    %v189 = vsub.s32 1, %v188
    %v190 = vrot.slane %v47, %v189
    %v191 = vlaneseq
    %v192 = vshrl.u32 %v191, 7
    %v193 = vsub.s32 1, %v192
    %v194 = vrot.slane %v48, %v193
    %v195 = vlaneseq
    %v196 = vshrl.u32 %v195, 7
    %v197 = vsub.s32 1, %v196
    %v198 = vrot.slane %v49, %v197
    %v199 = vmul.f32 %v180, %v186
    %v200 = vmul.f32 %v177, %v190
    %v201 = vmul.f32 %v174, %v194
    %v202 = vmul.f32 %v171, %v198
    %v203 = vmul.f32 %v181, %v186
    %v204 = vmul.f32 %v178, %v190
    %v205 = vmul.f32 %v175, %v194
    %v206 = vmul.f32 %v172, %v198
    %v207 = vmul.f32 %v182, %v186
    %v208 = vmul.f32 %v179, %v190
    %v209 = vmul.f32 %v176, %v194
    %v210 = vmul.f32 %v173, %v198
    %v211 = vld [vmem:[%s3] sm:$0xff]
    %v212 = vld [vmem:[%s3 + $0x8] sm:$0xff]
    %s213 = scalar_lea.vmem %s3, 16
    %v214 = vld [vmem:[%s213] sm:$0xff]
    %v215 = vld [vmem:[%s213 + $0x8] sm:$0xff]
    %vm216 = vcmask 195584
    %v218 = vsel %vm216, %v214, 0
    %v221 = vsel %vm216, %v215, 0
    %223 = vmatprep.subr.mxu0 %v110
    %224 = vmatpush1.msra.mxu0 %v109
    %225 = vmatprep.subr.mxu0 %v75
    %226 = vmatpush1.msra.mxu0 %v74
    %227 = vmatprep.subr.mxu0 %v143
    %228 = vmatpush1.msra.mxu0 %v142
    %229 = vmatprep.subr.mxu0 0.0
    %230 = vmatpush1.msra.mxu0 0.0
    %231 = vmatprep.subr.mxu0 0.0
    %232 = vmatpush1.msra.mxu0 0.0
    %233 = vmatprep.subr.mxu0 0.0
    %234 = vmatpush1.msra.mxu0 0.0
    %235 = vmatprep.subr.mxu0 0.0
    %236 = vmatpush1.msra.mxu0 0.0
    %237 = vmatprep.subr.mxu0 0.0
    %238 = vmatpush1.msra.mxu0 0.0
    %239 = vmatprep.subr.mxu0 0.0
    %240 = vmatpush1.msra.mxu0 0.0
    %241 = vmatprep.subr.mxu0 0.0
    %242 = vmatpush1.msra.mxu0 0.0
    %243 = vmatprep.subr.mxu0 0.0
    %244 = vmatpush1.msra.mxu0 0.0
    %245 = vmatprep.subr.mxu0 0.0
    %246 = vmatpush1.msra.mxu0 0.0
    %247 = vmatprep.subr.mxu0 0.0
    %248 = vmatpush1.msra.mxu0 0.0
    %249 = vmatprep.subr.mxu0 0.0
    %250 = vmatpush1.msra.mxu0 0.0
    %251 = vmatprep.subr.mxu0 0.0
    %252 = vmatpush1.msra.mxu0 0.0
    %253 = vmatprep.subr.mxu0 0.0
    %254 = vmatpush1.msra.mxu0 0.0
    %255 = vmatprep.subr.mxu0 0.0
    %256 = vmatpush1.msra.mxu0 0.0
    %257 = vmatprep.subr.mxu0 0.0
    %258 = vmatpush1.msra.mxu0 0.0
    %259 = vmatprep.subr.mxu0 0.0
    %260 = vmatpush1.msra.mxu0 0.0
    %261 = vmatprep.subr.mxu0 0.0
    %262 = vmatpush1.msra.mxu0 0.0
    %263 = vmatprep.subr.mxu0 0.0
    %264 = vmatpush1.msra.mxu0 0.0
    %265 = vmatprep.subr.mxu0 0.0
    %266 = vmatpush1.msra.mxu0 0.0
    %267 = vmatprep.subr.mxu0 0.0
    %268 = vmatpush1.msra.mxu0 0.0
    %269 = vmatprep.subr.mxu0 0.0
    %270 = vmatpush1.msra.mxu0 0.0
    %271 = vmatprep.subr.mxu0 0.0
    %272 = vmatpush1.msra.mxu0 0.0
    %273 = vmatprep.subr.mxu0 0.0
    %274 = vmatpush1.msra.mxu0 0.0
    %275 = vmatprep.subr.mxu0 0.0
    %276 = vmatpush1.msra.mxu0 0.0
    %277 = vmatprep.subr.mxu0 0.0
    %278 = vmatpush1.msra.mxu0 0.0
    %279 = vmatprep.subr.mxu0 0.0
    %280 = vmatpush1.msra.mxu0 0.0
    %281 = vmatprep.subr.mxu0 0.0
    %282 = vmatpush1.msra.mxu0 0.0
    %283 = vmatprep.subr.mxu0 0.0
    %284 = vmatpush1.msra.mxu0 0.0
    %285 = vmatprep.subr.mxu0 0.0
    %286 = vmatpush1.msra.mxu0 0.0
    %287 = vmatprep.mubr.f32.mxu0 0.0
    %288 = vmatmul.mubr.f32.gmra.mrb[0].mxu0 %v218
    %v289 = vpop.f32.mrb[0].mxu0
    %v290 = vadd.f32 0.0, %v289
    %v291 = vpop.f32.mrb[0].mxu0
    %v292 = vadd.f32 0.0, %v291
    %293 = vmatprep.mubr.f32.mxu0 0.0
    %294 = vmatmul.mubr.f32.gmra.mrb[0].mxu0 %v221
    %v295 = vpop.f32.mrb[0].mxu0
    %v296 = vadd.f32 0.0, %v295
    %v297 = vpop.f32.mrb[0].mxu0
    %v298 = vadd.f32 0.0, %v297
    %299 = vdwg.mxu0
    %300 = vmatprep.subr.mxu0 %v112
    %301 = vmatpush1.msra.mxu0 %v111
    %302 = vmatprep.subr.mxu0 %v77
    %303 = vmatpush1.msra.mxu0 %v76
    %304 = vmatprep.subr.mxu0 %v145
    %305 = vmatpush1.msra.mxu0 %v144
    %306 = vmatprep.subr.mxu0 0.0
    %307 = vmatpush1.msra.mxu0 0.0
    %308 = vmatprep.subr.mxu0 0.0
    %309 = vmatpush1.msra.mxu0 0.0
    %310 = vmatprep.subr.mxu0 0.0
    %311 = vmatpush1.msra.mxu0 0.0
    %312 = vmatprep.subr.mxu0 0.0
    %313 = vmatpush1.msra.mxu0 0.0
    %314 = vmatprep.subr.mxu0 0.0
    %315 = vmatpush1.msra.mxu0 0.0
    %316 = vmatprep.subr.mxu0 0.0
    %317 = vmatpush1.msra.mxu0 0.0
    %318 = vmatprep.subr.mxu0 0.0
    %319 = vmatpush1.msra.mxu0 0.0
    %320 = vmatprep.subr.mxu0 0.0
    %321 = vmatpush1.msra.mxu0 0.0
    %322 = vmatprep.subr.mxu0 0.0
    %323 = vmatpush1.msra.mxu0 0.0
    %324 = vmatprep.subr.mxu0 0.0
    %325 = vmatpush1.msra.mxu0 0.0
    %326 = vmatprep.subr.mxu0 0.0
    %327 = vmatpush1.msra.mxu0 0.0
    %328 = vmatprep.subr.mxu0 0.0
    %329 = vmatpush1.msra.mxu0 0.0
    %330 = vmatprep.subr.mxu0 0.0
    %331 = vmatpush1.msra.mxu0 0.0
    %332 = vmatprep.subr.mxu0 0.0
    %333 = vmatpush1.msra.mxu0 0.0
    %334 = vmatprep.subr.mxu0 0.0
    %335 = vmatpush1.msra.mxu0 0.0
    %336 = vmatprep.subr.mxu0 0.0
    %337 = vmatpush1.msra.mxu0 0.0
    %338 = vmatprep.subr.mxu0 0.0
    %339 = vmatpush1.msra.mxu0 0.0
    %340 = vmatprep.subr.mxu0 0.0
    %341 = vmatpush1.msra.mxu0 0.0
    %342 = vmatprep.subr.mxu0 0.0
    %343 = vmatpush1.msra.mxu0 0.0
    %344 = vmatprep.subr.mxu0 0.0
    %345 = vmatpush1.msra.mxu0 0.0
    %346 = vmatprep.subr.mxu0 0.0
    %347 = vmatpush1.msra.mxu0 0.0
    %348 = vmatprep.subr.mxu0 0.0
    %349 = vmatpush1.msra.mxu0 0.0
    %350 = vmatprep.subr.mxu0 0.0
    %351 = vmatpush1.msra.mxu0 0.0
    %352 = vmatprep.subr.mxu0 0.0
    %353 = vmatpush1.msra.mxu0 0.0
    %354 = vmatprep.subr.mxu0 0.0
    %355 = vmatpush1.msra.mxu0 0.0
    %356 = vmatprep.subr.mxu0 0.0
    %357 = vmatpush1.msra.mxu0 0.0
    %358 = vmatprep.subr.mxu0 0.0
    %359 = vmatpush1.msra.mxu0 0.0
    %360 = vmatprep.subr.mxu0 0.0
    %361 = vmatpush1.msra.mxu0 0.0
    %362 = vmatprep.subr.mxu0 0.0
    %363 = vmatpush1.msra.mxu0 0.0
    %364 = vmatprep.mubr.f32.mxu0 0.0
    %365 = vmatmul.mubr.f32.gmra.mrb[0].mxu0 %v218
    %v366 = vpop.f32.mrb[0].mxu0
    %v367 = vadd.f32 0.0, %v366
    %v368 = vpop.f32.mrb[0].mxu0
    %v369 = vadd.f32 0.0, %v368
    %370 = vmatprep.mubr.f32.mxu0 0.0
    %371 = vmatmul.mubr.f32.gmra.mrb[0].mxu0 %v221
    %v372 = vpop.f32.mrb[0].mxu0
    %v373 = vadd.f32 0.0, %v372
    %v374 = vpop.f32.mrb[0].mxu0
    %v375 = vadd.f32 0.0, %v374
    %376 = vdwg.mxu0
    %v378 = vsel %vm216, %v211, 0
    %v381 = vsel %vm216, %v212, 0
    %383 = vmatprep.subr.mxu0 %v200
    %384 = vmatpush1.msra.mxu0 %v199
    %385 = vmatprep.subr.mxu0 %v204
    %386 = vmatpush1.msra.mxu0 %v203
    %387 = vmatprep.subr.mxu0 %v208
    %388 = vmatpush1.msra.mxu0 %v207
    %389 = vmatprep.subr.mxu0 0.0
    %390 = vmatpush1.msra.mxu0 0.0
    %391 = vmatprep.subr.mxu0 0.0
    %392 = vmatpush1.msra.mxu0 0.0
    %393 = vmatprep.subr.mxu0 0.0
    %394 = vmatpush1.msra.mxu0 0.0
    %395 = vmatprep.subr.mxu0 0.0
    %396 = vmatpush1.msra.mxu0 0.0
    %397 = vmatprep.subr.mxu0 0.0
    %398 = vmatpush1.msra.mxu0 0.0
    %399 = vmatprep.subr.mxu0 0.0
    %400 = vmatpush1.msra.mxu0 0.0
    %401 = vmatprep.subr.mxu0 0.0
    %402 = vmatpush1.msra.mxu0 0.0
    %403 = vmatprep.subr.mxu0 0.0
    %404 = vmatpush1.msra.mxu0 0.0
    %405 = vmatprep.subr.mxu0 0.0
    %406 = vmatpush1.msra.mxu0 0.0
    %407 = vmatprep.subr.mxu0 0.0
    %408 = vmatpush1.msra.mxu0 0.0
    %409 = vmatprep.subr.mxu0 0.0
    %410 = vmatpush1.msra.mxu0 0.0
    %411 = vmatprep.subr.mxu0 0.0
    %412 = vmatpush1.msra.mxu0 0.0
    %413 = vmatprep.subr.mxu0 0.0
    %414 = vmatpush1.msra.mxu0 0.0
    %415 = vmatprep.subr.mxu0 0.0
    %416 = vmatpush1.msra.mxu0 0.0
    %417 = vmatprep.subr.mxu0 0.0
    %418 = vmatpush1.msra.mxu0 0.0
    %419 = vmatprep.subr.mxu0 0.0
    %420 = vmatpush1.msra.mxu0 0.0
    %421 = vmatprep.subr.mxu0 0.0
    %422 = vmatpush1.msra.mxu0 0.0
    %423 = vmatprep.subr.mxu0 0.0
    %424 = vmatpush1.msra.mxu0 0.0
    %425 = vmatprep.subr.mxu0 0.0
    %426 = vmatpush1.msra.mxu0 0.0
    %427 = vmatprep.subr.mxu0 0.0
    %428 = vmatpush1.msra.mxu0 0.0
    %429 = vmatprep.subr.mxu0 0.0
    %430 = vmatpush1.msra.mxu0 0.0
    %431 = vmatprep.subr.mxu0 0.0
    %432 = vmatpush1.msra.mxu0 0.0
    %433 = vmatprep.subr.mxu0 0.0
    %434 = vmatpush1.msra.mxu0 0.0
    %435 = vmatprep.subr.mxu0 0.0
    %436 = vmatpush1.msra.mxu0 0.0
    %437 = vmatprep.subr.mxu0 0.0
    %438 = vmatpush1.msra.mxu0 0.0
    %439 = vmatprep.subr.mxu0 0.0
    %440 = vmatpush1.msra.mxu0 0.0
    %441 = vmatprep.subr.mxu0 0.0
    %442 = vmatpush1.msra.mxu0 0.0
    %443 = vmatprep.subr.mxu0 0.0
    %444 = vmatpush1.msra.mxu0 0.0
    %445 = vmatprep.subr.mxu0 0.0
    %446 = vmatpush1.msra.mxu0 0.0
    %447 = vmatprep.mubr.f32.mxu0 0.0
    %448 = vmatmul.mubr.f32.gmra.mrb[0].mxu0 %v378
    %v449 = vpop.f32.mrb[0].mxu0
    %v450 = vadd.f32 %v290, %v449
    %v451 = vpop.f32.mrb[0].mxu0
    %v452 = vadd.f32 %v292, %v451
    %453 = vmatprep.mubr.f32.mxu0 0.0
    %454 = vmatmul.mubr.f32.gmra.mrb[0].mxu0 %v381
    %v455 = vpop.f32.mrb[0].mxu0
    %v456 = vadd.f32 %v296, %v455
    %v457 = vpop.f32.mrb[0].mxu0
    %v458 = vadd.f32 %v298, %v457
    %459 = vdwg.mxu0
    %460 = vmatprep.subr.mxu0 %v202
    %461 = vmatpush1.msra.mxu0 %v201
    %462 = vmatprep.subr.mxu0 %v206
    %463 = vmatpush1.msra.mxu0 %v205
    %464 = vmatprep.subr.mxu0 %v210
    %465 = vmatpush1.msra.mxu0 %v209
    %466 = vmatprep.subr.mxu0 0.0
    %467 = vmatpush1.msra.mxu0 0.0
    %468 = vmatprep.subr.mxu0 0.0
    %469 = vmatpush1.msra.mxu0 0.0
    %470 = vmatprep.subr.mxu0 0.0
    %471 = vmatpush1.msra.mxu0 0.0
    %472 = vmatprep.subr.mxu0 0.0
    %473 = vmatpush1.msra.mxu0 0.0
    %474 = vmatprep.subr.mxu0 0.0
    %475 = vmatpush1.msra.mxu0 0.0
    %476 = vmatprep.subr.mxu0 0.0
    %477 = vmatpush1.msra.mxu0 0.0
    %478 = vmatprep.subr.mxu0 0.0
    %479 = vmatpush1.msra.mxu0 0.0
    %480 = vmatprep.subr.mxu0 0.0
    %481 = vmatpush1.msra.mxu0 0.0
    %482 = vmatprep.subr.mxu0 0.0
    %483 = vmatpush1.msra.mxu0 0.0
    %484 = vmatprep.subr.mxu0 0.0
    %485 = vmatpush1.msra.mxu0 0.0
    %486 = vmatprep.subr.mxu0 0.0
    %487 = vmatpush1.msra.mxu0 0.0
    %488 = vmatprep.subr.mxu0 0.0
    %489 = vmatpush1.msra.mxu0 0.0
    %490 = vmatprep.subr.mxu0 0.0
    %491 = vmatpush1.msra.mxu0 0.0
    %492 = vmatprep.subr.mxu0 0.0
    %493 = vmatpush1.msra.mxu0 0.0
    %494 = vmatprep.subr.mxu0 0.0
    %495 = vmatpush1.msra.mxu0 0.0
    %496 = vmatprep.subr.mxu0 0.0
    %497 = vmatpush1.msra.mxu0 0.0
    %498 = vmatprep.subr.mxu0 0.0
    %499 = vmatpush1.msra.mxu0 0.0
    %500 = vmatprep.subr.mxu0 0.0
    %501 = vmatpush1.msra.mxu0 0.0
    %502 = vmatprep.subr.mxu0 0.0
    %503 = vmatpush1.msra.mxu0 0.0
    %504 = vmatprep.subr.mxu0 0.0
    %505 = vmatpush1.msra.mxu0 0.0
    %506 = vmatprep.subr.mxu0 0.0
    %507 = vmatpush1.msra.mxu0 0.0
    %508 = vmatprep.subr.mxu0 0.0
    %509 = vmatpush1.msra.mxu0 0.0
    %510 = vmatprep.subr.mxu0 0.0
    %511 = vmatpush1.msra.mxu0 0.0
    %512 = vmatprep.subr.mxu0 0.0
    %513 = vmatpush1.msra.mxu0 0.0
    %514 = vmatprep.subr.mxu0 0.0
    %515 = vmatpush1.msra.mxu0 0.0
    %516 = vmatprep.subr.mxu0 0.0
    %517 = vmatpush1.msra.mxu0 0.0
    %518 = vmatprep.subr.mxu0 0.0
    %519 = vmatpush1.msra.mxu0 0.0
    %520 = vmatprep.subr.mxu0 0.0
    %521 = vmatpush1.msra.mxu0 0.0
    %522 = vmatprep.subr.mxu0 0.0
    %523 = vmatpush1.msra.mxu0 0.0
    %524 = vmatprep.mubr.f32.mxu0 0.0
    %525 = vmatmul.mubr.f32.gmra.mrb[0].mxu0 %v378
    %v526 = vpop.f32.mrb[0].mxu0
    %v527 = vadd.f32 %v367, %v526
    %v528 = vpop.f32.mrb[0].mxu0
    %v529 = vadd.f32 %v369, %v528
    %530 = vmatprep.mubr.f32.mxu0 0.0
    %531 = vmatmul.mubr.f32.gmra.mrb[0].mxu0 %v381
    %v532 = vpop.f32.mrb[0].mxu0
    %v533 = vadd.f32 %v373, %v532
    %v534 = vpop.f32.mrb[0].mxu0
    %v535 = vadd.f32 %v375, %v534
    %536 = vdwg.mxu0
    %537 = vrot.lane.b32.xlu0 %v109, 127
    %v538 = vpop.permute.xlu0 %537
    %539 = vrot.lane.b32.xlu0 %v74, 127
    %v540 = vpop.permute.xlu0 %539
    %541 = vrot.lane.b32.xlu0 %v142, 127
    %v542 = vpop.permute.xlu0 %541
    %543 = vrot.lane.b32.xlu0 %v110, 127
    %v544 = vpop.permute.xlu0 %543
    %545 = vrot.lane.b32.xlu0 %v75, 127
    %v546 = vpop.permute.xlu0 %545
    %547 = vrot.lane.b32.xlu0 %v143, 127
    %v548 = vpop.permute.xlu0 %547
    %549 = vrot.lane.b32.xlu0 %v111, 127
    %v550 = vpop.permute.xlu0 %549
    %551 = vrot.lane.b32.xlu0 %v76, 127
    %v552 = vpop.permute.xlu0 %551
    %553 = vrot.lane.b32.xlu0 %v144, 127
    %v554 = vpop.permute.xlu0 %553
    %555 = vrot.lane.b32.xlu0 %v112, 127
    %v556 = vpop.permute.xlu0 %555
    %557 = vrot.lane.b32.xlu0 %v77, 127
    %v558 = vpop.permute.xlu0 %557
    %559 = vrot.lane.b32.xlu0 %v145, 127
    %v560 = vpop.permute.xlu0 %559
    %vm561 = vcmp.lt.s32.totalorder %v87, 127
    %v562 = vsel %vm561, %v550, %v556
    %v563 = vsel %vm561, %v552, %v558
    %v564 = vsel %vm561, %v554, %v560
    %v565 = vsel %vm561, %v544, %v550
    %v566 = vsel %vm561, %v546, %v552
    %v567 = vsel %vm561, %v548, %v554
    %v568 = vsel %vm561, %v538, %v544
    %v569 = vsel %vm561, %v540, %v546
    %v570 = vsel %vm561, %v542, %v548
    %v571 = vsel %vm561, %v556, %v538
    %v572 = vsel %vm561, %v558, %v540
    %v573 = vsel %vm561, %v560, %v542
    %v574 = vlaneseq
    %v575 = vshrl.u32 %v574, 7
    %v576 = vsub.s32 3, %v575
    %v577 = vrot.slane %v46, %v576
    %v578 = vlaneseq
    %v579 = vshrl.u32 %v578, 7
    %v580 = vsub.s32 3, %v579
    %v581 = vrot.slane %v47, %v580
    %v582 = vlaneseq
    %v583 = vshrl.u32 %v582, 7
    %v584 = vsub.s32 3, %v583
    %v585 = vrot.slane %v48, %v584
    %v586 = vlaneseq
    %v587 = vshrl.u32 %v586, 7
    %v588 = vsub.s32 3, %v587
    %v589 = vrot.slane %v49, %v588
    %v590 = vmul.f32 %v568, %v577
    %v591 = vmul.f32 %v565, %v581
    %v592 = vmul.f32 %v562, %v585
    %v593 = vmul.f32 %v571, %v589
    %v594 = vmul.f32 %v569, %v577
    %v595 = vmul.f32 %v566, %v581
    %v596 = vmul.f32 %v563, %v585
    %v597 = vmul.f32 %v572, %v589
    %v598 = vmul.f32 %v570, %v577
    %v599 = vmul.f32 %v567, %v581
    %v600 = vmul.f32 %v564, %v585
    %v601 = vmul.f32 %v573, %v589
    %s602 = scalar_lea.vmem %s3, 32
    %v603 = vld [vmem:[%s602] sm:$0xff]
    %v604 = vld [vmem:[%s602 + $0x8] sm:$0xff]
    %v606 = vsel %vm216, %v603, 0
    %v609 = vsel %vm216, %v604, 0
    %611 = vmatprep.subr.mxu0 %v591
    %612 = vmatpush1.msra.mxu0 %v590
    %613 = vmatprep.subr.mxu0 %v595
    %614 = vmatpush1.msra.mxu0 %v594
    %615 = vmatprep.subr.mxu0 %v599
    %616 = vmatpush1.msra.mxu0 %v598
    %617 = vmatprep.subr.mxu0 0.0
    %618 = vmatpush1.msra.mxu0 0.0
    %619 = vmatprep.subr.mxu0 0.0
    %620 = vmatpush1.msra.mxu0 0.0
    %621 = vmatprep.subr.mxu0 0.0
    %622 = vmatpush1.msra.mxu0 0.0
    %623 = vmatprep.subr.mxu0 0.0
    %624 = vmatpush1.msra.mxu0 0.0
    %625 = vmatprep.subr.mxu0 0.0
    %626 = vmatpush1.msra.mxu0 0.0
    %627 = vmatprep.subr.mxu0 0.0
    %628 = vmatpush1.msra.mxu0 0.0
    %629 = vmatprep.subr.mxu0 0.0
    %630 = vmatpush1.msra.mxu0 0.0
    %631 = vmatprep.subr.mxu0 0.0
    %632 = vmatpush1.msra.mxu0 0.0
    %633 = vmatprep.subr.mxu0 0.0
    %634 = vmatpush1.msra.mxu0 0.0
    %635 = vmatprep.subr.mxu0 0.0
    %636 = vmatpush1.msra.mxu0 0.0
    %637 = vmatprep.subr.mxu0 0.0
    %638 = vmatpush1.msra.mxu0 0.0
    %639 = vmatprep.subr.mxu0 0.0
    %640 = vmatpush1.msra.mxu0 0.0
    %641 = vmatprep.subr.mxu0 0.0
    %642 = vmatpush1.msra.mxu0 0.0
    %643 = vmatprep.subr.mxu0 0.0
    %644 = vmatpush1.msra.mxu0 0.0
    %645 = vmatprep.subr.mxu0 0.0
    %646 = vmatpush1.msra.mxu0 0.0
    %647 = vmatprep.subr.mxu0 0.0
    %648 = vmatpush1.msra.mxu0 0.0
    %649 = vmatprep.subr.mxu0 0.0
    %650 = vmatpush1.msra.mxu0 0.0
    %651 = vmatprep.subr.mxu0 0.0
    %652 = vmatpush1.msra.mxu0 0.0
    %653 = vmatprep.subr.mxu0 0.0
    %654 = vmatpush1.msra.mxu0 0.0
    %655 = vmatprep.subr.mxu0 0.0
    %656 = vmatpush1.msra.mxu0 0.0
    %657 = vmatprep.subr.mxu0 0.0
    %658 = vmatpush1.msra.mxu0 0.0
    %659 = vmatprep.subr.mxu0 0.0
    %660 = vmatpush1.msra.mxu0 0.0
    %661 = vmatprep.subr.mxu0 0.0
    %662 = vmatpush1.msra.mxu0 0.0
    %663 = vmatprep.subr.mxu0 0.0
    %664 = vmatpush1.msra.mxu0 0.0
    %665 = vmatprep.subr.mxu0 0.0
    %666 = vmatpush1.msra.mxu0 0.0
    %667 = vmatprep.subr.mxu0 0.0
    %668 = vmatpush1.msra.mxu0 0.0
    %669 = vmatprep.subr.mxu0 0.0
    %670 = vmatpush1.msra.mxu0 0.0
    %671 = vmatprep.subr.mxu0 0.0
    %672 = vmatpush1.msra.mxu0 0.0
    %673 = vmatprep.subr.mxu0 0.0
    %674 = vmatpush1.msra.mxu0 0.0
    %675 = vmatprep.mubr.f32.mxu0 0.0
    %676 = vmatmul.mubr.f32.gmra.mrb[0].mxu0 %v606
    %v677 = vpop.f32.mrb[0].mxu0
    %v678 = vadd.f32 0.0, %v677
    %v679 = vpop.f32.mrb[0].mxu0
    %v680 = vadd.f32 0.0, %v679
    %681 = vmatprep.mubr.f32.mxu0 0.0
    %682 = vmatmul.mubr.f32.gmra.mrb[0].mxu0 %v609
    %v683 = vpop.f32.mrb[0].mxu0
    %v684 = vadd.f32 0.0, %v683
    %v685 = vpop.f32.mrb[0].mxu0
    %v686 = vadd.f32 0.0, %v685
    %687 = vdwg.mxu0
    %688 = vmatprep.subr.mxu0 %v593
    %689 = vmatpush1.msra.mxu0 %v592
    %690 = vmatprep.subr.mxu0 %v597
    %691 = vmatpush1.msra.mxu0 %v596
    %692 = vmatprep.subr.mxu0 %v601
    %693 = vmatpush1.msra.mxu0 %v600
    %694 = vmatprep.subr.mxu0 0.0
    %695 = vmatpush1.msra.mxu0 0.0
    %696 = vmatprep.subr.mxu0 0.0
    %697 = vmatpush1.msra.mxu0 0.0
    %698 = vmatprep.subr.mxu0 0.0
    %699 = vmatpush1.msra.mxu0 0.0
    %700 = vmatprep.subr.mxu0 0.0
    %701 = vmatpush1.msra.mxu0 0.0
    %702 = vmatprep.subr.mxu0 0.0
    %703 = vmatpush1.msra.mxu0 0.0
    %704 = vmatprep.subr.mxu0 0.0
    %705 = vmatpush1.msra.mxu0 0.0
    %706 = vmatprep.subr.mxu0 0.0
    %707 = vmatpush1.msra.mxu0 0.0
    %708 = vmatprep.subr.mxu0 0.0
    %709 = vmatpush1.msra.mxu0 0.0
    %710 = vmatprep.subr.mxu0 0.0
    %711 = vmatpush1.msra.mxu0 0.0
    %712 = vmatprep.subr.mxu0 0.0
    %713 = vmatpush1.msra.mxu0 0.0
    %714 = vmatprep.subr.mxu0 0.0
    %715 = vmatpush1.msra.mxu0 0.0
    %716 = vmatprep.subr.mxu0 0.0
    %717 = vmatpush1.msra.mxu0 0.0
    %718 = vmatprep.subr.mxu0 0.0
    %719 = vmatpush1.msra.mxu0 0.0
    %720 = vmatprep.subr.mxu0 0.0
    %721 = vmatpush1.msra.mxu0 0.0
    %722 = vmatprep.subr.mxu0 0.0
    %723 = vmatpush1.msra.mxu0 0.0
    %724 = vmatprep.subr.mxu0 0.0
    %725 = vmatpush1.msra.mxu0 0.0
    %726 = vmatprep.subr.mxu0 0.0
    %727 = vmatpush1.msra.mxu0 0.0
    %728 = vmatprep.subr.mxu0 0.0
    %729 = vmatpush1.msra.mxu0 0.0
    %730 = vmatprep.subr.mxu0 0.0
    %731 = vmatpush1.msra.mxu0 0.0
    %732 = vmatprep.subr.mxu0 0.0
    %733 = vmatpush1.msra.mxu0 0.0
    %734 = vmatprep.subr.mxu0 0.0
    %735 = vmatpush1.msra.mxu0 0.0
    %736 = vmatprep.subr.mxu0 0.0
    %737 = vmatpush1.msra.mxu0 0.0
    %738 = vmatprep.subr.mxu0 0.0
    %739 = vmatpush1.msra.mxu0 0.0
    %740 = vmatprep.subr.mxu0 0.0
    %741 = vmatpush1.msra.mxu0 0.0
    %742 = vmatprep.subr.mxu0 0.0
    %743 = vmatpush1.msra.mxu0 0.0
    %744 = vmatprep.subr.mxu0 0.0
    %745 = vmatpush1.msra.mxu0 0.0
    %746 = vmatprep.subr.mxu0 0.0
    %747 = vmatpush1.msra.mxu0 0.0
    %748 = vmatprep.subr.mxu0 0.0
    %749 = vmatpush1.msra.mxu0 0.0
    %750 = vmatprep.subr.mxu0 0.0
    %751 = vmatpush1.msra.mxu0 0.0
    %752 = vmatprep.mubr.f32.mxu0 0.0
    %753 = vmatmul.mubr.f32.gmra.mrb[0].mxu0 %v606
    %v754 = vpop.f32.mrb[0].mxu0
    %v755 = vadd.f32 0.0, %v754
    %v756 = vpop.f32.mrb[0].mxu0
    %v757 = vadd.f32 0.0, %v756
    %758 = vmatprep.mubr.f32.mxu0 0.0
    %759 = vmatmul.mubr.f32.gmra.mrb[0].mxu0 %v609
    %v760 = vpop.f32.mrb[0].mxu0
    %v761 = vadd.f32 0.0, %v760
    %v762 = vpop.f32.mrb[0].mxu0
    %v763 = vadd.f32 0.0, %v762
    %764 = vdwg.mxu0
    %v765 = vadd.f32 %v450, %v678
    %v766 = vadd.f32 %v452, %v680
    %v767 = vadd.f32 %v527, %v755
    %v768 = vadd.f32 %v529, %v757
    %v769 = vadd.f32 %v456, %v684
    %v770 = vadd.f32 %v458, %v686
    %v771 = vadd.f32 %v533, %v761
    %v772 = vadd.f32 %v535, %v763
    %774 = vset.pattern.permute.xlu0 0
    %775 = vperm.xlu0 %774, %v50
    %v776 = vpop.permute.xlu0 %775
    %779 = vset.pattern.permute.xlu0 0
    %780 = vperm.xlu0 %779, %v51
    %v781 = vpop.permute.xlu0 %780
    %v783 = vadd.f32 %v765, %v776
    %v784 = vadd.f32 %v766, %v776
    %v785 = vadd.f32 %v767, %v776
    %v786 = vadd.f32 %v768, %v776
    %v787 = vadd.f32 %v769, %v781
    %v788 = vadd.f32 %v770, %v781
    %v789 = vadd.f32 %v771, %v781
    %v790 = vadd.f32 %v772, %v781
    %v791 = vadd.f32 %v783, %v787
    %v792 = vrot.slane %v791, 4
    %v793 = vadd.f32 %v791, %v792
    %v794 = vrot.slane %v793, 2
    %v795 = vadd.f32 %v793, %v794
    %v796 = vrot.slane %v795, 1
    %v797 = vadd.f32 %v795, %v796
    %v798 = vadd.f32 %v784, %v788
    %v799 = vrot.slane %v798, 4
    %v800 = vadd.f32 %v798, %v799
    %v801 = vrot.slane %v800, 2
    %v802 = vadd.f32 %v800, %v801
    %v803 = vrot.slane %v802, 1
    %v804 = vadd.f32 %v802, %v803
    %v805 = vadd.f32 %v785, %v789
    %v806 = vrot.slane %v805, 4
    %v807 = vadd.f32 %v805, %v806
    %v808 = vrot.slane %v807, 2
    %v809 = vadd.f32 %v807, %v808
    %v810 = vrot.slane %v809, 1
    %v811 = vadd.f32 %v809, %v810
    %v812 = vadd.f32 %v786, %v790
    %v813 = vrot.slane %v812, 4
    %v814 = vadd.f32 %v812, %v813
    %v815 = vrot.slane %v814, 2
    %v816 = vadd.f32 %v814, %v815
    %v817 = vrot.slane %v816, 1
    %v818 = vadd.f32 %v816, %v817
    %v819 = vrcp.pop 16.0
    %v820 = vmul.f32 %v797, %v819
    %v821 = vmul.f32 %v804, %v819
    %v822 = vmul.f32 %v811, %v819
    %v823 = vmul.f32 %v818, %v819
    %v824 = vsub.f32 %v783, %v820
    %v825 = vsub.f32 %v784, %v821
    %v826 = vsub.f32 %v785, %v822
    %v827 = vsub.f32 %v786, %v823
    %v828 = vsub.f32 %v787, %v820
    %v829 = vsub.f32 %v788, %v821
    %v830 = vsub.f32 %v789, %v822
    %v831 = vsub.f32 %v790, %v823
    %v832 = vmul.f32 %v824, %v824
    %v833 = vmul.f32 %v825, %v825
    %v834 = vmul.f32 %v826, %v826
    %v835 = vmul.f32 %v827, %v827
    %v836 = vmul.f32 %v828, %v828
    %v837 = vmul.f32 %v829, %v829
    %v838 = vmul.f32 %v830, %v830
    %v839 = vmul.f32 %v831, %v831
    %v840 = vadd.f32 %v832, %v836
    %v841 = vrot.slane %v840, 4
    %v842 = vadd.f32 %v840, %v841
    %v843 = vrot.slane %v842, 2
    %v844 = vadd.f32 %v842, %v843
    %v845 = vrot.slane %v844, 1
    %v846 = vadd.f32 %v844, %v845
    %v847 = vadd.f32 %v833, %v837
    %v848 = vrot.slane %v847, 4
    %v849 = vadd.f32 %v847, %v848
    %v850 = vrot.slane %v849, 2
    %v851 = vadd.f32 %v849, %v850
    %v852 = vrot.slane %v851, 1
    %v853 = vadd.f32 %v851, %v852
    %v854 = vadd.f32 %v834, %v838
    %v855 = vrot.slane %v854, 4
    %v856 = vadd.f32 %v854, %v855
    %v857 = vrot.slane %v856, 2
    %v858 = vadd.f32 %v856, %v857
    %v859 = vrot.slane %v858, 1
    %v860 = vadd.f32 %v858, %v859
    %v861 = vadd.f32 %v835, %v839
    %v862 = vrot.slane %v861, 4
    %v863 = vadd.f32 %v861, %v862
    %v864 = vrot.slane %v863, 2
    %v865 = vadd.f32 %v863, %v864
    %v866 = vrot.slane %v865, 1
    %v867 = vadd.f32 %v865, %v866
    %v868 = vmul.f32 %v846, %v819
    %v869 = vmul.f32 %v853, %v819
    %v870 = vmul.f32 %v860, %v819
    %v871 = vmul.f32 %v867, %v819
    %v872 = vadd.f32 %v868, 1e-06
    %v873 = vadd.f32 %v869, 1e-06
    %v874 = vadd.f32 %v870, 1e-06
    %v875 = vadd.f32 %v871, 1e-06
    %v876 = vrsqrt.pop %v872
    %v877 = vrsqrt.pop %v873
    %v878 = vrsqrt.pop %v874
    %v879 = vrsqrt.pop %v875
    %v880 = vmul.f32 %v824, %v876
    %v881 = vmul.f32 %v825, %v877
    %v882 = vmul.f32 %v826, %v878
    %v883 = vmul.f32 %v827, %v879
    %v884 = vmul.f32 %v828, %v876
    %v885 = vmul.f32 %v829, %v877
    %v886 = vmul.f32 %v830, %v878
    %v887 = vmul.f32 %v831, %v879
    %888 = vset.pattern.permute.xlu0 1
    %889 = vperm.xlu0 %888, %v50
    %v890 = vpop.permute.xlu0 %889
    %892 = vset.pattern.permute.xlu0 1
    %893 = vperm.xlu0 %892, %v51
    %v894 = vpop.permute.xlu0 %893
    %v896 = vmul.f32 %v880, %v890
    %v897 = vmul.f32 %v881, %v890
    %v898 = vmul.f32 %v882, %v890
    %v899 = vmul.f32 %v883, %v890
    %v900 = vmul.f32 %v884, %v894
    %v901 = vmul.f32 %v885, %v894
    %v902 = vmul.f32 %v886, %v894
    %v903 = vmul.f32 %v887, %v894
    %904 = vset.pattern.permute.xlu0 2
    %905 = vperm.xlu0 %904, %v50
    %v906 = vpop.permute.xlu0 %905
    %908 = vset.pattern.permute.xlu0 2
    %909 = vperm.xlu0 %908, %v51
    %v910 = vpop.permute.xlu0 %909
    %v912 = vadd.f32 %v896, %v906
    %v913 = vadd.f32 %v897, %v906
    %v914 = vadd.f32 %v898, %v906
    %v915 = vadd.f32 %v899, %v906
    %v916 = vadd.f32 %v900, %v910
    %v917 = vadd.f32 %v901, %v910
    %v918 = vadd.f32 %v902, %v910
    %v919 = vadd.f32 %v903, %v910
    %920 = vset.pattern.permute.xlu0 3
    %921 = vperm.xlu0 %920, %v50
    %v922 = vpop.permute.xlu0 %921
    %924 = vset.pattern.permute.xlu0 3
    %925 = vperm.xlu0 %924, %v51
    %v926 = vpop.permute.xlu0 %925
    %929 = vset.pattern.permute.xlu0 3
    %930 = vperm.xlu0 %929, %v52
    %v931 = vpop.permute.xlu0 %930
    %934 = vset.pattern.permute.xlu0 3
    %935 = vperm.xlu0 %934, %v53
    %v936 = vpop.permute.xlu0 %935
    %vm938 = vcmask 130048
    %v940 = vsel %vm938, %v54, 0
    %v943 = vsel %vm938, %v55, 0
    %v946 = vsel %vm938, %v56, 0
    %v949 = vsel %vm938, %v57, 0
    %951 = vmatprep.subr.mxu0 %v913
    %952 = vmatpush1.msra.mxu0 %v912
    %953 = vmatprep.subr.mxu0 %v917
    %954 = vmatpush1.msra.mxu0 %v916
    %955 = vmatprep.subr.mxu0 0.0
    %956 = vmatpush1.msra.mxu0 0.0
    %957 = vmatprep.subr.mxu0 0.0
    %958 = vmatpush1.msra.mxu0 0.0
    %959 = vmatprep.subr.mxu0 0.0
    %960 = vmatpush1.msra.mxu0 0.0
    %961 = vmatprep.subr.mxu0 0.0
    %962 = vmatpush1.msra.mxu0 0.0
    %963 = vmatprep.subr.mxu0 0.0
    %964 = vmatpush1.msra.mxu0 0.0
    %965 = vmatprep.subr.mxu0 0.0
    %966 = vmatpush1.msra.mxu0 0.0
    %967 = vmatprep.subr.mxu0 0.0
    %968 = vmatpush1.msra.mxu0 0.0
    %969 = vmatprep.subr.mxu0 0.0
    %970 = vmatpush1.msra.mxu0 0.0
    %971 = vmatprep.subr.mxu0 0.0
    %972 = vmatpush1.msra.mxu0 0.0
    %973 = vmatprep.subr.mxu0 0.0
    %974 = vmatpush1.msra.mxu0 0.0
    %975 = vmatprep.subr.mxu0 0.0
    %976 = vmatpush1.msra.mxu0 0.0
    %977 = vmatprep.subr.mxu0 0.0
    %978 = vmatpush1.msra.mxu0 0.0
    %979 = vmatprep.subr.mxu0 0.0
    %980 = vmatpush1.msra.mxu0 0.0
    %981 = vmatprep.subr.mxu0 0.0
    %982 = vmatpush1.msra.mxu0 0.0
    %983 = vmatprep.subr.mxu0 0.0
    %984 = vmatpush1.msra.mxu0 0.0
    %985 = vmatprep.subr.mxu0 0.0
    %986 = vmatpush1.msra.mxu0 0.0
    %987 = vmatprep.subr.mxu0 0.0
    %988 = vmatpush1.msra.mxu0 0.0
    %989 = vmatprep.subr.mxu0 0.0
    %990 = vmatpush1.msra.mxu0 0.0
    %991 = vmatprep.subr.mxu0 0.0
    %992 = vmatpush1.msra.mxu0 0.0
    %993 = vmatprep.subr.mxu0 0.0
    %994 = vmatpush1.msra.mxu0 0.0
    %995 = vmatprep.subr.mxu0 0.0
    %996 = vmatpush1.msra.mxu0 0.0
    %997 = vmatprep.subr.mxu0 0.0
    %998 = vmatpush1.msra.mxu0 0.0
    %999 = vmatprep.subr.mxu0 0.0
    %1000 = vmatpush1.msra.mxu0 0.0
    %1001 = vmatprep.subr.mxu0 0.0
    %1002 = vmatpush1.msra.mxu0 0.0
    %1003 = vmatprep.subr.mxu0 0.0
    %1004 = vmatpush1.msra.mxu0 0.0
    %1005 = vmatprep.subr.mxu0 0.0
    %1006 = vmatpush1.msra.mxu0 0.0
    %1007 = vmatprep.subr.mxu0 0.0
    %1008 = vmatpush1.msra.mxu0 0.0
    %1009 = vmatprep.subr.mxu0 0.0
    %1010 = vmatpush1.msra.mxu0 0.0
    %1011 = vmatprep.subr.mxu0 0.0
    %1012 = vmatpush1.msra.mxu0 0.0
    %1013 = vmatprep.subr.mxu0 0.0
    %1014 = vmatpush1.msra.mxu0 0.0
    %1015 = vmatprep.mubr.f32.mxu0 0.0
    %1016 = vmatmul.mubr.f32.gmra.mrb[0].mxu0 %v940
    %v1017 = vpop.f32.mrb[0].mxu0
    %v1018 = vadd.f32 %v922, %v1017
    %v1019 = vpop.f32.mrb[0].mxu0
    %v1020 = vadd.f32 %v922, %v1019
    %1021 = vmatprep.mubr.f32.mxu0 0.0
    %1022 = vmatmul.mubr.f32.gmra.mrb[0].mxu0 %v943
    %v1023 = vpop.f32.mrb[0].mxu0
    %v1024 = vadd.f32 %v926, %v1023
    %v1025 = vpop.f32.mrb[0].mxu0
    %v1026 = vadd.f32 %v926, %v1025
    %1027 = vmatprep.mubr.f32.mxu0 0.0
    %1028 = vmatmul.mubr.f32.gmra.mrb[0].mxu0 %v946
    %v1029 = vpop.f32.mrb[0].mxu0
    %v1030 = vadd.f32 %v931, %v1029
    %v1031 = vpop.f32.mrb[0].mxu0
    %v1032 = vadd.f32 %v931, %v1031
    %1033 = vmatprep.mubr.f32.mxu0 0.0
    %1034 = vmatmul.mubr.f32.gmra.mrb[0].mxu0 %v949
    %v1035 = vpop.f32.mrb[0].mxu0
    %v1036 = vadd.f32 %v936, %v1035
    %v1037 = vpop.f32.mrb[0].mxu0
    %v1038 = vadd.f32 %v936, %v1037
    %1039 = vdwg.mxu0
    %1040 = vmatprep.subr.mxu0 %v915
    %1041 = vmatpush1.msra.mxu0 %v914
    %1042 = vmatprep.subr.mxu0 %v919
    %1043 = vmatpush1.msra.mxu0 %v918
    %1044 = vmatprep.subr.mxu0 0.0
    %1045 = vmatpush1.msra.mxu0 0.0
    %1046 = vmatprep.subr.mxu0 0.0
    %1047 = vmatpush1.msra.mxu0 0.0
    %1048 = vmatprep.subr.mxu0 0.0
    %1049 = vmatpush1.msra.mxu0 0.0
    %1050 = vmatprep.subr.mxu0 0.0
    %1051 = vmatpush1.msra.mxu0 0.0
    %1052 = vmatprep.subr.mxu0 0.0
    %1053 = vmatpush1.msra.mxu0 0.0
    %1054 = vmatprep.subr.mxu0 0.0
    %1055 = vmatpush1.msra.mxu0 0.0
    %1056 = vmatprep.subr.mxu0 0.0
    %1057 = vmatpush1.msra.mxu0 0.0
    %1058 = vmatprep.subr.mxu0 0.0
    %1059 = vmatpush1.msra.mxu0 0.0
    %1060 = vmatprep.subr.mxu0 0.0
    %1061 = vmatpush1.msra.mxu0 0.0
    %1062 = vmatprep.subr.mxu0 0.0
    %1063 = vmatpush1.msra.mxu0 0.0
    %1064 = vmatprep.subr.mxu0 0.0
    %1065 = vmatpush1.msra.mxu0 0.0
    %1066 = vmatprep.subr.mxu0 0.0
    %1067 = vmatpush1.msra.mxu0 0.0
    %1068 = vmatprep.subr.mxu0 0.0
    %1069 = vmatpush1.msra.mxu0 0.0
    %1070 = vmatprep.subr.mxu0 0.0
    %1071 = vmatpush1.msra.mxu0 0.0
    %1072 = vmatprep.subr.mxu0 0.0
    %1073 = vmatpush1.msra.mxu0 0.0
    %1074 = vmatprep.subr.mxu0 0.0
    %1075 = vmatpush1.msra.mxu0 0.0
    %1076 = vmatprep.subr.mxu0 0.0
    %1077 = vmatpush1.msra.mxu0 0.0
    %1078 = vmatprep.subr.mxu0 0.0
    %1079 = vmatpush1.msra.mxu0 0.0
    %1080 = vmatprep.subr.mxu0 0.0
    %1081 = vmatpush1.msra.mxu0 0.0
    %1082 = vmatprep.subr.mxu0 0.0
    %1083 = vmatpush1.msra.mxu0 0.0
    %1084 = vmatprep.subr.mxu0 0.0
    %1085 = vmatpush1.msra.mxu0 0.0
    %1086 = vmatprep.subr.mxu0 0.0
    %1087 = vmatpush1.msra.mxu0 0.0
    %1088 = vmatprep.subr.mxu0 0.0
    %1089 = vmatpush1.msra.mxu0 0.0
    %1090 = vmatprep.subr.mxu0 0.0
    %1091 = vmatpush1.msra.mxu0 0.0
    %1092 = vmatprep.subr.mxu0 0.0
    %1093 = vmatpush1.msra.mxu0 0.0
    %1094 = vmatprep.subr.mxu0 0.0
    %1095 = vmatpush1.msra.mxu0 0.0
    %1096 = vmatprep.subr.mxu0 0.0
    %1097 = vmatpush1.msra.mxu0 0.0
    %1098 = vmatprep.subr.mxu0 0.0
    %1099 = vmatpush1.msra.mxu0 0.0
    %1100 = vmatprep.subr.mxu0 0.0
    %1101 = vmatpush1.msra.mxu0 0.0
    %1102 = vmatprep.subr.mxu0 0.0
    %1103 = vmatpush1.msra.mxu0 0.0
    %1104 = vmatprep.mubr.f32.mxu0 0.0
    %1105 = vmatmul.mubr.f32.gmra.mrb[0].mxu0 %v940
    %v1106 = vpop.f32.mrb[0].mxu0
    %v1107 = vadd.f32 %v922, %v1106
    %v1108 = vpop.f32.mrb[0].mxu0
    %v1109 = vadd.f32 %v922, %v1108
    %1110 = vmatprep.mubr.f32.mxu0 0.0
    %1111 = vmatmul.mubr.f32.gmra.mrb[0].mxu0 %v943
    %v1112 = vpop.f32.mrb[0].mxu0
    %v1113 = vadd.f32 %v926, %v1112
    %v1114 = vpop.f32.mrb[0].mxu0
    %v1115 = vadd.f32 %v926, %v1114
    %1116 = vmatprep.mubr.f32.mxu0 0.0
    %1117 = vmatmul.mubr.f32.gmra.mrb[0].mxu0 %v946
    %v1118 = vpop.f32.mrb[0].mxu0
    %v1119 = vadd.f32 %v931, %v1118
    %v1120 = vpop.f32.mrb[0].mxu0
    %v1121 = vadd.f32 %v931, %v1120
    %1122 = vmatprep.mubr.f32.mxu0 0.0
    %1123 = vmatmul.mubr.f32.gmra.mrb[0].mxu0 %v949
    %v1124 = vpop.f32.mrb[0].mxu0
    %v1125 = vadd.f32 %v936, %v1124
    %v1126 = vpop.f32.mrb[0].mxu0
    %v1127 = vadd.f32 %v936, %v1126
    %1128 = vdwg.mxu0
    %1129 = vrot.lane.b32.xlu0 %v1018, 17
    %v1130 = vpop.permute.xlu0 %1129
    %1131 = vrot.lane.b32.xlu0 %v1024, 17
    %v1132 = vpop.permute.xlu0 %1131
    %1133 = vrot.lane.b32.xlu0 %v1030, 17
    %v1134 = vpop.permute.xlu0 %1133
    %1135 = vrot.lane.b32.xlu0 %v1036, 17
    %v1136 = vpop.permute.xlu0 %1135
    %1137 = vrot.lane.b32.xlu0 %v1020, 17
    %v1138 = vpop.permute.xlu0 %1137
    %1139 = vrot.lane.b32.xlu0 %v1026, 17
    %v1140 = vpop.permute.xlu0 %1139
    %1141 = vrot.lane.b32.xlu0 %v1032, 17
    %v1142 = vpop.permute.xlu0 %1141
    %1143 = vrot.lane.b32.xlu0 %v1038, 17
    %v1144 = vpop.permute.xlu0 %1143
    %1145 = vrot.lane.b32.xlu0 %v1107, 17
    %v1146 = vpop.permute.xlu0 %1145
    %1147 = vrot.lane.b32.xlu0 %v1113, 17
    %v1148 = vpop.permute.xlu0 %1147
    %1149 = vrot.lane.b32.xlu0 %v1119, 17
    %v1150 = vpop.permute.xlu0 %1149
    %1151 = vrot.lane.b32.xlu0 %v1125, 17
    %v1152 = vpop.permute.xlu0 %1151
    %1153 = vrot.lane.b32.xlu0 %v1109, 17
    %v1154 = vpop.permute.xlu0 %1153
    %1155 = vrot.lane.b32.xlu0 %v1115, 17
    %v1156 = vpop.permute.xlu0 %1155
    %1157 = vrot.lane.b32.xlu0 %v1121, 17
    %v1158 = vpop.permute.xlu0 %1157
    %1159 = vrot.lane.b32.xlu0 %v1127, 17
    %v1160 = vpop.permute.xlu0 %1159
    %vm1161 = vcmp.lt.s32.totalorder %v87, 17
    %v1162 = vsel %vm1161, %v1146, %v1154
    %v1163 = vsel %vm1161, %v1148, %v1156
    %v1164 = vsel %vm1161, %v1150, %v1158
    %v1165 = vsel %vm1161, %v1152, %v1160
    %v1166 = vsel %vm1161, %v1138, %v1146
    %v1167 = vsel %vm1161, %v1140, %v1148
    %v1168 = vsel %vm1161, %v1142, %v1150
    %v1169 = vsel %vm1161, %v1144, %v1152
    %v1170 = vsel %vm1161, %v1130, %v1138
    %v1171 = vsel %vm1161, %v1132, %v1140
    %v1172 = vsel %vm1161, %v1134, %v1142
    %v1173 = vsel %vm1161, %v1136, %v1144
    %v1174 = vsel %vm1161, %v1154, %v1130
    %v1175 = vsel %vm1161, %v1156, %v1132
    %v1176 = vsel %vm1161, %v1158, %v1134
    %v1177 = vsel %vm1161, %v1160, %v1136
    %v1182 = vrot.slane %v46, 7
    %v1183 = vrot.slane %v47, 7
    %v1184 = vrot.slane %v48, 7
    %v1185 = vrot.slane %v49, 7
    %v1190 = vmul.f32 %v42, %v1182
    %v1191 = vmul.f32 %v43, %v1183
    %v1192 = vmul.f32 %v44, %v1184
    %v1193 = vmul.f32 %v45, %v1185
    %v1194 = vlaneseq
    %v1195 = vshrl.u32 %v1194, 7
    %v1196 = vsub.s32 2, %v1195
    %v1197 = vrot.slane %v1190, %v1196
    %v1198 = vlaneseq
    %v1199 = vshrl.u32 %v1198, 7
    %v1200 = vsub.s32 2, %v1199
    %v1201 = vrot.slane %v1191, %v1200
    %v1202 = vlaneseq
    %v1203 = vshrl.u32 %v1202, 7
    %v1204 = vsub.s32 2, %v1203
    %v1205 = vrot.slane %v1192, %v1204
    %v1206 = vlaneseq
    %v1207 = vshrl.u32 %v1206, 7
    %v1208 = vsub.s32 2, %v1207
    %v1209 = vrot.slane %v1193, %v1208
    %v1210 = vmul.f32 %v1174, %v1197
    %v1211 = vmul.f32 %v1170, %v1201
    %v1212 = vmul.f32 %v1166, %v1205
    %v1213 = vmul.f32 %v1162, %v1209
    %v1214 = vmul.f32 %v1175, %v1197
    %v1215 = vmul.f32 %v1171, %v1201
    %v1216 = vmul.f32 %v1167, %v1205
    %v1217 = vmul.f32 %v1163, %v1209
    %v1218 = vmul.f32 %v1176, %v1197
    %v1219 = vmul.f32 %v1172, %v1201
    %v1220 = vmul.f32 %v1168, %v1205
    %v1221 = vmul.f32 %v1164, %v1209
    %v1222 = vmul.f32 %v1177, %v1197
    %v1223 = vmul.f32 %v1173, %v1201
    %v1224 = vmul.f32 %v1169, %v1205
    %v1225 = vmul.f32 %v1165, %v1209
    %1227 = vset.pattern.permute.xlu0 0
    %1228 = vperm.xlu0 %1227, %v58
    %v1229 = vpop.permute.xlu0 %1228
    %1232 = vset.pattern.permute.xlu0 0
    %1233 = vperm.xlu0 %1232, %v59
    %v1234 = vpop.permute.xlu0 %1233
    %1237 = vset.pattern.permute.xlu0 0
    %1238 = vperm.xlu0 %1237, %v60
    %v1239 = vpop.permute.xlu0 %1238
    %1242 = vset.pattern.permute.xlu0 0
    %1243 = vperm.xlu0 %1242, %v61
    %v1244 = vpop.permute.xlu0 %1243
    %v1246 = vmul.f32 %v1210, %v1229
    %v1247 = vmul.f32 %v1211, %v1229
    %v1248 = vmul.f32 %v1212, %v1229
    %v1249 = vmul.f32 %v1213, %v1229
    %v1250 = vmul.f32 %v1214, %v1234
    %v1251 = vmul.f32 %v1215, %v1234
    %v1252 = vmul.f32 %v1216, %v1234
    %v1253 = vmul.f32 %v1217, %v1234
    %v1254 = vmul.f32 %v1218, %v1239
    %v1255 = vmul.f32 %v1219, %v1239
    %v1256 = vmul.f32 %v1220, %v1239
    %v1257 = vmul.f32 %v1221, %v1239
    %v1258 = vmul.f32 %v1222, %v1244
    %v1259 = vmul.f32 %v1223, %v1244
    %v1260 = vmul.f32 %v1224, %v1244
    %v1261 = vmul.f32 %v1225, %v1244
    %1262 = vrot.lane.b32.xlu0 %v1018, 16
    %v1263 = vpop.permute.xlu0 %1262
    %1264 = vrot.lane.b32.xlu0 %v1024, 16
    %v1265 = vpop.permute.xlu0 %1264
    %1266 = vrot.lane.b32.xlu0 %v1030, 16
    %v1267 = vpop.permute.xlu0 %1266
    %1268 = vrot.lane.b32.xlu0 %v1036, 16
    %v1269 = vpop.permute.xlu0 %1268
    %1270 = vrot.lane.b32.xlu0 %v1020, 16
    %v1271 = vpop.permute.xlu0 %1270
    %1272 = vrot.lane.b32.xlu0 %v1026, 16
    %v1273 = vpop.permute.xlu0 %1272
    %1274 = vrot.lane.b32.xlu0 %v1032, 16
    %v1275 = vpop.permute.xlu0 %1274
    %1276 = vrot.lane.b32.xlu0 %v1038, 16
    %v1277 = vpop.permute.xlu0 %1276
    %1278 = vrot.lane.b32.xlu0 %v1107, 16
    %v1279 = vpop.permute.xlu0 %1278
    %1280 = vrot.lane.b32.xlu0 %v1113, 16
    %v1281 = vpop.permute.xlu0 %1280
    %1282 = vrot.lane.b32.xlu0 %v1119, 16
    %v1283 = vpop.permute.xlu0 %1282
    %1284 = vrot.lane.b32.xlu0 %v1125, 16
    %v1285 = vpop.permute.xlu0 %1284
    %1286 = vrot.lane.b32.xlu0 %v1109, 16
    %v1287 = vpop.permute.xlu0 %1286
    %1288 = vrot.lane.b32.xlu0 %v1115, 16
    %v1289 = vpop.permute.xlu0 %1288
    %1290 = vrot.lane.b32.xlu0 %v1121, 16
    %v1291 = vpop.permute.xlu0 %1290
    %1292 = vrot.lane.b32.xlu0 %v1127, 16
    %v1293 = vpop.permute.xlu0 %1292
    %v1294 = vsel %vm88, %v1279, %v1287
    %v1295 = vsel %vm88, %v1281, %v1289
    %v1296 = vsel %vm88, %v1283, %v1291
    %v1297 = vsel %vm88, %v1285, %v1293
    %v1298 = vsel %vm88, %v1271, %v1279
    %v1299 = vsel %vm88, %v1273, %v1281
    %v1300 = vsel %vm88, %v1275, %v1283
    %v1301 = vsel %vm88, %v1277, %v1285
    %v1302 = vsel %vm88, %v1263, %v1271
    %v1303 = vsel %vm88, %v1265, %v1273
    %v1304 = vsel %vm88, %v1267, %v1275
    %v1305 = vsel %vm88, %v1269, %v1277
    %v1306 = vsel %vm88, %v1287, %v1263
    %v1307 = vsel %vm88, %v1289, %v1265
    %v1308 = vsel %vm88, %v1291, %v1267
    %v1309 = vsel %vm88, %v1293, %v1269
    %v1310 = vmul.f32 %v1306, %v96
    %v1311 = vmul.f32 %v1302, %v100
    %v1312 = vmul.f32 %v1298, %v104
    %v1313 = vmul.f32 %v1294, %v108
    %v1314 = vmul.f32 %v1307, %v96
    %v1315 = vmul.f32 %v1303, %v100
    %v1316 = vmul.f32 %v1299, %v104
    %v1317 = vmul.f32 %v1295, %v108
    %v1318 = vmul.f32 %v1308, %v96
    %v1319 = vmul.f32 %v1304, %v100
    %v1320 = vmul.f32 %v1300, %v104
    %v1321 = vmul.f32 %v1296, %v108
    %v1322 = vmul.f32 %v1309, %v96
    %v1323 = vmul.f32 %v1305, %v100
    %v1324 = vmul.f32 %v1301, %v104
    %v1325 = vmul.f32 %v1297, %v108
    %1326 = vset.pattern.permute.xlu0 1
    %1327 = vperm.xlu0 %1326, %v58
    %v1328 = vpop.permute.xlu0 %1327
    %1330 = vset.pattern.permute.xlu0 1
    %1331 = vperm.xlu0 %1330, %v59
    %v1332 = vpop.permute.xlu0 %1331
    %1334 = vset.pattern.permute.xlu0 1
    %1335 = vperm.xlu0 %1334, %v60
    %v1336 = vpop.permute.xlu0 %1335
    %1338 = vset.pattern.permute.xlu0 1
    %1339 = vperm.xlu0 %1338, %v61
    %v1340 = vpop.permute.xlu0 %1339
    %v1342 = vmul.f32 %v1310, %v1328
    %v1343 = vmul.f32 %v1311, %v1328
    %v1344 = vmul.f32 %v1312, %v1328
    %v1345 = vmul.f32 %v1313, %v1328
    %v1346 = vmul.f32 %v1314, %v1332
    %v1347 = vmul.f32 %v1315, %v1332
    %v1348 = vmul.f32 %v1316, %v1332
    %v1349 = vmul.f32 %v1317, %v1332
    %v1350 = vmul.f32 %v1318, %v1336
    %v1351 = vmul.f32 %v1319, %v1336
    %v1352 = vmul.f32 %v1320, %v1336
    %v1353 = vmul.f32 %v1321, %v1336
    %v1354 = vmul.f32 %v1322, %v1340
    %v1355 = vmul.f32 %v1323, %v1340
    %v1356 = vmul.f32 %v1324, %v1340
    %v1357 = vmul.f32 %v1325, %v1340
    %v1358 = vadd.f32 %v1246, %v1342
    %v1359 = vadd.f32 %v1247, %v1343
    %v1360 = vadd.f32 %v1248, %v1344
    %v1361 = vadd.f32 %v1249, %v1345
    %v1362 = vadd.f32 %v1250, %v1346
    %v1363 = vadd.f32 %v1251, %v1347
    %v1364 = vadd.f32 %v1252, %v1348
    %v1365 = vadd.f32 %v1253, %v1349
    %v1366 = vadd.f32 %v1254, %v1350
    %v1367 = vadd.f32 %v1255, %v1351
    %v1368 = vadd.f32 %v1256, %v1352
    %v1369 = vadd.f32 %v1257, %v1353
    %v1370 = vadd.f32 %v1258, %v1354
    %v1371 = vadd.f32 %v1259, %v1355
    %v1372 = vadd.f32 %v1260, %v1356
    %v1373 = vadd.f32 %v1261, %v1357
    %1374 = vrot.lane.b32.xlu0 %v1018, 15
    %v1375 = vpop.permute.xlu0 %1374
    %1376 = vrot.lane.b32.xlu0 %v1024, 15
    %v1377 = vpop.permute.xlu0 %1376
    %1378 = vrot.lane.b32.xlu0 %v1030, 15
    %v1379 = vpop.permute.xlu0 %1378
    %1380 = vrot.lane.b32.xlu0 %v1036, 15
    %v1381 = vpop.permute.xlu0 %1380
    %1382 = vrot.lane.b32.xlu0 %v1020, 15
    %v1383 = vpop.permute.xlu0 %1382
    %1384 = vrot.lane.b32.xlu0 %v1026, 15
    %v1385 = vpop.permute.xlu0 %1384
    %1386 = vrot.lane.b32.xlu0 %v1032, 15
    %v1387 = vpop.permute.xlu0 %1386
    %1388 = vrot.lane.b32.xlu0 %v1038, 15
    %v1389 = vpop.permute.xlu0 %1388
    %1390 = vrot.lane.b32.xlu0 %v1107, 15
    %v1391 = vpop.permute.xlu0 %1390
    %1392 = vrot.lane.b32.xlu0 %v1113, 15
    %v1393 = vpop.permute.xlu0 %1392
    %1394 = vrot.lane.b32.xlu0 %v1119, 15
    %v1395 = vpop.permute.xlu0 %1394
    %1396 = vrot.lane.b32.xlu0 %v1125, 15
    %v1397 = vpop.permute.xlu0 %1396
    %1398 = vrot.lane.b32.xlu0 %v1109, 15
    %v1399 = vpop.permute.xlu0 %1398
    %1400 = vrot.lane.b32.xlu0 %v1115, 15
    %v1401 = vpop.permute.xlu0 %1400
    %1402 = vrot.lane.b32.xlu0 %v1121, 15
    %v1403 = vpop.permute.xlu0 %1402
    %1404 = vrot.lane.b32.xlu0 %v1127, 15
    %v1405 = vpop.permute.xlu0 %1404
    %vm1406 = vcmp.lt.s32.totalorder %v87, 15
    %v1407 = vsel %vm1406, %v1391, %v1399
    %v1408 = vsel %vm1406, %v1393, %v1401
    %v1409 = vsel %vm1406, %v1395, %v1403
    %v1410 = vsel %vm1406, %v1397, %v1405
    %v1411 = vsel %vm1406, %v1383, %v1391
    %v1412 = vsel %vm1406, %v1385, %v1393
    %v1413 = vsel %vm1406, %v1387, %v1395
    %v1414 = vsel %vm1406, %v1389, %v1397
    %v1415 = vsel %vm1406, %v1375, %v1383
    %v1416 = vsel %vm1406, %v1377, %v1385
    %v1417 = vsel %vm1406, %v1379, %v1387
    %v1418 = vsel %vm1406, %v1381, %v1389
    %v1419 = vsel %vm1406, %v1399, %v1375
    %v1420 = vsel %vm1406, %v1401, %v1377
    %v1421 = vsel %vm1406, %v1403, %v1379
    %v1422 = vsel %vm1406, %v1405, %v1381
    %v1423 = vrot.slane %v46, 1
    %v1424 = vrot.slane %v47, 1
    %v1425 = vrot.slane %v48, 1
    %v1426 = vrot.slane %v49, 1
    %v1431 = vmul.f32 %v42, %v1423
    %v1432 = vmul.f32 %v43, %v1424
    %v1433 = vmul.f32 %v44, %v1425
    %v1434 = vmul.f32 %v45, %v1426
    %v1435 = vlaneseq
    %v1436 = vshrl.u32 %v1435, 7
    %v1437 = vsub.s32 2, %v1436
    %v1438 = vrot.slane %v1431, %v1437
    %v1439 = vlaneseq
    %v1440 = vshrl.u32 %v1439, 7
    %v1441 = vsub.s32 2, %v1440
    %v1442 = vrot.slane %v1432, %v1441
    %v1443 = vlaneseq
    %v1444 = vshrl.u32 %v1443, 7
    %v1445 = vsub.s32 2, %v1444
    %v1446 = vrot.slane %v1433, %v1445
    %v1447 = vlaneseq
    %v1448 = vshrl.u32 %v1447, 7
    %v1449 = vsub.s32 2, %v1448
    %v1450 = vrot.slane %v1434, %v1449
    %v1451 = vmul.f32 %v1419, %v1438
    %v1452 = vmul.f32 %v1415, %v1442
    %v1453 = vmul.f32 %v1411, %v1446
    %v1454 = vmul.f32 %v1407, %v1450
    %v1455 = vmul.f32 %v1420, %v1438
    %v1456 = vmul.f32 %v1416, %v1442
    %v1457 = vmul.f32 %v1412, %v1446
    %v1458 = vmul.f32 %v1408, %v1450
    %v1459 = vmul.f32 %v1421, %v1438
    %v1460 = vmul.f32 %v1417, %v1442
    %v1461 = vmul.f32 %v1413, %v1446
    %v1462 = vmul.f32 %v1409, %v1450
    %v1463 = vmul.f32 %v1422, %v1438
    %v1464 = vmul.f32 %v1418, %v1442
    %v1465 = vmul.f32 %v1414, %v1446
    %v1466 = vmul.f32 %v1410, %v1450
    %1467 = vset.pattern.permute.xlu0 2
    %1468 = vperm.xlu0 %1467, %v58
    %v1469 = vpop.permute.xlu0 %1468
    %1471 = vset.pattern.permute.xlu0 2
    %1472 = vperm.xlu0 %1471, %v59
    %v1473 = vpop.permute.xlu0 %1472
    %1475 = vset.pattern.permute.xlu0 2
    %1476 = vperm.xlu0 %1475, %v60
    %v1477 = vpop.permute.xlu0 %1476
    %1479 = vset.pattern.permute.xlu0 2
    %1480 = vperm.xlu0 %1479, %v61
    %v1481 = vpop.permute.xlu0 %1480
    %v1483 = vmul.f32 %v1451, %v1469
    %v1484 = vmul.f32 %v1452, %v1469
    %v1485 = vmul.f32 %v1453, %v1469
    %v1486 = vmul.f32 %v1454, %v1469
    %v1487 = vmul.f32 %v1455, %v1473
    %v1488 = vmul.f32 %v1456, %v1473
    %v1489 = vmul.f32 %v1457, %v1473
    %v1490 = vmul.f32 %v1458, %v1473
    %v1491 = vmul.f32 %v1459, %v1477
    %v1492 = vmul.f32 %v1460, %v1477
    %v1493 = vmul.f32 %v1461, %v1477
    %v1494 = vmul.f32 %v1462, %v1477
    %v1495 = vmul.f32 %v1463, %v1481
    %v1496 = vmul.f32 %v1464, %v1481
    %v1497 = vmul.f32 %v1465, %v1481
    %v1498 = vmul.f32 %v1466, %v1481
    %v1499 = vadd.f32 %v1358, %v1483
    %v1500 = vadd.f32 %v1359, %v1484
    %v1501 = vadd.f32 %v1360, %v1485
    %v1502 = vadd.f32 %v1361, %v1486
    %v1503 = vadd.f32 %v1362, %v1487
    %v1504 = vadd.f32 %v1363, %v1488
    %v1505 = vadd.f32 %v1364, %v1489
    %v1506 = vadd.f32 %v1365, %v1490
    %v1507 = vadd.f32 %v1366, %v1491
    %v1508 = vadd.f32 %v1367, %v1492
    %v1509 = vadd.f32 %v1368, %v1493
    %v1510 = vadd.f32 %v1369, %v1494
    %v1511 = vadd.f32 %v1370, %v1495
    %v1512 = vadd.f32 %v1371, %v1496
    %v1513 = vadd.f32 %v1372, %v1497
    %v1514 = vadd.f32 %v1373, %v1498
    %1515 = vrot.lane.b32.xlu0 %v1018, 1
    %v1516 = vpop.permute.xlu0 %1515
    %1517 = vrot.lane.b32.xlu0 %v1024, 1
    %v1518 = vpop.permute.xlu0 %1517
    %1519 = vrot.lane.b32.xlu0 %v1030, 1
    %v1520 = vpop.permute.xlu0 %1519
    %1521 = vrot.lane.b32.xlu0 %v1036, 1
    %v1522 = vpop.permute.xlu0 %1521
    %1523 = vrot.lane.b32.xlu0 %v1020, 1
    %v1524 = vpop.permute.xlu0 %1523
    %1525 = vrot.lane.b32.xlu0 %v1026, 1
    %v1526 = vpop.permute.xlu0 %1525
    %1527 = vrot.lane.b32.xlu0 %v1032, 1
    %v1528 = vpop.permute.xlu0 %1527
    %1529 = vrot.lane.b32.xlu0 %v1038, 1
    %v1530 = vpop.permute.xlu0 %1529
    %1531 = vrot.lane.b32.xlu0 %v1107, 1
    %v1532 = vpop.permute.xlu0 %1531
    %1533 = vrot.lane.b32.xlu0 %v1113, 1
    %v1534 = vpop.permute.xlu0 %1533
    %1535 = vrot.lane.b32.xlu0 %v1119, 1
    %v1536 = vpop.permute.xlu0 %1535
    %1537 = vrot.lane.b32.xlu0 %v1125, 1
    %v1538 = vpop.permute.xlu0 %1537
    %1539 = vrot.lane.b32.xlu0 %v1109, 1
    %v1540 = vpop.permute.xlu0 %1539
    %1541 = vrot.lane.b32.xlu0 %v1115, 1
    %v1542 = vpop.permute.xlu0 %1541
    %1543 = vrot.lane.b32.xlu0 %v1121, 1
    %v1544 = vpop.permute.xlu0 %1543
    %1545 = vrot.lane.b32.xlu0 %v1127, 1
    %v1546 = vpop.permute.xlu0 %1545
    %v1547 = vsel %vm170, %v1532, %v1540
    %v1548 = vsel %vm170, %v1534, %v1542
    %v1549 = vsel %vm170, %v1536, %v1544
    %v1550 = vsel %vm170, %v1538, %v1546
    %v1551 = vsel %vm170, %v1524, %v1532
    %v1552 = vsel %vm170, %v1526, %v1534
    %v1553 = vsel %vm170, %v1528, %v1536
    %v1554 = vsel %vm170, %v1530, %v1538
    %v1555 = vsel %vm170, %v1516, %v1524
    %v1556 = vsel %vm170, %v1518, %v1526
    %v1557 = vsel %vm170, %v1520, %v1528
    %v1558 = vsel %vm170, %v1522, %v1530
    %v1559 = vsel %vm170, %v1540, %v1516
    %v1560 = vsel %vm170, %v1542, %v1518
    %v1561 = vsel %vm170, %v1544, %v1520
    %v1562 = vsel %vm170, %v1546, %v1522
    %v1563 = vmul.f32 %v1559, %v186
    %v1564 = vmul.f32 %v1555, %v190
    %v1565 = vmul.f32 %v1551, %v194
    %v1566 = vmul.f32 %v1547, %v198
    %v1567 = vmul.f32 %v1560, %v186
    %v1568 = vmul.f32 %v1556, %v190
    %v1569 = vmul.f32 %v1552, %v194
    %v1570 = vmul.f32 %v1548, %v198
    %v1571 = vmul.f32 %v1561, %v186
    %v1572 = vmul.f32 %v1557, %v190
    %v1573 = vmul.f32 %v1553, %v194
    %v1574 = vmul.f32 %v1549, %v198
    %v1575 = vmul.f32 %v1562, %v186
    %v1576 = vmul.f32 %v1558, %v190
    %v1577 = vmul.f32 %v1554, %v194
    %v1578 = vmul.f32 %v1550, %v198
    %1579 = vset.pattern.permute.xlu0 3
    %1580 = vperm.xlu0 %1579, %v58
    %v1581 = vpop.permute.xlu0 %1580
    %1583 = vset.pattern.permute.xlu0 3
    %1584 = vperm.xlu0 %1583, %v59
    %v1585 = vpop.permute.xlu0 %1584
    %1587 = vset.pattern.permute.xlu0 3
    %1588 = vperm.xlu0 %1587, %v60
    %v1589 = vpop.permute.xlu0 %1588
    %1591 = vset.pattern.permute.xlu0 3
    %1592 = vperm.xlu0 %1591, %v61
    %v1593 = vpop.permute.xlu0 %1592
    %v1595 = vmul.f32 %v1563, %v1581
    %v1596 = vmul.f32 %v1564, %v1581
    %v1597 = vmul.f32 %v1565, %v1581
    %v1598 = vmul.f32 %v1566, %v1581
    %v1599 = vmul.f32 %v1567, %v1585
    %v1600 = vmul.f32 %v1568, %v1585
    %v1601 = vmul.f32 %v1569, %v1585
    %v1602 = vmul.f32 %v1570, %v1585
    %v1603 = vmul.f32 %v1571, %v1589
    %v1604 = vmul.f32 %v1572, %v1589
    %v1605 = vmul.f32 %v1573, %v1589
    %v1606 = vmul.f32 %v1574, %v1589
    %v1607 = vmul.f32 %v1575, %v1593
    %v1608 = vmul.f32 %v1576, %v1593
    %v1609 = vmul.f32 %v1577, %v1593
    %v1610 = vmul.f32 %v1578, %v1593
    %v1611 = vadd.f32 %v1499, %v1595
    %v1612 = vadd.f32 %v1500, %v1596
    %v1613 = vadd.f32 %v1501, %v1597
    %v1614 = vadd.f32 %v1502, %v1598
    %v1615 = vadd.f32 %v1503, %v1599
    %v1616 = vadd.f32 %v1504, %v1600
    %v1617 = vadd.f32 %v1505, %v1601
    %v1618 = vadd.f32 %v1506, %v1602
    %v1619 = vadd.f32 %v1507, %v1603
    %v1620 = vadd.f32 %v1508, %v1604
    %v1621 = vadd.f32 %v1509, %v1605
    %v1622 = vadd.f32 %v1510, %v1606
    %v1623 = vadd.f32 %v1511, %v1607
    %v1624 = vadd.f32 %v1512, %v1608
    %v1625 = vadd.f32 %v1513, %v1609
    %v1626 = vadd.f32 %v1514, %v1610
    %1627 = vset.pattern.permute.xlu0 4
    %1628 = vperm.xlu0 %1627, %v58
    %v1629 = vpop.permute.xlu0 %1628
    %1631 = vset.pattern.permute.xlu0 4
    %1632 = vperm.xlu0 %1631, %v59
    %v1633 = vpop.permute.xlu0 %1632
    %1635 = vset.pattern.permute.xlu0 4
    %1636 = vperm.xlu0 %1635, %v60
    %v1637 = vpop.permute.xlu0 %1636
    %1639 = vset.pattern.permute.xlu0 4
    %1640 = vperm.xlu0 %1639, %v61
    %v1641 = vpop.permute.xlu0 %1640
    %v1643 = vmul.f32 %v1018, %v1629
    %v1644 = vmul.f32 %v1020, %v1629
    %v1645 = vmul.f32 %v1107, %v1629
    %v1646 = vmul.f32 %v1109, %v1629
    %v1647 = vmul.f32 %v1024, %v1633
    %v1648 = vmul.f32 %v1026, %v1633
    %v1649 = vmul.f32 %v1113, %v1633
    %v1650 = vmul.f32 %v1115, %v1633
    %v1651 = vmul.f32 %v1030, %v1637
    %v1652 = vmul.f32 %v1032, %v1637
    %v1653 = vmul.f32 %v1119, %v1637
    %v1654 = vmul.f32 %v1121, %v1637
    %v1655 = vmul.f32 %v1036, %v1641
    %v1656 = vmul.f32 %v1038, %v1641
    %v1657 = vmul.f32 %v1125, %v1641
    %v1658 = vmul.f32 %v1127, %v1641
    %v1659 = vadd.f32 %v1611, %v1643
    %v1660 = vadd.f32 %v1612, %v1644
    %v1661 = vadd.f32 %v1613, %v1645
    %v1662 = vadd.f32 %v1614, %v1646
    %v1663 = vadd.f32 %v1615, %v1647
    %v1664 = vadd.f32 %v1616, %v1648
    %v1665 = vadd.f32 %v1617, %v1649
    %v1666 = vadd.f32 %v1618, %v1650
    %v1667 = vadd.f32 %v1619, %v1651
    %v1668 = vadd.f32 %v1620, %v1652
    %v1669 = vadd.f32 %v1621, %v1653
    %v1670 = vadd.f32 %v1622, %v1654
    %v1671 = vadd.f32 %v1623, %v1655
    %v1672 = vadd.f32 %v1624, %v1656
    %v1673 = vadd.f32 %v1625, %v1657
    %v1674 = vadd.f32 %v1626, %v1658
    %1675 = vrot.lane.b32.xlu0 %v1018, 127
    %v1676 = vpop.permute.xlu0 %1675
    %1677 = vrot.lane.b32.xlu0 %v1024, 127
    %v1678 = vpop.permute.xlu0 %1677
    %1679 = vrot.lane.b32.xlu0 %v1030, 127
    %v1680 = vpop.permute.xlu0 %1679
    %1681 = vrot.lane.b32.xlu0 %v1036, 127
    %v1682 = vpop.permute.xlu0 %1681
    %1683 = vrot.lane.b32.xlu0 %v1020, 127
    %v1684 = vpop.permute.xlu0 %1683
    %1685 = vrot.lane.b32.xlu0 %v1026, 127
    %v1686 = vpop.permute.xlu0 %1685
    %1687 = vrot.lane.b32.xlu0 %v1032, 127
    %v1688 = vpop.permute.xlu0 %1687
    %1689 = vrot.lane.b32.xlu0 %v1038, 127
    %v1690 = vpop.permute.xlu0 %1689
    %1691 = vrot.lane.b32.xlu0 %v1107, 127
    %v1692 = vpop.permute.xlu0 %1691
    %1693 = vrot.lane.b32.xlu0 %v1113, 127
    %v1694 = vpop.permute.xlu0 %1693
    %1695 = vrot.lane.b32.xlu0 %v1119, 127
    %v1696 = vpop.permute.xlu0 %1695
    %1697 = vrot.lane.b32.xlu0 %v1125, 127
    %v1698 = vpop.permute.xlu0 %1697
    %1699 = vrot.lane.b32.xlu0 %v1109, 127
    %v1700 = vpop.permute.xlu0 %1699
    %1701 = vrot.lane.b32.xlu0 %v1115, 127
    %v1702 = vpop.permute.xlu0 %1701
    %1703 = vrot.lane.b32.xlu0 %v1121, 127
    %v1704 = vpop.permute.xlu0 %1703
    %1705 = vrot.lane.b32.xlu0 %v1127, 127
    %v1706 = vpop.permute.xlu0 %1705
    %v1707 = vsel %vm561, %v1692, %v1700
    %v1708 = vsel %vm561, %v1694, %v1702
    %v1709 = vsel %vm561, %v1696, %v1704
    %v1710 = vsel %vm561, %v1698, %v1706
    %v1711 = vsel %vm561, %v1684, %v1692
    %v1712 = vsel %vm561, %v1686, %v1694
    %v1713 = vsel %vm561, %v1688, %v1696
    %v1714 = vsel %vm561, %v1690, %v1698
    %v1715 = vsel %vm561, %v1676, %v1684
    %v1716 = vsel %vm561, %v1678, %v1686
    %v1717 = vsel %vm561, %v1680, %v1688
    %v1718 = vsel %vm561, %v1682, %v1690
    %v1719 = vsel %vm561, %v1700, %v1676
    %v1720 = vsel %vm561, %v1702, %v1678
    %v1721 = vsel %vm561, %v1704, %v1680
    %v1722 = vsel %vm561, %v1706, %v1682
    %v1723 = vmul.f32 %v1715, %v577
    %v1724 = vmul.f32 %v1711, %v581
    %v1725 = vmul.f32 %v1707, %v585
    %v1726 = vmul.f32 %v1719, %v589
    %v1727 = vmul.f32 %v1716, %v577
    %v1728 = vmul.f32 %v1712, %v581
    %v1729 = vmul.f32 %v1708, %v585
    %v1730 = vmul.f32 %v1720, %v589
    %v1731 = vmul.f32 %v1717, %v577
    %v1732 = vmul.f32 %v1713, %v581
    %v1733 = vmul.f32 %v1709, %v585
    %v1734 = vmul.f32 %v1721, %v589
    %v1735 = vmul.f32 %v1718, %v577
    %v1736 = vmul.f32 %v1714, %v581
    %v1737 = vmul.f32 %v1710, %v585
    %v1738 = vmul.f32 %v1722, %v589
    %1739 = vset.pattern.permute.xlu0 5
    %1740 = vperm.xlu0 %1739, %v58
    %v1741 = vpop.permute.xlu0 %1740
    %1743 = vset.pattern.permute.xlu0 5
    %1744 = vperm.xlu0 %1743, %v59
    %v1745 = vpop.permute.xlu0 %1744
    %1747 = vset.pattern.permute.xlu0 5
    %1748 = vperm.xlu0 %1747, %v60
    %v1749 = vpop.permute.xlu0 %1748
    %1751 = vset.pattern.permute.xlu0 5
    %1752 = vperm.xlu0 %1751, %v61
    %v1753 = vpop.permute.xlu0 %1752
    %v1755 = vmul.f32 %v1723, %v1741
    %v1756 = vmul.f32 %v1724, %v1741
    %v1757 = vmul.f32 %v1725, %v1741
    %v1758 = vmul.f32 %v1726, %v1741
    %v1759 = vmul.f32 %v1727, %v1745
    %v1760 = vmul.f32 %v1728, %v1745
    %v1761 = vmul.f32 %v1729, %v1745
    %v1762 = vmul.f32 %v1730, %v1745
    %v1763 = vmul.f32 %v1731, %v1749
    %v1764 = vmul.f32 %v1732, %v1749
    %v1765 = vmul.f32 %v1733, %v1749
    %v1766 = vmul.f32 %v1734, %v1749
    %v1767 = vmul.f32 %v1735, %v1753
    %v1768 = vmul.f32 %v1736, %v1753
    %v1769 = vmul.f32 %v1737, %v1753
    %v1770 = vmul.f32 %v1738, %v1753
    %v1771 = vadd.f32 %v1659, %v1755
    %v1772 = vadd.f32 %v1660, %v1756
    %v1773 = vadd.f32 %v1661, %v1757
    %v1774 = vadd.f32 %v1662, %v1758
    %v1775 = vadd.f32 %v1663, %v1759
    %v1776 = vadd.f32 %v1664, %v1760
    %v1777 = vadd.f32 %v1665, %v1761
    %v1778 = vadd.f32 %v1666, %v1762
    %v1779 = vadd.f32 %v1667, %v1763
    %v1780 = vadd.f32 %v1668, %v1764
    %v1781 = vadd.f32 %v1669, %v1765
    %v1782 = vadd.f32 %v1670, %v1766
    %v1783 = vadd.f32 %v1671, %v1767
    %v1784 = vadd.f32 %v1672, %v1768
    %v1785 = vadd.f32 %v1673, %v1769
    %v1786 = vadd.f32 %v1674, %v1770
    %1787 = vrot.lane.b32.xlu0 %v1018, 113
    %v1788 = vpop.permute.xlu0 %1787
    %1789 = vrot.lane.b32.xlu0 %v1024, 113
    %v1790 = vpop.permute.xlu0 %1789
    %1791 = vrot.lane.b32.xlu0 %v1030, 113
    %v1792 = vpop.permute.xlu0 %1791
    %1793 = vrot.lane.b32.xlu0 %v1036, 113
    %v1794 = vpop.permute.xlu0 %1793
    %1795 = vrot.lane.b32.xlu0 %v1020, 113
    %v1796 = vpop.permute.xlu0 %1795
    %1797 = vrot.lane.b32.xlu0 %v1026, 113
    %v1798 = vpop.permute.xlu0 %1797
    %1799 = vrot.lane.b32.xlu0 %v1032, 113
    %v1800 = vpop.permute.xlu0 %1799
    %1801 = vrot.lane.b32.xlu0 %v1038, 113
    %v1802 = vpop.permute.xlu0 %1801
    %1803 = vrot.lane.b32.xlu0 %v1107, 113
    %v1804 = vpop.permute.xlu0 %1803
    %1805 = vrot.lane.b32.xlu0 %v1113, 113
    %v1806 = vpop.permute.xlu0 %1805
    %1807 = vrot.lane.b32.xlu0 %v1119, 113
    %v1808 = vpop.permute.xlu0 %1807
    %1809 = vrot.lane.b32.xlu0 %v1125, 113
    %v1810 = vpop.permute.xlu0 %1809
    %1811 = vrot.lane.b32.xlu0 %v1109, 113
    %v1812 = vpop.permute.xlu0 %1811
    %1813 = vrot.lane.b32.xlu0 %v1115, 113
    %v1814 = vpop.permute.xlu0 %1813
    %1815 = vrot.lane.b32.xlu0 %v1121, 113
    %v1816 = vpop.permute.xlu0 %1815
    %1817 = vrot.lane.b32.xlu0 %v1127, 113
    %v1818 = vpop.permute.xlu0 %1817
    %vm1819 = vcmp.lt.s32.totalorder %v87, 113
    %v1820 = vsel %vm1819, %v1804, %v1812
    %v1821 = vsel %vm1819, %v1806, %v1814
    %v1822 = vsel %vm1819, %v1808, %v1816
    %v1823 = vsel %vm1819, %v1810, %v1818
    %v1824 = vsel %vm1819, %v1796, %v1804
    %v1825 = vsel %vm1819, %v1798, %v1806
    %v1826 = vsel %vm1819, %v1800, %v1808
    %v1827 = vsel %vm1819, %v1802, %v1810
    %v1828 = vsel %vm1819, %v1788, %v1796
    %v1829 = vsel %vm1819, %v1790, %v1798
    %v1830 = vsel %vm1819, %v1792, %v1800
    %v1831 = vsel %vm1819, %v1794, %v1802
    %v1832 = vsel %vm1819, %v1812, %v1788
    %v1833 = vsel %vm1819, %v1814, %v1790
    %v1834 = vsel %vm1819, %v1816, %v1792
    %v1835 = vsel %vm1819, %v1818, %v1794
    %v1836 = vrot.slane %v46, 5
    %v1837 = vrot.slane %v47, 5
    %v1838 = vrot.slane %v48, 5
    %v1839 = vrot.slane %v49, 5
    %v1844 = vmul.f32 %v42, %v1836
    %v1845 = vmul.f32 %v43, %v1837
    %v1846 = vmul.f32 %v44, %v1838
    %v1847 = vmul.f32 %v45, %v1839
    %v1848 = vlaneseq
    %v1849 = vshrl.u32 %v1848, 7
    %v1850 = vsub.s32 4, %v1849
    %v1851 = vrot.slane %v1844, %v1850
    %v1852 = vlaneseq
    %v1853 = vshrl.u32 %v1852, 7
    %v1854 = vsub.s32 4, %v1853
    %v1855 = vrot.slane %v1845, %v1854
    %v1856 = vlaneseq
    %v1857 = vshrl.u32 %v1856, 7
    %v1858 = vsub.s32 4, %v1857
    %v1859 = vrot.slane %v1846, %v1858
    %v1860 = vlaneseq
    %v1861 = vshrl.u32 %v1860, 7
    %v1862 = vsub.s32 4, %v1861
    %v1863 = vrot.slane %v1847, %v1862
    %v1864 = vmul.f32 %v1828, %v1851
    %v1865 = vmul.f32 %v1824, %v1855
    %v1866 = vmul.f32 %v1820, %v1859
    %v1867 = vmul.f32 %v1832, %v1863
    %v1868 = vmul.f32 %v1829, %v1851
    %v1869 = vmul.f32 %v1825, %v1855
    %v1870 = vmul.f32 %v1821, %v1859
    %v1871 = vmul.f32 %v1833, %v1863
    %v1872 = vmul.f32 %v1830, %v1851
    %v1873 = vmul.f32 %v1826, %v1855
    %v1874 = vmul.f32 %v1822, %v1859
    %v1875 = vmul.f32 %v1834, %v1863
    %v1876 = vmul.f32 %v1831, %v1851
    %v1877 = vmul.f32 %v1827, %v1855
    %v1878 = vmul.f32 %v1823, %v1859
    %v1879 = vmul.f32 %v1835, %v1863
    %1880 = vset.pattern.permute.xlu0 6
    %1881 = vperm.xlu0 %1880, %v58
    %v1882 = vpop.permute.xlu0 %1881
    %1884 = vset.pattern.permute.xlu0 6
    %1885 = vperm.xlu0 %1884, %v59
    %v1886 = vpop.permute.xlu0 %1885
    %1888 = vset.pattern.permute.xlu0 6
    %1889 = vperm.xlu0 %1888, %v60
    %v1890 = vpop.permute.xlu0 %1889
    %1892 = vset.pattern.permute.xlu0 6
    %1893 = vperm.xlu0 %1892, %v61
    %v1894 = vpop.permute.xlu0 %1893
    %v1896 = vmul.f32 %v1864, %v1882
    %v1897 = vmul.f32 %v1865, %v1882
    %v1898 = vmul.f32 %v1866, %v1882
    %v1899 = vmul.f32 %v1867, %v1882
    %v1900 = vmul.f32 %v1868, %v1886
    %v1901 = vmul.f32 %v1869, %v1886
    %v1902 = vmul.f32 %v1870, %v1886
    %v1903 = vmul.f32 %v1871, %v1886
    %v1904 = vmul.f32 %v1872, %v1890
    %v1905 = vmul.f32 %v1873, %v1890
    %v1906 = vmul.f32 %v1874, %v1890
    %v1907 = vmul.f32 %v1875, %v1890
    %v1908 = vmul.f32 %v1876, %v1894
    %v1909 = vmul.f32 %v1877, %v1894
    %v1910 = vmul.f32 %v1878, %v1894
    %v1911 = vmul.f32 %v1879, %v1894
    %v1912 = vadd.f32 %v1771, %v1896
    %v1913 = vadd.f32 %v1772, %v1897
    %v1914 = vadd.f32 %v1773, %v1898
    %v1915 = vadd.f32 %v1774, %v1899
    %v1916 = vadd.f32 %v1775, %v1900
    %v1917 = vadd.f32 %v1776, %v1901
    %v1918 = vadd.f32 %v1777, %v1902
    %v1919 = vadd.f32 %v1778, %v1903
    %v1920 = vadd.f32 %v1779, %v1904
    %v1921 = vadd.f32 %v1780, %v1905
    %v1922 = vadd.f32 %v1781, %v1906
    %v1923 = vadd.f32 %v1782, %v1907
    %v1924 = vadd.f32 %v1783, %v1908
    %v1925 = vadd.f32 %v1784, %v1909
    %v1926 = vadd.f32 %v1785, %v1910
    %v1927 = vadd.f32 %v1786, %v1911
    %1928 = vrot.lane.b32.xlu0 %v1018, 112
    %v1929 = vpop.permute.xlu0 %1928
    %1930 = vrot.lane.b32.xlu0 %v1024, 112
    %v1931 = vpop.permute.xlu0 %1930
    %1932 = vrot.lane.b32.xlu0 %v1030, 112
    %v1933 = vpop.permute.xlu0 %1932
    %1934 = vrot.lane.b32.xlu0 %v1036, 112
    %v1935 = vpop.permute.xlu0 %1934
    %1936 = vrot.lane.b32.xlu0 %v1020, 112
    %v1937 = vpop.permute.xlu0 %1936
    %1938 = vrot.lane.b32.xlu0 %v1026, 112
    %v1939 = vpop.permute.xlu0 %1938
    %1940 = vrot.lane.b32.xlu0 %v1032, 112
    %v1941 = vpop.permute.xlu0 %1940
    %1942 = vrot.lane.b32.xlu0 %v1038, 112
    %v1943 = vpop.permute.xlu0 %1942
    %1944 = vrot.lane.b32.xlu0 %v1107, 112
    %v1945 = vpop.permute.xlu0 %1944
    %1946 = vrot.lane.b32.xlu0 %v1113, 112
    %v1947 = vpop.permute.xlu0 %1946
    %1948 = vrot.lane.b32.xlu0 %v1119, 112
    %v1949 = vpop.permute.xlu0 %1948
    %1950 = vrot.lane.b32.xlu0 %v1125, 112
    %v1951 = vpop.permute.xlu0 %1950
    %1952 = vrot.lane.b32.xlu0 %v1109, 112
    %v1953 = vpop.permute.xlu0 %1952
    %1954 = vrot.lane.b32.xlu0 %v1115, 112
    %v1955 = vpop.permute.xlu0 %1954
    %1956 = vrot.lane.b32.xlu0 %v1121, 112
    %v1957 = vpop.permute.xlu0 %1956
    %1958 = vrot.lane.b32.xlu0 %v1127, 112
    %v1959 = vpop.permute.xlu0 %1958
    %v1960 = vsel %vm121, %v1945, %v1953
    %v1961 = vsel %vm121, %v1947, %v1955
    %v1962 = vsel %vm121, %v1949, %v1957
    %v1963 = vsel %vm121, %v1951, %v1959
    %v1964 = vsel %vm121, %v1937, %v1945
    %v1965 = vsel %vm121, %v1939, %v1947
    %v1966 = vsel %vm121, %v1941, %v1949
    %v1967 = vsel %vm121, %v1943, %v1951
    %v1968 = vsel %vm121, %v1929, %v1937
    %v1969 = vsel %vm121, %v1931, %v1939
    %v1970 = vsel %vm121, %v1933, %v1941
    %v1971 = vsel %vm121, %v1935, %v1943
    %v1972 = vsel %vm121, %v1953, %v1929
    %v1973 = vsel %vm121, %v1955, %v1931
    %v1974 = vsel %vm121, %v1957, %v1933
    %v1975 = vsel %vm121, %v1959, %v1935
    %v1976 = vmul.f32 %v1968, %v129
    %v1977 = vmul.f32 %v1964, %v133
    %v1978 = vmul.f32 %v1960, %v137
    %v1979 = vmul.f32 %v1972, %v141
    %v1980 = vmul.f32 %v1969, %v129
    %v1981 = vmul.f32 %v1965, %v133
    %v1982 = vmul.f32 %v1961, %v137
    %v1983 = vmul.f32 %v1973, %v141
    %v1984 = vmul.f32 %v1970, %v129
    %v1985 = vmul.f32 %v1966, %v133
    %v1986 = vmul.f32 %v1962, %v137
    %v1987 = vmul.f32 %v1974, %v141
    %v1988 = vmul.f32 %v1971, %v129
    %v1989 = vmul.f32 %v1967, %v133
    %v1990 = vmul.f32 %v1963, %v137
    %v1991 = vmul.f32 %v1975, %v141
    %1992 = vset.pattern.permute.xlu0 7
    %1993 = vperm.xlu0 %1992, %v58
    %v1994 = vpop.permute.xlu0 %1993
    %1996 = vset.pattern.permute.xlu0 7
    %1997 = vperm.xlu0 %1996, %v59
    %v1998 = vpop.permute.xlu0 %1997
    %2000 = vset.pattern.permute.xlu0 7
    %2001 = vperm.xlu0 %2000, %v60
    %v2002 = vpop.permute.xlu0 %2001
    %2004 = vset.pattern.permute.xlu0 7
    %2005 = vperm.xlu0 %2004, %v61
    %v2006 = vpop.permute.xlu0 %2005
    %v2008 = vmul.f32 %v1976, %v1994
    %v2009 = vmul.f32 %v1977, %v1994
    %v2010 = vmul.f32 %v1978, %v1994
    %v2011 = vmul.f32 %v1979, %v1994
    %v2012 = vmul.f32 %v1980, %v1998
    %v2013 = vmul.f32 %v1981, %v1998
    %v2014 = vmul.f32 %v1982, %v1998
    %v2015 = vmul.f32 %v1983, %v1998
    %v2016 = vmul.f32 %v1984, %v2002
    %v2017 = vmul.f32 %v1985, %v2002
    %v2018 = vmul.f32 %v1986, %v2002
    %v2019 = vmul.f32 %v1987, %v2002
    %v2020 = vmul.f32 %v1988, %v2006
    %v2021 = vmul.f32 %v1989, %v2006
    %v2022 = vmul.f32 %v1990, %v2006
    %v2023 = vmul.f32 %v1991, %v2006
    %v2024 = vadd.f32 %v1912, %v2008
    %v2025 = vadd.f32 %v1913, %v2009
    %v2026 = vadd.f32 %v1914, %v2010
    %v2027 = vadd.f32 %v1915, %v2011
    %v2028 = vadd.f32 %v1916, %v2012
    %v2029 = vadd.f32 %v1917, %v2013
    %v2030 = vadd.f32 %v1918, %v2014
    %v2031 = vadd.f32 %v1919, %v2015
    %v2032 = vadd.f32 %v1920, %v2016
    %v2033 = vadd.f32 %v1921, %v2017
    %v2034 = vadd.f32 %v1922, %v2018
    %v2035 = vadd.f32 %v1923, %v2019
    %v2036 = vadd.f32 %v1924, %v2020
    %v2037 = vadd.f32 %v1925, %v2021
    %v2038 = vadd.f32 %v1926, %v2022
    %v2039 = vadd.f32 %v1927, %v2023
    %2040 = vrot.lane.b32.xlu0 %v1018, 111
    %v2041 = vpop.permute.xlu0 %2040
    %2042 = vrot.lane.b32.xlu0 %v1024, 111
    %v2043 = vpop.permute.xlu0 %2042
    %2044 = vrot.lane.b32.xlu0 %v1030, 111
    %v2045 = vpop.permute.xlu0 %2044
    %2046 = vrot.lane.b32.xlu0 %v1036, 111
    %v2047 = vpop.permute.xlu0 %2046
    %2048 = vrot.lane.b32.xlu0 %v1020, 111
    %v2049 = vpop.permute.xlu0 %2048
    %2050 = vrot.lane.b32.xlu0 %v1026, 111
    %v2051 = vpop.permute.xlu0 %2050
    %2052 = vrot.lane.b32.xlu0 %v1032, 111
    %v2053 = vpop.permute.xlu0 %2052
    %2054 = vrot.lane.b32.xlu0 %v1038, 111
    %v2055 = vpop.permute.xlu0 %2054
    %2056 = vrot.lane.b32.xlu0 %v1107, 111
    %v2057 = vpop.permute.xlu0 %2056
    %2058 = vrot.lane.b32.xlu0 %v1113, 111
    %v2059 = vpop.permute.xlu0 %2058
    %2060 = vrot.lane.b32.xlu0 %v1119, 111
    %v2061 = vpop.permute.xlu0 %2060
    %2062 = vrot.lane.b32.xlu0 %v1125, 111
    %v2063 = vpop.permute.xlu0 %2062
    %2064 = vrot.lane.b32.xlu0 %v1109, 111
    %v2065 = vpop.permute.xlu0 %2064
    %2066 = vrot.lane.b32.xlu0 %v1115, 111
    %v2067 = vpop.permute.xlu0 %2066
    %2068 = vrot.lane.b32.xlu0 %v1121, 111
    %v2069 = vpop.permute.xlu0 %2068
    %2070 = vrot.lane.b32.xlu0 %v1127, 111
    %v2071 = vpop.permute.xlu0 %2070
    %vm2072 = vcmp.lt.s32.totalorder %v87, 111
    %v2073 = vsel %vm2072, %v2057, %v2065
    %v2074 = vsel %vm2072, %v2059, %v2067
    %v2075 = vsel %vm2072, %v2061, %v2069
    %v2076 = vsel %vm2072, %v2063, %v2071
    %v2077 = vsel %vm2072, %v2049, %v2057
    %v2078 = vsel %vm2072, %v2051, %v2059
    %v2079 = vsel %vm2072, %v2053, %v2061
    %v2080 = vsel %vm2072, %v2055, %v2063
    %v2081 = vsel %vm2072, %v2041, %v2049
    %v2082 = vsel %vm2072, %v2043, %v2051
    %v2083 = vsel %vm2072, %v2045, %v2053
    %v2084 = vsel %vm2072, %v2047, %v2055
    %v2085 = vsel %vm2072, %v2065, %v2041
    %v2086 = vsel %vm2072, %v2067, %v2043
    %v2087 = vsel %vm2072, %v2069, %v2045
    %v2088 = vsel %vm2072, %v2071, %v2047
    %v2089 = vlaneseq
    %v2090 = vshrl.u32 %v2089, 7
    %v2091 = vsub.s32 4, %v2090
    %v2092 = vrot.slane %v1190, %v2091
    %v2093 = vlaneseq
    %v2094 = vshrl.u32 %v2093, 7
    %v2095 = vsub.s32 4, %v2094
    %v2096 = vrot.slane %v1191, %v2095
    %v2097 = vlaneseq
    %v2098 = vshrl.u32 %v2097, 7
    %v2099 = vsub.s32 4, %v2098
    %v2100 = vrot.slane %v1192, %v2099
    %v2101 = vlaneseq
    %v2102 = vshrl.u32 %v2101, 7
    %v2103 = vsub.s32 4, %v2102
    %v2104 = vrot.slane %v1193, %v2103
    %v2105 = vmul.f32 %v2081, %v2092
    %v2106 = vmul.f32 %v2077, %v2096
    %v2107 = vmul.f32 %v2073, %v2100
    %v2108 = vmul.f32 %v2085, %v2104
    %v2109 = vmul.f32 %v2082, %v2092
    %v2110 = vmul.f32 %v2078, %v2096
    %v2111 = vmul.f32 %v2074, %v2100
    %v2112 = vmul.f32 %v2086, %v2104
    %v2113 = vmul.f32 %v2083, %v2092
    %v2114 = vmul.f32 %v2079, %v2096
    %v2115 = vmul.f32 %v2075, %v2100
    %v2116 = vmul.f32 %v2087, %v2104
    %v2117 = vmul.f32 %v2084, %v2092
    %v2118 = vmul.f32 %v2080, %v2096
    %v2119 = vmul.f32 %v2076, %v2100
    %v2120 = vmul.f32 %v2088, %v2104
    %2121 = vset.pattern.permute.xlu0 8
    %2122 = vperm.xlu0 %2121, %v58
    %v2123 = vpop.permute.xlu0 %2122
    %2125 = vset.pattern.permute.xlu0 8
    %2126 = vperm.xlu0 %2125, %v59
    %v2127 = vpop.permute.xlu0 %2126
    %2129 = vset.pattern.permute.xlu0 8
    %2130 = vperm.xlu0 %2129, %v60
    %v2131 = vpop.permute.xlu0 %2130
    %2133 = vset.pattern.permute.xlu0 8
    %2134 = vperm.xlu0 %2133, %v61
    %v2135 = vpop.permute.xlu0 %2134
    %v2137 = vmul.f32 %v2105, %v2123
    %v2138 = vmul.f32 %v2106, %v2123
    %v2139 = vmul.f32 %v2107, %v2123
    %v2140 = vmul.f32 %v2108, %v2123
    %v2141 = vmul.f32 %v2109, %v2127
    %v2142 = vmul.f32 %v2110, %v2127
    %v2143 = vmul.f32 %v2111, %v2127
    %v2144 = vmul.f32 %v2112, %v2127
    %v2145 = vmul.f32 %v2113, %v2131
    %v2146 = vmul.f32 %v2114, %v2131
    %v2147 = vmul.f32 %v2115, %v2131
    %v2148 = vmul.f32 %v2116, %v2131
    %v2149 = vmul.f32 %v2117, %v2135
    %v2150 = vmul.f32 %v2118, %v2135
    %v2151 = vmul.f32 %v2119, %v2135
    %v2152 = vmul.f32 %v2120, %v2135
    %v2153 = vadd.f32 %v2024, %v2137
    %v2154 = vadd.f32 %v2025, %v2138
    %v2155 = vadd.f32 %v2026, %v2139
    %v2156 = vadd.f32 %v2027, %v2140
    %v2157 = vadd.f32 %v2028, %v2141
    %v2158 = vadd.f32 %v2029, %v2142
    %v2159 = vadd.f32 %v2030, %v2143
    %v2160 = vadd.f32 %v2031, %v2144
    %v2161 = vadd.f32 %v2032, %v2145
    %v2162 = vadd.f32 %v2033, %v2146
    %v2163 = vadd.f32 %v2034, %v2147
    %v2164 = vadd.f32 %v2035, %v2148
    %v2165 = vadd.f32 %v2036, %v2149
    %v2166 = vadd.f32 %v2037, %v2150
    %v2167 = vadd.f32 %v2038, %v2151
    %v2168 = vadd.f32 %v2039, %v2152
    %2169 = vset.pattern.permute.xlu0 4
    %2170 = vperm.xlu0 %2169, %v50
    %v2171 = vpop.permute.xlu0 %2170
    %2173 = vset.pattern.permute.xlu0 4
    %2174 = vperm.xlu0 %2173, %v51
    %v2175 = vpop.permute.xlu0 %2174
    %2177 = vset.pattern.permute.xlu0 4
    %2178 = vperm.xlu0 %2177, %v52
    %v2179 = vpop.permute.xlu0 %2178
    %2181 = vset.pattern.permute.xlu0 4
    %2182 = vperm.xlu0 %2181, %v53
    %v2183 = vpop.permute.xlu0 %2182
    %v2185 = vadd.f32 %v2153, %v2171
    %v2186 = vadd.f32 %v2154, %v2171
    %v2187 = vadd.f32 %v2155, %v2171
    %v2188 = vadd.f32 %v2156, %v2171
    %v2189 = vadd.f32 %v2157, %v2175
    %v2190 = vadd.f32 %v2158, %v2175
    %v2191 = vadd.f32 %v2159, %v2175
    %v2192 = vadd.f32 %v2160, %v2175
    %v2193 = vadd.f32 %v2161, %v2179
    %v2194 = vadd.f32 %v2162, %v2179
    %v2195 = vadd.f32 %v2163, %v2179
    %v2196 = vadd.f32 %v2164, %v2179
    %v2197 = vadd.f32 %v2165, %v2183
    %v2198 = vadd.f32 %v2166, %v2183
    %v2199 = vadd.f32 %v2167, %v2183
    %v2200 = vadd.f32 %v2168, %v2183
    %v2201 = vadd.f32 %v2185, %v2189
    %v2202 = vadd.f32 %v2201, %v2193
    %v2203 = vadd.f32 %v2202, %v2197
    %v2204 = vrot.slane %v2203, 4
    %v2205 = vadd.f32 %v2203, %v2204
    %v2206 = vrot.slane %v2205, 2
    %v2207 = vadd.f32 %v2205, %v2206
    %v2208 = vrot.slane %v2207, 1
    %v2209 = vadd.f32 %v2207, %v2208
    %v2210 = vadd.f32 %v2186, %v2190
    %v2211 = vadd.f32 %v2210, %v2194
    %v2212 = vadd.f32 %v2211, %v2198
    %v2213 = vrot.slane %v2212, 4
    %v2214 = vadd.f32 %v2212, %v2213
    %v2215 = vrot.slane %v2214, 2
    %v2216 = vadd.f32 %v2214, %v2215
    %v2217 = vrot.slane %v2216, 1
    %v2218 = vadd.f32 %v2216, %v2217
    %v2219 = vadd.f32 %v2187, %v2191
    %v2220 = vadd.f32 %v2219, %v2195
    %v2221 = vadd.f32 %v2220, %v2199
    %v2222 = vrot.slane %v2221, 4
    %v2223 = vadd.f32 %v2221, %v2222
    %v2224 = vrot.slane %v2223, 2
    %v2225 = vadd.f32 %v2223, %v2224
    %v2226 = vrot.slane %v2225, 1
    %v2227 = vadd.f32 %v2225, %v2226
    %v2228 = vadd.f32 %v2188, %v2192
    %v2229 = vadd.f32 %v2228, %v2196
    %v2230 = vadd.f32 %v2229, %v2200
    %v2231 = vrot.slane %v2230, 4
    %v2232 = vadd.f32 %v2230, %v2231
    %v2233 = vrot.slane %v2232, 2
    %v2234 = vadd.f32 %v2232, %v2233
    %v2235 = vrot.slane %v2234, 1
    %v2236 = vadd.f32 %v2234, %v2235
    %v2237 = vrcp.pop 32.0
    %v2238 = vmul.f32 %v2209, %v2237
    %v2239 = vmul.f32 %v2218, %v2237
    %v2240 = vmul.f32 %v2227, %v2237
    %v2241 = vmul.f32 %v2236, %v2237
    %v2242 = vmax.f32 %v2185, %v2189
    %v2243 = vmax.f32 %v2242, %v2193
    %v2244 = vmax.f32 %v2243, %v2197
    %v2245 = vrot.slane %v2244, 4
    %v2246 = vmax.f32 %v2244, %v2245
    %v2247 = vrot.slane %v2246, 2
    %v2248 = vmax.f32 %v2246, %v2247
    %v2249 = vrot.slane %v2248, 1
    %v2250 = vmax.f32 %v2248, %v2249
    %v2251 = vmax.f32 %v2186, %v2190
    %v2252 = vmax.f32 %v2251, %v2194
    %v2253 = vmax.f32 %v2252, %v2198
    %v2254 = vrot.slane %v2253, 4
    %v2255 = vmax.f32 %v2253, %v2254
    %v2256 = vrot.slane %v2255, 2
    %v2257 = vmax.f32 %v2255, %v2256
    %v2258 = vrot.slane %v2257, 1
    %v2259 = vmax.f32 %v2257, %v2258
    %v2260 = vmax.f32 %v2187, %v2191
    %v2261 = vmax.f32 %v2260, %v2195
    %v2262 = vmax.f32 %v2261, %v2199
    %v2263 = vrot.slane %v2262, 4
    %v2264 = vmax.f32 %v2262, %v2263
    %v2265 = vrot.slane %v2264, 2
    %v2266 = vmax.f32 %v2264, %v2265
    %v2267 = vrot.slane %v2266, 1
    %v2268 = vmax.f32 %v2266, %v2267
    %v2269 = vmax.f32 %v2188, %v2192
    %v2270 = vmax.f32 %v2269, %v2196
    %v2271 = vmax.f32 %v2270, %v2200
    %v2272 = vrot.slane %v2271, 4
    %v2273 = vmax.f32 %v2271, %v2272
    %v2274 = vrot.slane %v2273, 2
    %v2275 = vmax.f32 %v2273, %v2274
    %v2276 = vrot.slane %v2275, 1
    %v2277 = vmax.f32 %v2275, %v2276
    %vm2278 = vcmask 1040384
    %v2279 = vsel %vm2278, %v2238, %v2250
    %v2280 = vsel %vm2278, %v2239, %v2259
    %v2281 = vsel %vm2278, %v2240, %v2268
    %v2282 = vsel %vm2278, %v2241, %v2277
    %2283 = vrot.lane.b32.xlu0 %v2279, 48
    %v2284 = vpop.permute.xlu0 %2283
    %2285 = vrot.lane.b32.xlu0 %v2280, 48
    %v2286 = vpop.permute.xlu0 %2285
    %2287 = vrot.lane.b32.xlu0 %v2281, 48
    %v2288 = vpop.permute.xlu0 %2287
    %2289 = vrot.lane.b32.xlu0 %v2282, 48
    %v2290 = vpop.permute.xlu0 %2289
    %vm2291 = vcmp.lt.s32.totalorder %v87, 48
    %v2292 = vsel %vm2291, %v2288, %v2290
    %v2293 = vsel %vm2291, %v2286, %v2288
    %v2294 = vsel %vm2291, %v2284, %v2286
    %v2295 = vsel %vm2291, %v2290, %v2284
    %v2296 = vlaneseq
    %v2297 = vshrl.u32 %v2296, 7
    %v2298 = vsub.s32 0, %v2297
    %v2299 = vrot.slane %v42, %v2298
    %v2300 = vlaneseq
    %v2301 = vshrl.u32 %v2300, 7
    %v2302 = vsub.s32 0, %v2301
    %v2303 = vrot.slane %v43, %v2302
    %v2304 = vlaneseq
    %v2305 = vshrl.u32 %v2304, 7
    %v2306 = vsub.s32 0, %v2305
    %v2307 = vrot.slane %v44, %v2306
    %v2308 = vlaneseq
    %v2309 = vshrl.u32 %v2308, 7
    %v2310 = vsub.s32 0, %v2309
    %v2311 = vrot.slane %v45, %v2310
    %v2312 = vmul.f32 %v2295, %v2299
    %v2313 = vmul.f32 %v2294, %v2303
    %v2314 = vmul.f32 %v2293, %v2307
    %v2315 = vmul.f32 %v2292, %v2311
    %2316 = vrot.lane.b32.xlu0 %v2279, 32
    %v2317 = vpop.permute.xlu0 %2316
    %2318 = vrot.lane.b32.xlu0 %v2280, 32
    %v2319 = vpop.permute.xlu0 %2318
    %2320 = vrot.lane.b32.xlu0 %v2281, 32
    %v2321 = vpop.permute.xlu0 %2320
    %2322 = vrot.lane.b32.xlu0 %v2282, 32
    %v2323 = vpop.permute.xlu0 %2322
    %vm2324 = vcmp.lt.s32.totalorder %v87, 32
    %v2325 = vsel %vm2324, %v2321, %v2323
    %v2326 = vsel %vm2324, %v2319, %v2321
    %v2327 = vsel %vm2324, %v2317, %v2319
    %v2328 = vsel %vm2324, %v2323, %v2317
    %v2329 = vlaneseq
    %v2330 = vshrl.u32 %v2329, 7
    %v2331 = vsub.s32 1, %v2330
    %v2332 = vrot.slane %v42, %v2331
    %v2333 = vlaneseq
    %v2334 = vshrl.u32 %v2333, 7
    %v2335 = vsub.s32 1, %v2334
    %v2336 = vrot.slane %v43, %v2335
    %v2337 = vlaneseq
    %v2338 = vshrl.u32 %v2337, 7
    %v2339 = vsub.s32 1, %v2338
    %v2340 = vrot.slane %v44, %v2339
    %v2341 = vlaneseq
    %v2342 = vshrl.u32 %v2341, 7
    %v2343 = vsub.s32 1, %v2342
    %v2344 = vrot.slane %v45, %v2343
    %v2345 = vmul.f32 %v2328, %v2332
    %v2346 = vmul.f32 %v2327, %v2336
    %v2347 = vmul.f32 %v2326, %v2340
    %v2348 = vmul.f32 %v2325, %v2344
    %2349 = vrot.lane.b32.xlu0 %v2279, 16
    %v2350 = vpop.permute.xlu0 %2349
    %2351 = vrot.lane.b32.xlu0 %v2280, 16
    %v2352 = vpop.permute.xlu0 %2351
    %2353 = vrot.lane.b32.xlu0 %v2281, 16
    %v2354 = vpop.permute.xlu0 %2353
    %2355 = vrot.lane.b32.xlu0 %v2282, 16
    %v2356 = vpop.permute.xlu0 %2355
    %v2357 = vsel %vm88, %v2354, %v2356
    %v2358 = vsel %vm88, %v2352, %v2354
    %v2359 = vsel %vm88, %v2350, %v2352
    %v2360 = vsel %vm88, %v2356, %v2350
    %v2361 = vmul.f32 %v2360, %v96
    %v2362 = vmul.f32 %v2359, %v100
    %v2363 = vmul.f32 %v2358, %v104
    %v2364 = vmul.f32 %v2357, %v108
    %2365 = vrot.lane.b32.xlu0 %v2279, 112
    %v2366 = vpop.permute.xlu0 %2365
    %2367 = vrot.lane.b32.xlu0 %v2280, 112
    %v2368 = vpop.permute.xlu0 %2367
    %2369 = vrot.lane.b32.xlu0 %v2281, 112
    %v2370 = vpop.permute.xlu0 %2369
    %2371 = vrot.lane.b32.xlu0 %v2282, 112
    %v2372 = vpop.permute.xlu0 %2371
    %v2373 = vsel %vm121, %v2370, %v2372
    %v2374 = vsel %vm121, %v2368, %v2370
    %v2375 = vsel %vm121, %v2366, %v2368
    %v2376 = vsel %vm121, %v2372, %v2366
    %v2377 = vmul.f32 %v2375, %v129
    %v2378 = vmul.f32 %v2374, %v133
    %v2379 = vmul.f32 %v2373, %v137
    %v2380 = vmul.f32 %v2376, %v141
    %2381 = vrot.lane.b32.xlu0 %v2279, 96
    %v2382 = vpop.permute.xlu0 %2381
    %2383 = vrot.lane.b32.xlu0 %v2280, 96
    %v2384 = vpop.permute.xlu0 %2383
    %2385 = vrot.lane.b32.xlu0 %v2281, 96
    %v2386 = vpop.permute.xlu0 %2385
    %2387 = vrot.lane.b32.xlu0 %v2282, 96
    %v2388 = vpop.permute.xlu0 %2387
    %vm2389 = vcmp.lt.s32.totalorder %v87, 96
    %v2390 = vsel %vm2389, %v2386, %v2388
    %v2391 = vsel %vm2389, %v2384, %v2386
    %v2392 = vsel %vm2389, %v2382, %v2384
    %v2393 = vsel %vm2389, %v2388, %v2382
    %v2394 = vlaneseq
    %v2395 = vshrl.u32 %v2394, 7
    %v2396 = vsub.s32 5, %v2395
    %v2397 = vrot.slane %v42, %v2396
    %v2398 = vlaneseq
    %v2399 = vshrl.u32 %v2398, 7
    %v2400 = vsub.s32 5, %v2399
    %v2401 = vrot.slane %v43, %v2400
    %v2402 = vlaneseq
    %v2403 = vshrl.u32 %v2402, 7
    %v2404 = vsub.s32 5, %v2403
    %v2405 = vrot.slane %v44, %v2404
    %v2406 = vlaneseq
    %v2407 = vshrl.u32 %v2406, 7
    %v2408 = vsub.s32 5, %v2407
    %v2409 = vrot.slane %v45, %v2408
    %v2410 = vmul.f32 %v2392, %v2397
    %v2411 = vmul.f32 %v2391, %v2401
    %v2412 = vmul.f32 %v2390, %v2405
    %v2413 = vmul.f32 %v2393, %v2409
    %2414 = vrot.lane.b32.xlu0 %v2279, 80
    %v2415 = vpop.permute.xlu0 %2414
    %2416 = vrot.lane.b32.xlu0 %v2280, 80
    %v2417 = vpop.permute.xlu0 %2416
    %2418 = vrot.lane.b32.xlu0 %v2281, 80
    %v2419 = vpop.permute.xlu0 %2418
    %2420 = vrot.lane.b32.xlu0 %v2282, 80
    %v2421 = vpop.permute.xlu0 %2420
    %vm2422 = vcmp.lt.s32.totalorder %v87, 80
    %v2423 = vsel %vm2422, %v2419, %v2421
    %v2424 = vsel %vm2422, %v2417, %v2419
    %v2425 = vsel %vm2422, %v2415, %v2417
    %v2426 = vsel %vm2422, %v2421, %v2415
    %v2427 = vlaneseq
    %v2428 = vshrl.u32 %v2427, 7
    %v2429 = vsub.s32 6, %v2428
    %v2430 = vrot.slane %v42, %v2429
    %v2431 = vlaneseq
    %v2432 = vshrl.u32 %v2431, 7
    %v2433 = vsub.s32 6, %v2432
    %v2434 = vrot.slane %v43, %v2433
    %v2435 = vlaneseq
    %v2436 = vshrl.u32 %v2435, 7
    %v2437 = vsub.s32 6, %v2436
    %v2438 = vrot.slane %v44, %v2437
    %v2439 = vlaneseq
    %v2440 = vshrl.u32 %v2439, 7
    %v2441 = vsub.s32 6, %v2440
    %v2442 = vrot.slane %v45, %v2441
    %v2443 = vmul.f32 %v2425, %v2430
    %v2444 = vmul.f32 %v2424, %v2434
    %v2445 = vmul.f32 %v2423, %v2438
    %v2446 = vmul.f32 %v2426, %v2442
    %v2451 = vrot.slane %v2345, 6
    %v2452 = vrot.slane %v2346, 6
    %v2453 = vrot.slane %v2347, 6
    %v2454 = vrot.slane %v2348, 6
    %v2463 = vrot.slane %v2361, 4
    %v2464 = vrot.slane %v2362, 4
    %v2465 = vrot.slane %v2363, 4
    %v2466 = vrot.slane %v2364, 4
    %v2475 = vrot.slane %v2279, 2
    %v2476 = vrot.slane %v2280, 2
    %v2477 = vrot.slane %v2281, 2
    %v2478 = vrot.slane %v2282, 2
    %v2487 = vrot.slane %v2410, 6
    %v2488 = vrot.slane %v2411, 6
    %v2489 = vrot.slane %v2412, 6
    %v2490 = vrot.slane %v2413, 6
    %v2499 = vrot.slane %v2443, 4
    %v2500 = vrot.slane %v2444, 4
    %v2501 = vrot.slane %v2445, 4
    %v2502 = vrot.slane %v2446, 4
    %vm2507 = vcmask 1041408
    %v2508 = vsel %vm2507, %v2312, %v2451
    %v2509 = vsel %vm2507, %v2313, %v2452
    %v2510 = vsel %vm2507, %v2314, %v2453
    %v2511 = vsel %vm2507, %v2315, %v2454
    %vm2512 = vcmask 1043456
    %v2513 = vsel %vm2512, %v2508, %v2463
    %v2514 = vsel %vm2512, %v2509, %v2464
    %v2515 = vsel %vm2512, %v2510, %v2465
    %v2516 = vsel %vm2512, %v2511, %v2466
    %vm2517 = vcmask 1045504
    %v2518 = vsel %vm2517, %v2513, %v2475
    %v2519 = vsel %vm2517, %v2514, %v2476
    %v2520 = vsel %vm2517, %v2515, %v2477
    %v2521 = vsel %vm2517, %v2516, %v2478
    %v2522 = vsel %vm2507, %v2377, %v2487
    %v2523 = vsel %vm2507, %v2378, %v2488
    %v2524 = vsel %vm2507, %v2379, %v2489
    %v2525 = vsel %vm2507, %v2380, %v2490
    %v2526 = vsel %vm2512, %v2522, %v2499
    %v2527 = vsel %vm2512, %v2523, %v2500
    %v2528 = vsel %vm2512, %v2524, %v2501
    %v2529 = vsel %vm2512, %v2525, %v2502
    %2530 = vrot.lane.b32.xlu0 %v2518, 3
    %v2531 = vpop.permute.xlu0 %2530
    %2532 = vrot.lane.b32.xlu0 %v2526, 3
    %v2533 = vpop.permute.xlu0 %2532
    %2534 = vrot.lane.b32.xlu0 %v2519, 3
    %v2535 = vpop.permute.xlu0 %2534
    %2536 = vrot.lane.b32.xlu0 %v2527, 3
    %v2537 = vpop.permute.xlu0 %2536
    %2538 = vrot.lane.b32.xlu0 %v2520, 3
    %v2539 = vpop.permute.xlu0 %2538
    %2540 = vrot.lane.b32.xlu0 %v2528, 3
    %v2541 = vpop.permute.xlu0 %2540
    %2542 = vrot.lane.b32.xlu0 %v2521, 3
    %v2543 = vpop.permute.xlu0 %2542
    %2544 = vrot.lane.b32.xlu0 %v2529, 3
    %v2545 = vpop.permute.xlu0 %2544
    %vm2546 = vcmp.lt.s32.totalorder %v87, 3
    %v2547 = vsel %vm2546, %v2539, %v2543
    %v2548 = vsel %vm2546, %v2541, %v2545
    %v2549 = vsel %vm2546, %v2535, %v2539
    %v2550 = vsel %vm2546, %v2537, %v2541
    %v2551 = vsel %vm2546, %v2531, %v2535
    %v2552 = vsel %vm2546, %v2533, %v2537
    %v2553 = vsel %vm2546, %v2543, %v2531
    %v2554 = vsel %vm2546, %v2545, %v2533
    %v2555 = vlaneseq
    %v2556 = vshrl.u32 %v2555, 7
    %v2557 = vsub.s32 7, %v2556
    %v2558 = vrot.slane %v42, %v2557
    %v2559 = vlaneseq
    %v2560 = vshrl.u32 %v2559, 7
    %v2561 = vsub.s32 7, %v2560
    %v2562 = vrot.slane %v43, %v2561
    %v2563 = vlaneseq
    %v2564 = vshrl.u32 %v2563, 7
    %v2565 = vsub.s32 7, %v2564
    %v2566 = vrot.slane %v44, %v2565
    %v2567 = vlaneseq
    %v2568 = vshrl.u32 %v2567, 7
    %v2569 = vsub.s32 7, %v2568
    %v2570 = vrot.slane %v45, %v2569
    %v2571 = vmul.f32 %v2553, %v2558
    %v2572 = vmul.f32 %v2551, %v2562
    %v2573 = vmul.f32 %v2549, %v2566
    %v2574 = vmul.f32 %v2547, %v2570
    %v2575 = vmul.f32 %v2554, %v2558
    %v2576 = vmul.f32 %v2552, %v2562
    %v2577 = vmul.f32 %v2550, %v2566
    %v2578 = vmul.f32 %v2548, %v2570
    %2580 = vset.pattern.permute.xlu0 0
    %2581 = vperm.xlu0 %2580, %v62
    %v2582 = vpop.permute.xlu0 %2581
    %2585 = vset.pattern.permute.xlu0 0
    %2586 = vperm.xlu0 %2585, %v63
    %v2587 = vpop.permute.xlu0 %2586
    %v2589 = vmul.f32 %v2571, %v2582
    %v2590 = vmul.f32 %v2572, %v2582
    %v2591 = vmul.f32 %v2573, %v2582
    %v2592 = vmul.f32 %v2574, %v2582
    %v2593 = vmul.f32 %v2575, %v2587
    %v2594 = vmul.f32 %v2576, %v2587
    %v2595 = vmul.f32 %v2577, %v2587
    %v2596 = vmul.f32 %v2578, %v2587
    %2597 = vrot.lane.b32.xlu0 %v2518, 2
    %v2598 = vpop.permute.xlu0 %2597
    %2599 = vrot.lane.b32.xlu0 %v2526, 2
    %v2600 = vpop.permute.xlu0 %2599
    %2601 = vrot.lane.b32.xlu0 %v2519, 2
    %v2602 = vpop.permute.xlu0 %2601
    %2603 = vrot.lane.b32.xlu0 %v2527, 2
    %v2604 = vpop.permute.xlu0 %2603
    %2605 = vrot.lane.b32.xlu0 %v2520, 2
    %v2606 = vpop.permute.xlu0 %2605
    %2607 = vrot.lane.b32.xlu0 %v2528, 2
    %v2608 = vpop.permute.xlu0 %2607
    %2609 = vrot.lane.b32.xlu0 %v2521, 2
    %v2610 = vpop.permute.xlu0 %2609
    %2611 = vrot.lane.b32.xlu0 %v2529, 2
    %v2612 = vpop.permute.xlu0 %2611
    %vm2613 = vcmp.lt.s32.totalorder %v87, 2
    %v2614 = vsel %vm2613, %v2606, %v2610
    %v2615 = vsel %vm2613, %v2608, %v2612
    %v2616 = vsel %vm2613, %v2602, %v2606
    %v2617 = vsel %vm2613, %v2604, %v2608
    %v2618 = vsel %vm2613, %v2598, %v2602
    %v2619 = vsel %vm2613, %v2600, %v2604
    %v2620 = vsel %vm2613, %v2610, %v2598
    %v2621 = vsel %vm2613, %v2612, %v2600
    %v2622 = vlaneseq
    %v2623 = vshrl.u32 %v2622, 7
    %v2624 = vsub.s32 0, %v2623
    %v2625 = vrot.slane %v46, %v2624
    %v2626 = vlaneseq
    %v2627 = vshrl.u32 %v2626, 7
    %v2628 = vsub.s32 0, %v2627
    %v2629 = vrot.slane %v47, %v2628
    %v2630 = vlaneseq
    %v2631 = vshrl.u32 %v2630, 7
    %v2632 = vsub.s32 0, %v2631
    %v2633 = vrot.slane %v48, %v2632
    %v2634 = vlaneseq
    %v2635 = vshrl.u32 %v2634, 7
    %v2636 = vsub.s32 0, %v2635
    %v2637 = vrot.slane %v49, %v2636
    %v2638 = vmul.f32 %v2620, %v2625
    %v2639 = vmul.f32 %v2618, %v2629
    %v2640 = vmul.f32 %v2616, %v2633
    %v2641 = vmul.f32 %v2614, %v2637
    %v2642 = vmul.f32 %v2621, %v2625
    %v2643 = vmul.f32 %v2619, %v2629
    %v2644 = vmul.f32 %v2617, %v2633
    %v2645 = vmul.f32 %v2615, %v2637
    %2646 = vset.pattern.permute.xlu0 1
    %2647 = vperm.xlu0 %2646, %v62
    %v2648 = vpop.permute.xlu0 %2647
    %2650 = vset.pattern.permute.xlu0 1
    %2651 = vperm.xlu0 %2650, %v63
    %v2652 = vpop.permute.xlu0 %2651
    %v2654 = vmul.f32 %v2638, %v2648
    %v2655 = vmul.f32 %v2639, %v2648
    %v2656 = vmul.f32 %v2640, %v2648
    %v2657 = vmul.f32 %v2641, %v2648
    %v2658 = vmul.f32 %v2642, %v2652
    %v2659 = vmul.f32 %v2643, %v2652
    %v2660 = vmul.f32 %v2644, %v2652
    %v2661 = vmul.f32 %v2645, %v2652
    %v2662 = vadd.f32 %v2589, %v2654
    %v2663 = vadd.f32 %v2590, %v2655
    %v2664 = vadd.f32 %v2591, %v2656
    %v2665 = vadd.f32 %v2592, %v2657
    %v2666 = vadd.f32 %v2593, %v2658
    %v2667 = vadd.f32 %v2594, %v2659
    %v2668 = vadd.f32 %v2595, %v2660
    %v2669 = vadd.f32 %v2596, %v2661
    %2670 = vrot.lane.b32.xlu0 %v2518, 1
    %v2671 = vpop.permute.xlu0 %2670
    %2672 = vrot.lane.b32.xlu0 %v2526, 1
    %v2673 = vpop.permute.xlu0 %2672
    %2674 = vrot.lane.b32.xlu0 %v2519, 1
    %v2675 = vpop.permute.xlu0 %2674
    %2676 = vrot.lane.b32.xlu0 %v2527, 1
    %v2677 = vpop.permute.xlu0 %2676
    %2678 = vrot.lane.b32.xlu0 %v2520, 1
    %v2679 = vpop.permute.xlu0 %2678
    %2680 = vrot.lane.b32.xlu0 %v2528, 1
    %v2681 = vpop.permute.xlu0 %2680
    %2682 = vrot.lane.b32.xlu0 %v2521, 1
    %v2683 = vpop.permute.xlu0 %2682
    %2684 = vrot.lane.b32.xlu0 %v2529, 1
    %v2685 = vpop.permute.xlu0 %2684
    %v2686 = vsel %vm170, %v2679, %v2683
    %v2687 = vsel %vm170, %v2681, %v2685
    %v2688 = vsel %vm170, %v2675, %v2679
    %v2689 = vsel %vm170, %v2677, %v2681
    %v2690 = vsel %vm170, %v2671, %v2675
    %v2691 = vsel %vm170, %v2673, %v2677
    %v2692 = vsel %vm170, %v2683, %v2671
    %v2693 = vsel %vm170, %v2685, %v2673
    %v2694 = vmul.f32 %v2692, %v186
    %v2695 = vmul.f32 %v2690, %v190
    %v2696 = vmul.f32 %v2688, %v194
    %v2697 = vmul.f32 %v2686, %v198
    %v2698 = vmul.f32 %v2693, %v186
    %v2699 = vmul.f32 %v2691, %v190
    %v2700 = vmul.f32 %v2689, %v194
    %v2701 = vmul.f32 %v2687, %v198
    %2702 = vset.pattern.permute.xlu0 2
    %2703 = vperm.xlu0 %2702, %v62
    %v2704 = vpop.permute.xlu0 %2703
    %2706 = vset.pattern.permute.xlu0 2
    %2707 = vperm.xlu0 %2706, %v63
    %v2708 = vpop.permute.xlu0 %2707
    %v2710 = vmul.f32 %v2694, %v2704
    %v2711 = vmul.f32 %v2695, %v2704
    %v2712 = vmul.f32 %v2696, %v2704
    %v2713 = vmul.f32 %v2697, %v2704
    %v2714 = vmul.f32 %v2698, %v2708
    %v2715 = vmul.f32 %v2699, %v2708
    %v2716 = vmul.f32 %v2700, %v2708
    %v2717 = vmul.f32 %v2701, %v2708
    %v2718 = vadd.f32 %v2662, %v2710
    %v2719 = vadd.f32 %v2663, %v2711
    %v2720 = vadd.f32 %v2664, %v2712
    %v2721 = vadd.f32 %v2665, %v2713
    %v2722 = vadd.f32 %v2666, %v2714
    %v2723 = vadd.f32 %v2667, %v2715
    %v2724 = vadd.f32 %v2668, %v2716
    %v2725 = vadd.f32 %v2669, %v2717
    %2726 = vset.pattern.permute.xlu0 3
    %2727 = vperm.xlu0 %2726, %v62
    %v2728 = vpop.permute.xlu0 %2727
    %2730 = vset.pattern.permute.xlu0 3
    %2731 = vperm.xlu0 %2730, %v63
    %v2732 = vpop.permute.xlu0 %2731
    %v2734 = vmul.f32 %v2518, %v2728
    %v2735 = vmul.f32 %v2519, %v2728
    %v2736 = vmul.f32 %v2520, %v2728
    %v2737 = vmul.f32 %v2521, %v2728
    %v2738 = vmul.f32 %v2526, %v2732
    %v2739 = vmul.f32 %v2527, %v2732
    %v2740 = vmul.f32 %v2528, %v2732
    %v2741 = vmul.f32 %v2529, %v2732
    %v2742 = vadd.f32 %v2718, %v2734
    %v2743 = vadd.f32 %v2719, %v2735
    %v2744 = vadd.f32 %v2720, %v2736
    %v2745 = vadd.f32 %v2721, %v2737
    %v2746 = vadd.f32 %v2722, %v2738
    %v2747 = vadd.f32 %v2723, %v2739
    %v2748 = vadd.f32 %v2724, %v2740
    %v2749 = vadd.f32 %v2725, %v2741
    %2750 = vrot.lane.b32.xlu0 %v2518, 127
    %v2751 = vpop.permute.xlu0 %2750
    %2752 = vrot.lane.b32.xlu0 %v2526, 127
    %v2753 = vpop.permute.xlu0 %2752
    %2754 = vrot.lane.b32.xlu0 %v2519, 127
    %v2755 = vpop.permute.xlu0 %2754
    %2756 = vrot.lane.b32.xlu0 %v2527, 127
    %v2757 = vpop.permute.xlu0 %2756
    %2758 = vrot.lane.b32.xlu0 %v2520, 127
    %v2759 = vpop.permute.xlu0 %2758
    %2760 = vrot.lane.b32.xlu0 %v2528, 127
    %v2761 = vpop.permute.xlu0 %2760
    %2762 = vrot.lane.b32.xlu0 %v2521, 127
    %v2763 = vpop.permute.xlu0 %2762
    %2764 = vrot.lane.b32.xlu0 %v2529, 127
    %v2765 = vpop.permute.xlu0 %2764
    %v2766 = vsel %vm561, %v2759, %v2763
    %v2767 = vsel %vm561, %v2761, %v2765
    %v2768 = vsel %vm561, %v2755, %v2759
    %v2769 = vsel %vm561, %v2757, %v2761
    %v2770 = vsel %vm561, %v2751, %v2755
    %v2771 = vsel %vm561, %v2753, %v2757
    %v2772 = vsel %vm561, %v2763, %v2751
    %v2773 = vsel %vm561, %v2765, %v2753
    %v2774 = vmul.f32 %v2770, %v577
    %v2775 = vmul.f32 %v2768, %v581
    %v2776 = vmul.f32 %v2766, %v585
    %v2777 = vmul.f32 %v2772, %v589
    %v2778 = vmul.f32 %v2771, %v577
    %v2779 = vmul.f32 %v2769, %v581
    %v2780 = vmul.f32 %v2767, %v585
    %v2781 = vmul.f32 %v2773, %v589
    %2782 = vset.pattern.permute.xlu0 4
    %2783 = vperm.xlu0 %2782, %v62
    %v2784 = vpop.permute.xlu0 %2783
    %2786 = vset.pattern.permute.xlu0 4
    %2787 = vperm.xlu0 %2786, %v63
    %v2788 = vpop.permute.xlu0 %2787
    %v2790 = vmul.f32 %v2774, %v2784
    %v2791 = vmul.f32 %v2775, %v2784
    %v2792 = vmul.f32 %v2776, %v2784
    %v2793 = vmul.f32 %v2777, %v2784
    %v2794 = vmul.f32 %v2778, %v2788
    %v2795 = vmul.f32 %v2779, %v2788
    %v2796 = vmul.f32 %v2780, %v2788
    %v2797 = vmul.f32 %v2781, %v2788
    %v2798 = vadd.f32 %v2742, %v2790
    %v2799 = vadd.f32 %v2743, %v2791
    %v2800 = vadd.f32 %v2744, %v2792
    %v2801 = vadd.f32 %v2745, %v2793
    %v2802 = vadd.f32 %v2746, %v2794
    %v2803 = vadd.f32 %v2747, %v2795
    %v2804 = vadd.f32 %v2748, %v2796
    %v2805 = vadd.f32 %v2749, %v2797
    %2806 = vrot.lane.b32.xlu0 %v2518, 126
    %v2807 = vpop.permute.xlu0 %2806
    %2808 = vrot.lane.b32.xlu0 %v2526, 126
    %v2809 = vpop.permute.xlu0 %2808
    %2810 = vrot.lane.b32.xlu0 %v2519, 126
    %v2811 = vpop.permute.xlu0 %2810
    %2812 = vrot.lane.b32.xlu0 %v2527, 126
    %v2813 = vpop.permute.xlu0 %2812
    %2814 = vrot.lane.b32.xlu0 %v2520, 126
    %v2815 = vpop.permute.xlu0 %2814
    %2816 = vrot.lane.b32.xlu0 %v2528, 126
    %v2817 = vpop.permute.xlu0 %2816
    %2818 = vrot.lane.b32.xlu0 %v2521, 126
    %v2819 = vpop.permute.xlu0 %2818
    %2820 = vrot.lane.b32.xlu0 %v2529, 126
    %v2821 = vpop.permute.xlu0 %2820
    %vm2822 = vcmp.lt.s32.totalorder %v87, 126
    %v2823 = vsel %vm2822, %v2815, %v2819
    %v2824 = vsel %vm2822, %v2817, %v2821
    %v2825 = vsel %vm2822, %v2811, %v2815
    %v2826 = vsel %vm2822, %v2813, %v2817
    %v2827 = vsel %vm2822, %v2807, %v2811
    %v2828 = vsel %vm2822, %v2809, %v2813
    %v2829 = vsel %vm2822, %v2819, %v2807
    %v2830 = vsel %vm2822, %v2821, %v2809
    %v2831 = vlaneseq
    %v2832 = vshrl.u32 %v2831, 7
    %v2833 = vsub.s32 4, %v2832
    %v2834 = vrot.slane %v46, %v2833
    %v2835 = vlaneseq
    %v2836 = vshrl.u32 %v2835, 7
    %v2837 = vsub.s32 4, %v2836
    %v2838 = vrot.slane %v47, %v2837
    %v2839 = vlaneseq
    %v2840 = vshrl.u32 %v2839, 7
    %v2841 = vsub.s32 4, %v2840
    %v2842 = vrot.slane %v48, %v2841
    %v2843 = vlaneseq
    %v2844 = vshrl.u32 %v2843, 7
    %v2845 = vsub.s32 4, %v2844
    %v2846 = vrot.slane %v49, %v2845
    %v2847 = vmul.f32 %v2827, %v2834
    %v2848 = vmul.f32 %v2825, %v2838
    %v2849 = vmul.f32 %v2823, %v2842
    %v2850 = vmul.f32 %v2829, %v2846
    %v2851 = vmul.f32 %v2828, %v2834
    %v2852 = vmul.f32 %v2826, %v2838
    %v2853 = vmul.f32 %v2824, %v2842
    %v2854 = vmul.f32 %v2830, %v2846
    %2855 = vset.pattern.permute.xlu0 5
    %2856 = vperm.xlu0 %2855, %v62
    %v2857 = vpop.permute.xlu0 %2856
    %2859 = vset.pattern.permute.xlu0 5
    %2860 = vperm.xlu0 %2859, %v63
    %v2861 = vpop.permute.xlu0 %2860
    %v2863 = vmul.f32 %v2847, %v2857
    %v2864 = vmul.f32 %v2848, %v2857
    %v2865 = vmul.f32 %v2849, %v2857
    %v2866 = vmul.f32 %v2850, %v2857
    %v2867 = vmul.f32 %v2851, %v2861
    %v2868 = vmul.f32 %v2852, %v2861
    %v2869 = vmul.f32 %v2853, %v2861
    %v2870 = vmul.f32 %v2854, %v2861
    %v2871 = vadd.f32 %v2798, %v2863
    %v2872 = vadd.f32 %v2799, %v2864
    %v2873 = vadd.f32 %v2800, %v2865
    %v2874 = vadd.f32 %v2801, %v2866
    %v2875 = vadd.f32 %v2802, %v2867
    %v2876 = vadd.f32 %v2803, %v2868
    %v2877 = vadd.f32 %v2804, %v2869
    %v2878 = vadd.f32 %v2805, %v2870
    %2879 = vrot.lane.b32.xlu0 %v2518, 125
    %v2880 = vpop.permute.xlu0 %2879
    %2881 = vrot.lane.b32.xlu0 %v2526, 125
    %v2882 = vpop.permute.xlu0 %2881
    %2883 = vrot.lane.b32.xlu0 %v2519, 125
    %v2884 = vpop.permute.xlu0 %2883
    %2885 = vrot.lane.b32.xlu0 %v2527, 125
    %v2886 = vpop.permute.xlu0 %2885
    %2887 = vrot.lane.b32.xlu0 %v2520, 125
    %v2888 = vpop.permute.xlu0 %2887
    %2889 = vrot.lane.b32.xlu0 %v2528, 125
    %v2890 = vpop.permute.xlu0 %2889
    %2891 = vrot.lane.b32.xlu0 %v2521, 125
    %v2892 = vpop.permute.xlu0 %2891
    %2893 = vrot.lane.b32.xlu0 %v2529, 125
    %v2894 = vpop.permute.xlu0 %2893
    %vm2895 = vcmp.lt.s32.totalorder %v87, 125
    %v2896 = vsel %vm2895, %v2888, %v2892
    %v2897 = vsel %vm2895, %v2890, %v2894
    %v2898 = vsel %vm2895, %v2884, %v2888
    %v2899 = vsel %vm2895, %v2886, %v2890
    %v2900 = vsel %vm2895, %v2880, %v2884
    %v2901 = vsel %vm2895, %v2882, %v2886
    %v2902 = vsel %vm2895, %v2892, %v2880
    %v2903 = vsel %vm2895, %v2894, %v2882
    %v2904 = vlaneseq
    %v2905 = vshrl.u32 %v2904, 7
    %v2906 = vsub.s32 5, %v2905
    %v2907 = vrot.slane %v46, %v2906
    %v2908 = vlaneseq
    %v2909 = vshrl.u32 %v2908, 7
    %v2910 = vsub.s32 5, %v2909
    %v2911 = vrot.slane %v47, %v2910
    %v2912 = vlaneseq
    %v2913 = vshrl.u32 %v2912, 7
    %v2914 = vsub.s32 5, %v2913
    %v2915 = vrot.slane %v48, %v2914
    %v2916 = vlaneseq
    %v2917 = vshrl.u32 %v2916, 7
    %v2918 = vsub.s32 5, %v2917
    %v2919 = vrot.slane %v49, %v2918
    %v2920 = vmul.f32 %v2900, %v2907
    %v2921 = vmul.f32 %v2898, %v2911
    %v2922 = vmul.f32 %v2896, %v2915
    %v2923 = vmul.f32 %v2902, %v2919
    %v2924 = vmul.f32 %v2901, %v2907
    %v2925 = vmul.f32 %v2899, %v2911
    %v2926 = vmul.f32 %v2897, %v2915
    %v2927 = vmul.f32 %v2903, %v2919
    %2928 = vset.pattern.permute.xlu0 6
    %2929 = vperm.xlu0 %2928, %v62
    %v2930 = vpop.permute.xlu0 %2929
    %2932 = vset.pattern.permute.xlu0 6
    %2933 = vperm.xlu0 %2932, %v63
    %v2934 = vpop.permute.xlu0 %2933
    %v2936 = vmul.f32 %v2920, %v2930
    %v2937 = vmul.f32 %v2921, %v2930
    %v2938 = vmul.f32 %v2922, %v2930
    %v2939 = vmul.f32 %v2923, %v2930
    %v2940 = vmul.f32 %v2924, %v2934
    %v2941 = vmul.f32 %v2925, %v2934
    %v2942 = vmul.f32 %v2926, %v2934
    %v2943 = vmul.f32 %v2927, %v2934
    %v2944 = vadd.f32 %v2871, %v2936
    %v2945 = vadd.f32 %v2872, %v2937
    %v2946 = vadd.f32 %v2873, %v2938
    %v2947 = vadd.f32 %v2874, %v2939
    %v2948 = vadd.f32 %v2875, %v2940
    %v2949 = vadd.f32 %v2876, %v2941
    %v2950 = vadd.f32 %v2877, %v2942
    %v2951 = vadd.f32 %v2878, %v2943
    %v2952 = vsel %vm2517, %v2948, 0.0
    %v2953 = vadd.f32 %v2944, %v2952
    %v2954 = vrot.slane %v2953, 4
    %v2955 = vadd.f32 %v2953, %v2954
    %v2956 = vrot.slane %v2955, 2
    %v2957 = vadd.f32 %v2955, %v2956
    %v2958 = vrot.slane %v2957, 1
    %v2959 = vadd.f32 %v2957, %v2958
    %v2960 = vsel %vm2517, %v2949, 0.0
    %v2961 = vadd.f32 %v2945, %v2960
    %v2962 = vrot.slane %v2961, 4
    %v2963 = vadd.f32 %v2961, %v2962
    %v2964 = vrot.slane %v2963, 2
    %v2965 = vadd.f32 %v2963, %v2964
    %v2966 = vrot.slane %v2965, 1
    %v2967 = vadd.f32 %v2965, %v2966
    %v2968 = vsel %vm2517, %v2950, 0.0
    %v2969 = vadd.f32 %v2946, %v2968
    %v2970 = vrot.slane %v2969, 4
    %v2971 = vadd.f32 %v2969, %v2970
    %v2972 = vrot.slane %v2971, 2
    %v2973 = vadd.f32 %v2971, %v2972
    %v2974 = vrot.slane %v2973, 1
    %v2975 = vadd.f32 %v2973, %v2974
    %v2976 = vsel %vm2517, %v2951, 0.0
    %v2977 = vadd.f32 %v2947, %v2976
    %v2978 = vrot.slane %v2977, 4
    %v2979 = vadd.f32 %v2977, %v2978
    %v2980 = vrot.slane %v2979, 2
    %v2981 = vadd.f32 %v2979, %v2980
    %v2982 = vrot.slane %v2981, 1
    %v2983 = vadd.f32 %v2981, %v2982
    %2984 = vset.pattern.permute.xlu0 5
    %2985 = vperm.xlu0 %2984, %v50
    %v2986 = vpop.permute.xlu0 %2985
    %v2988 = vadd.f32 %v2959, %v2986
    %v2989 = vadd.f32 %v2967, %v2986
    %v2990 = vadd.f32 %v2975, %v2986
    %v2991 = vadd.f32 %v2983, %v2986
    %v2992 = vmul.f32 %v2185, %v2193
    %v2993 = vmul.f32 %v2186, %v2194
    %v2994 = vmul.f32 %v2187, %v2195
    %v2995 = vmul.f32 %v2188, %v2196
    %v2996 = vmul.f32 %v2189, %v2197
    %v2997 = vmul.f32 %v2190, %v2198
    %v2998 = vmul.f32 %v2191, %v2199
    %v2999 = vmul.f32 %v2192, %v2200
    %v3000 = vlaneseq
    %v3001 = vshrl.u32 %v3000, 7
    %v3002 = vsub.s32 0, %v3001
    %v3003 = vrot.slane %v2988, %v3002
    %v3004 = vlaneseq
    %v3005 = vshrl.u32 %v3004, 7
    %v3006 = vsub.s32 0, %v3005
    %v3007 = vrot.slane %v2989, %v3006
    %v3008 = vlaneseq
    %v3009 = vshrl.u32 %v3008, 7
    %v3010 = vsub.s32 0, %v3009
    %v3011 = vrot.slane %v2990, %v3010
    %v3012 = vlaneseq
    %v3013 = vshrl.u32 %v3012, 7
    %v3014 = vsub.s32 0, %v3013
    %v3015 = vrot.slane %v2991, %v3014
    %v3016 = vmul.f32 %v2992, %v3003
    %v3017 = vmul.f32 %v2993, %v3007
    %v3018 = vmul.f32 %v2994, %v3011
    %v3019 = vmul.f32 %v2995, %v3015
    %v3020 = vmul.f32 %v2996, %v3003
    %v3021 = vmul.f32 %v2997, %v3007
    %v3022 = vmul.f32 %v2998, %v3011
    %v3023 = vmul.f32 %v2999, %v3015
    %v3024 = vadd.f32 %v3016, %v3017
    %3025 = vadd.xlane.f32.xlu0 %v3024
    %v3026 = vpop.xlane.xlu0 %3025
    %v3027 = vadd.f32 %v3020, %v3021
    %3028 = vadd.xlane.f32.xlu0 %v3027
    %v3029 = vpop.xlane.xlu0 %3028
    %v3030 = vrcp.pop 256.0
    %v3031 = vmul.f32 %v3026, %v3030
    %v3032 = vmul.f32 %v3029, %v3030
    %v3033 = vadd.f32 %v3018, %v3019
    %3034 = vadd.xlane.f32.xlu0 %v3033
    %v3035 = vpop.xlane.xlu0 %3034
    %v3036 = vadd.f32 %v3022, %v3023
    %3037 = vadd.xlane.f32.xlu0 %v3036
    %v3038 = vpop.xlane.xlu0 %3037
    %v3039 = vmul.f32 %v3035, %v3030
    %v3040 = vmul.f32 %v3038, %v3030
    %vm3041 = vcmask 7168
    %v3042 = vsel %vm3041, %v3031, %v3039
    %v3043 = vsel %vm3041, %v3032, %v3040
    %3044 = vset.pattern.permute.xlu0 6
    %3045 = vperm.xlu0 %3044, %v50
    %v3046 = vpop.permute.xlu0 %3045
    %3048 = vset.pattern.permute.xlu0 6
    %3049 = vperm.xlu0 %3048, %v51
    %v3050 = vpop.permute.xlu0 %3049
    %v3053 = vsel %vm938, %v64, 0
    %v3056 = vsel %vm938, %v65, 0
    %3058 = vmatprep.subr.mxu0 0.0
    %3059 = vmatpush1.msra.mxu0 %v3042
    %3060 = vmatprep.subr.mxu0 0.0
    %3061 = vmatpush1.msra.mxu0 %v3043
    %3062 = vmatprep.subr.mxu0 0.0
    %3063 = vmatpush1.msra.mxu0 0.0
    %3064 = vmatprep.subr.mxu0 0.0
    %3065 = vmatpush1.msra.mxu0 0.0
    %3066 = vmatprep.subr.mxu0 0.0
    %3067 = vmatpush1.msra.mxu0 0.0
    %3068 = vmatprep.subr.mxu0 0.0
    %3069 = vmatpush1.msra.mxu0 0.0
    %3070 = vmatprep.subr.mxu0 0.0
    %3071 = vmatpush1.msra.mxu0 0.0
    %3072 = vmatprep.subr.mxu0 0.0
    %3073 = vmatpush1.msra.mxu0 0.0
    %3074 = vmatprep.subr.mxu0 0.0
    %3075 = vmatpush1.msra.mxu0 0.0
    %3076 = vmatprep.subr.mxu0 0.0
    %3077 = vmatpush1.msra.mxu0 0.0
    %3078 = vmatprep.subr.mxu0 0.0
    %3079 = vmatpush1.msra.mxu0 0.0
    %3080 = vmatprep.subr.mxu0 0.0
    %3081 = vmatpush1.msra.mxu0 0.0
    %3082 = vmatprep.subr.mxu0 0.0
    %3083 = vmatpush1.msra.mxu0 0.0
    %3084 = vmatprep.subr.mxu0 0.0
    %3085 = vmatpush1.msra.mxu0 0.0
    %3086 = vmatprep.subr.mxu0 0.0
    %3087 = vmatpush1.msra.mxu0 0.0
    %3088 = vmatprep.subr.mxu0 0.0
    %3089 = vmatpush1.msra.mxu0 0.0
    %3090 = vmatprep.subr.mxu0 0.0
    %3091 = vmatpush1.msra.mxu0 0.0
    %3092 = vmatprep.subr.mxu0 0.0
    %3093 = vmatpush1.msra.mxu0 0.0
    %3094 = vmatprep.subr.mxu0 0.0
    %3095 = vmatpush1.msra.mxu0 0.0
    %3096 = vmatprep.subr.mxu0 0.0
    %3097 = vmatpush1.msra.mxu0 0.0
    %3098 = vmatprep.subr.mxu0 0.0
    %3099 = vmatpush1.msra.mxu0 0.0
    %3100 = vmatprep.subr.mxu0 0.0
    %3101 = vmatpush1.msra.mxu0 0.0
    %3102 = vmatprep.subr.mxu0 0.0
    %3103 = vmatpush1.msra.mxu0 0.0
    %3104 = vmatprep.subr.mxu0 0.0
    %3105 = vmatpush1.msra.mxu0 0.0
    %3106 = vmatprep.subr.mxu0 0.0
    %3107 = vmatpush1.msra.mxu0 0.0
    %3108 = vmatprep.subr.mxu0 0.0
    %3109 = vmatpush1.msra.mxu0 0.0
    %3110 = vmatprep.subr.mxu0 0.0
    %3111 = vmatpush1.msra.mxu0 0.0
    %3112 = vmatprep.subr.mxu0 0.0
    %3113 = vmatpush1.msra.mxu0 0.0
    %3114 = vmatprep.subr.mxu0 0.0
    %3115 = vmatpush1.msra.mxu0 0.0
    %3116 = vmatprep.subr.mxu0 0.0
    %3117 = vmatpush1.msra.mxu0 0.0
    %3118 = vmatprep.subr.mxu0 0.0
    %3119 = vmatpush1.msra.mxu0 0.0
    %3120 = vmatprep.subr.mxu0 0.0
    %3121 = vmatpush1.msra.mxu0 0.0
    %3122 = vmatprep.mubr.f32.mxu0 0.0
    %3123 = vmatmul.mubr.f32.gmra.mrb[0].mxu0 %v3053
    %v3124 = vpop.f32.mrb[0].mxu0
    %v3125 = vadd.f32 %v3046, %v3124
    %v3126 = vpop.f32.mrb[0].mxu0
    %3127 = vmatprep.mubr.f32.mxu0 0.0
    %3128 = vmatmul.mubr.f32.gmra.mrb[0].mxu0 %v3056
    %v3129 = vpop.f32.mrb[0].mxu0
    %v3130 = vadd.f32 %v3050, %v3129
    %v3131 = vpop.f32.mrb[0].mxu0
    %3132 = vdwg.mxu0
    %3134 = vset.pattern.permute.xlu0 0
    %3135 = vperm.xlu0 %3134, %v3125
    %v3136 = vpop.permute.xlu0 %3135
    %3139 = vset.pattern.permute.xlu0 0
    %3140 = vperm.xlu0 %3139, %v3130
    %v3141 = vpop.permute.xlu0 %3140
    %3143 = vset.pattern.permute.xlu0 1
    %3144 = vperm.xlu0 %3143, %v3125
    %v3145 = vpop.permute.xlu0 %3144
    %3147 = vset.pattern.permute.xlu0 1
    %3148 = vperm.xlu0 %3147, %v3130
    %v3149 = vpop.permute.xlu0 %3148
    %v3151 = vmul.f32 %v3016, %v3136
    %v3152 = vmul.f32 %v3017, %v3136
    %v3153 = vmul.f32 %v3018, %v3145
    %v3154 = vmul.f32 %v3019, %v3145
    %v3155 = vmul.f32 %v3020, %v3141
    %v3156 = vmul.f32 %v3021, %v3141
    %v3157 = vmul.f32 %v3022, %v3149
    %v3158 = vmul.f32 %v3023, %v3149
    %3159 = vset.pattern.permute.xlu0 7
    %3160 = vperm.xlu0 %3159, %v50
    %v3161 = vpop.permute.xlu0 %3160
    %3163 = vset.pattern.permute.xlu0 7
    %3164 = vperm.xlu0 %3163, %v51
    %v3165 = vpop.permute.xlu0 %3164
    %v3168 = vsel %vm938, %v66, 0
    %v3171 = vsel %vm938, %v67, 0
    %3173 = vmatprep.subr.mxu0 %v3152
    %3174 = vmatpush1.msra.mxu0 %v3151
    %3175 = vmatprep.subr.mxu0 %v3156
    %3176 = vmatpush1.msra.mxu0 %v3155
    %3177 = vmatprep.subr.mxu0 0.0
    %3178 = vmatpush1.msra.mxu0 0.0
    %3179 = vmatprep.subr.mxu0 0.0
    %3180 = vmatpush1.msra.mxu0 0.0
    %3181 = vmatprep.subr.mxu0 0.0
    %3182 = vmatpush1.msra.mxu0 0.0
    %3183 = vmatprep.subr.mxu0 0.0
    %3184 = vmatpush1.msra.mxu0 0.0
    %3185 = vmatprep.subr.mxu0 0.0
    %3186 = vmatpush1.msra.mxu0 0.0
    %3187 = vmatprep.subr.mxu0 0.0
    %3188 = vmatpush1.msra.mxu0 0.0
    %3189 = vmatprep.subr.mxu0 0.0
    %3190 = vmatpush1.msra.mxu0 0.0
    %3191 = vmatprep.subr.mxu0 0.0
    %3192 = vmatpush1.msra.mxu0 0.0
    %3193 = vmatprep.subr.mxu0 0.0
    %3194 = vmatpush1.msra.mxu0 0.0
    %3195 = vmatprep.subr.mxu0 0.0
    %3196 = vmatpush1.msra.mxu0 0.0
    %3197 = vmatprep.subr.mxu0 0.0
    %3198 = vmatpush1.msra.mxu0 0.0
    %3199 = vmatprep.subr.mxu0 0.0
    %3200 = vmatpush1.msra.mxu0 0.0
    %3201 = vmatprep.subr.mxu0 0.0
    %3202 = vmatpush1.msra.mxu0 0.0
    %3203 = vmatprep.subr.mxu0 0.0
    %3204 = vmatpush1.msra.mxu0 0.0
    %3205 = vmatprep.subr.mxu0 0.0
    %3206 = vmatpush1.msra.mxu0 0.0
    %3207 = vmatprep.subr.mxu0 0.0
    %3208 = vmatpush1.msra.mxu0 0.0
    %3209 = vmatprep.subr.mxu0 0.0
    %3210 = vmatpush1.msra.mxu0 0.0
    %3211 = vmatprep.subr.mxu0 0.0
    %3212 = vmatpush1.msra.mxu0 0.0
    %3213 = vmatprep.subr.mxu0 0.0
    %3214 = vmatpush1.msra.mxu0 0.0
    %3215 = vmatprep.subr.mxu0 0.0
    %3216 = vmatpush1.msra.mxu0 0.0
    %3217 = vmatprep.subr.mxu0 0.0
    %3218 = vmatpush1.msra.mxu0 0.0
    %3219 = vmatprep.subr.mxu0 0.0
    %3220 = vmatpush1.msra.mxu0 0.0
    %3221 = vmatprep.subr.mxu0 0.0
    %3222 = vmatpush1.msra.mxu0 0.0
    %3223 = vmatprep.subr.mxu0 0.0
    %3224 = vmatpush1.msra.mxu0 0.0
    %3225 = vmatprep.subr.mxu0 0.0
    %3226 = vmatpush1.msra.mxu0 0.0
    %3227 = vmatprep.subr.mxu0 0.0
    %3228 = vmatpush1.msra.mxu0 0.0
    %3229 = vmatprep.subr.mxu0 0.0
    %3230 = vmatpush1.msra.mxu0 0.0
    %3231 = vmatprep.subr.mxu0 0.0
    %3232 = vmatpush1.msra.mxu0 0.0
    %3233 = vmatprep.subr.mxu0 0.0
    %3234 = vmatpush1.msra.mxu0 0.0
    %3235 = vmatprep.subr.mxu0 0.0
    %3236 = vmatpush1.msra.mxu0 0.0
    %3237 = vmatprep.mubr.f32.mxu0 0.0
    %3238 = vmatmul.mubr.f32.gmra.mrb[0].mxu0 %v3168
    %v3239 = vpop.f32.mrb[0].mxu0
    %v3240 = vadd.f32 %v3161, %v3239
    %v3241 = vpop.f32.mrb[0].mxu0
    %v3242 = vadd.f32 %v3161, %v3241
    %3243 = vmatprep.mubr.f32.mxu0 0.0
    %3244 = vmatmul.mubr.f32.gmra.mrb[0].mxu0 %v3171
    %v3245 = vpop.f32.mrb[0].mxu0
    %v3246 = vadd.f32 %v3165, %v3245
    %v3247 = vpop.f32.mrb[0].mxu0
    %v3248 = vadd.f32 %v3165, %v3247
    %3249 = vdwg.mxu0
    %3250 = vmatprep.subr.mxu0 %v3154
    %3251 = vmatpush1.msra.mxu0 %v3153
    %3252 = vmatprep.subr.mxu0 %v3158
    %3253 = vmatpush1.msra.mxu0 %v3157
    %3254 = vmatprep.subr.mxu0 0.0
    %3255 = vmatpush1.msra.mxu0 0.0
    %3256 = vmatprep.subr.mxu0 0.0
    %3257 = vmatpush1.msra.mxu0 0.0
    %3258 = vmatprep.subr.mxu0 0.0
    %3259 = vmatpush1.msra.mxu0 0.0
    %3260 = vmatprep.subr.mxu0 0.0
    %3261 = vmatpush1.msra.mxu0 0.0
    %3262 = vmatprep.subr.mxu0 0.0
    %3263 = vmatpush1.msra.mxu0 0.0
    %3264 = vmatprep.subr.mxu0 0.0
    %3265 = vmatpush1.msra.mxu0 0.0
    %3266 = vmatprep.subr.mxu0 0.0
    %3267 = vmatpush1.msra.mxu0 0.0
    %3268 = vmatprep.subr.mxu0 0.0
    %3269 = vmatpush1.msra.mxu0 0.0
    %3270 = vmatprep.subr.mxu0 0.0
    %3271 = vmatpush1.msra.mxu0 0.0
    %3272 = vmatprep.subr.mxu0 0.0
    %3273 = vmatpush1.msra.mxu0 0.0
    %3274 = vmatprep.subr.mxu0 0.0
    %3275 = vmatpush1.msra.mxu0 0.0
    %3276 = vmatprep.subr.mxu0 0.0
    %3277 = vmatpush1.msra.mxu0 0.0
    %3278 = vmatprep.subr.mxu0 0.0
    %3279 = vmatpush1.msra.mxu0 0.0
    %3280 = vmatprep.subr.mxu0 0.0
    %3281 = vmatpush1.msra.mxu0 0.0
    %3282 = vmatprep.subr.mxu0 0.0
    %3283 = vmatpush1.msra.mxu0 0.0
    %3284 = vmatprep.subr.mxu0 0.0
    %3285 = vmatpush1.msra.mxu0 0.0
    %3286 = vmatprep.subr.mxu0 0.0
    %3287 = vmatpush1.msra.mxu0 0.0
    %3288 = vmatprep.subr.mxu0 0.0
    %3289 = vmatpush1.msra.mxu0 0.0
    %3290 = vmatprep.subr.mxu0 0.0
    %3291 = vmatpush1.msra.mxu0 0.0
    %3292 = vmatprep.subr.mxu0 0.0
    %3293 = vmatpush1.msra.mxu0 0.0
    %3294 = vmatprep.subr.mxu0 0.0
    %3295 = vmatpush1.msra.mxu0 0.0
    %3296 = vmatprep.subr.mxu0 0.0
    %3297 = vmatpush1.msra.mxu0 0.0
    %3298 = vmatprep.subr.mxu0 0.0
    %3299 = vmatpush1.msra.mxu0 0.0
    %3300 = vmatprep.subr.mxu0 0.0
    %3301 = vmatpush1.msra.mxu0 0.0
    %3302 = vmatprep.subr.mxu0 0.0
    %3303 = vmatpush1.msra.mxu0 0.0
    %3304 = vmatprep.subr.mxu0 0.0
    %3305 = vmatpush1.msra.mxu0 0.0
    %3306 = vmatprep.subr.mxu0 0.0
    %3307 = vmatpush1.msra.mxu0 0.0
    %3308 = vmatprep.subr.mxu0 0.0
    %3309 = vmatpush1.msra.mxu0 0.0
    %3310 = vmatprep.subr.mxu0 0.0
    %3311 = vmatpush1.msra.mxu0 0.0
    %3312 = vmatprep.subr.mxu0 0.0
    %3313 = vmatpush1.msra.mxu0 0.0
    %3314 = vmatprep.mubr.f32.mxu0 0.0
    %3315 = vmatmul.mubr.f32.gmra.mrb[0].mxu0 %v3168
    %v3316 = vpop.f32.mrb[0].mxu0
    %v3317 = vadd.f32 %v3161, %v3316
    %v3318 = vpop.f32.mrb[0].mxu0
    %v3319 = vadd.f32 %v3161, %v3318
    %3320 = vmatprep.mubr.f32.mxu0 0.0
    %3321 = vmatmul.mubr.f32.gmra.mrb[0].mxu0 %v3171
    %v3322 = vpop.f32.mrb[0].mxu0
    %v3323 = vadd.f32 %v3165, %v3322
    %v3324 = vpop.f32.mrb[0].mxu0
    %v3325 = vadd.f32 %v3165, %v3324
    %3326 = vdwg.mxu0
    %3327 = vset.pattern.permute.xlu0 8
    %3328 = vperm.xlu0 %3327, %v50
    %v3329 = vpop.permute.xlu0 %3328
    %3331 = vset.pattern.permute.xlu0 8
    %3332 = vperm.xlu0 %3331, %v51
    %v3333 = vpop.permute.xlu0 %3332
    %v3335 = vmul.f32 %v3240, %v3329
    %v3336 = vmul.f32 %v3242, %v3329
    %v3337 = vmul.f32 %v3317, %v3329
    %v3338 = vmul.f32 %v3319, %v3329
    %v3339 = vmul.f32 %v3246, %v3333
    %v3340 = vmul.f32 %v3248, %v3333
    %v3341 = vmul.f32 %v3323, %v3333
    %v3342 = vmul.f32 %v3325, %v3333
    %v3343 = vadd.f32 %v783, %v3335
    %v3344 = vadd.f32 %v784, %v3336
    %v3345 = vadd.f32 %v785, %v3337
    %v3346 = vadd.f32 %v786, %v3338
    %v3347 = vadd.f32 %v787, %v3339
    %v3348 = vadd.f32 %v788, %v3340
    %v3349 = vadd.f32 %v789, %v3341
    %v3350 = vadd.f32 %v790, %v3342
    %v3351 = vadd.f32 %v3343, %v3347
    %v3352 = vrot.slane %v3351, 4
    %v3353 = vadd.f32 %v3351, %v3352
    %v3354 = vrot.slane %v3353, 2
    %v3355 = vadd.f32 %v3353, %v3354
    %v3356 = vrot.slane %v3355, 1
    %v3357 = vadd.f32 %v3355, %v3356
    %v3358 = vadd.f32 %v3344, %v3348
    %v3359 = vrot.slane %v3358, 4
    %v3360 = vadd.f32 %v3358, %v3359
    %v3361 = vrot.slane %v3360, 2
    %v3362 = vadd.f32 %v3360, %v3361
    %v3363 = vrot.slane %v3362, 1
    %v3364 = vadd.f32 %v3362, %v3363
    %v3365 = vadd.f32 %v3345, %v3349
    %v3366 = vrot.slane %v3365, 4
    %v3367 = vadd.f32 %v3365, %v3366
    %v3368 = vrot.slane %v3367, 2
    %v3369 = vadd.f32 %v3367, %v3368
    %v3370 = vrot.slane %v3369, 1
    %v3371 = vadd.f32 %v3369, %v3370
    %v3372 = vadd.f32 %v3346, %v3350
    %v3373 = vrot.slane %v3372, 4
    %v3374 = vadd.f32 %v3372, %v3373
    %v3375 = vrot.slane %v3374, 2
    %v3376 = vadd.f32 %v3374, %v3375
    %v3377 = vrot.slane %v3376, 1
    %v3378 = vadd.f32 %v3376, %v3377
    %v3379 = vmul.f32 %v3357, %v819
    %v3380 = vmul.f32 %v3364, %v819
    %v3381 = vmul.f32 %v3371, %v819
    %v3382 = vmul.f32 %v3378, %v819
    %v3383 = vsub.f32 %v3343, %v3379
    %v3384 = vsub.f32 %v3344, %v3380
    %v3385 = vsub.f32 %v3345, %v3381
    %v3386 = vsub.f32 %v3346, %v3382
    %v3387 = vsub.f32 %v3347, %v3379
    %v3388 = vsub.f32 %v3348, %v3380
    %v3389 = vsub.f32 %v3349, %v3381
    %v3390 = vsub.f32 %v3350, %v3382
    %v3391 = vmul.f32 %v3383, %v3383
    %v3392 = vmul.f32 %v3384, %v3384
    %v3393 = vmul.f32 %v3385, %v3385
    %v3394 = vmul.f32 %v3386, %v3386
    %v3395 = vmul.f32 %v3387, %v3387
    %v3396 = vmul.f32 %v3388, %v3388
    %v3397 = vmul.f32 %v3389, %v3389
    %v3398 = vmul.f32 %v3390, %v3390
    %v3399 = vadd.f32 %v3391, %v3395
    %v3400 = vrot.slane %v3399, 4
    %v3401 = vadd.f32 %v3399, %v3400
    %v3402 = vrot.slane %v3401, 2
    %v3403 = vadd.f32 %v3401, %v3402
    %v3404 = vrot.slane %v3403, 1
    %v3405 = vadd.f32 %v3403, %v3404
    %v3406 = vadd.f32 %v3392, %v3396
    %v3407 = vrot.slane %v3406, 4
    %v3408 = vadd.f32 %v3406, %v3407
    %v3409 = vrot.slane %v3408, 2
    %v3410 = vadd.f32 %v3408, %v3409
    %v3411 = vrot.slane %v3410, 1
    %v3412 = vadd.f32 %v3410, %v3411
    %v3413 = vadd.f32 %v3393, %v3397
    %v3414 = vrot.slane %v3413, 4
    %v3415 = vadd.f32 %v3413, %v3414
    %v3416 = vrot.slane %v3415, 2
    %v3417 = vadd.f32 %v3415, %v3416
    %v3418 = vrot.slane %v3417, 1
    %v3419 = vadd.f32 %v3417, %v3418
    %v3420 = vadd.f32 %v3394, %v3398
    %v3421 = vrot.slane %v3420, 4
    %v3422 = vadd.f32 %v3420, %v3421
    %v3423 = vrot.slane %v3422, 2
    %v3424 = vadd.f32 %v3422, %v3423
    %v3425 = vrot.slane %v3424, 1
    %v3426 = vadd.f32 %v3424, %v3425
    %v3427 = vmul.f32 %v3405, %v819
    %v3428 = vmul.f32 %v3412, %v819
    %v3429 = vmul.f32 %v3419, %v819
    %v3430 = vmul.f32 %v3426, %v819
    %v3431 = vadd.f32 %v3427, 1e-06
    %v3432 = vadd.f32 %v3428, 1e-06
    %v3433 = vadd.f32 %v3429, 1e-06
    %v3434 = vadd.f32 %v3430, 1e-06
    %v3435 = vrsqrt.pop %v3431
    %v3436 = vrsqrt.pop %v3432
    %v3437 = vrsqrt.pop %v3433
    %v3438 = vrsqrt.pop %v3434
    %v3439 = vmul.f32 %v3383, %v3435
    %v3440 = vmul.f32 %v3384, %v3436
    %v3441 = vmul.f32 %v3385, %v3437
    %v3442 = vmul.f32 %v3386, %v3438
    %v3443 = vmul.f32 %v3387, %v3435
    %v3444 = vmul.f32 %v3388, %v3436
    %v3445 = vmul.f32 %v3389, %v3437
    %v3446 = vmul.f32 %v3390, %v3438
    %3447 = vset.pattern.permute.xlu0 9
    %3448 = vperm.xlu0 %3447, %v50
    %v3449 = vpop.permute.xlu0 %3448
    %3451 = vset.pattern.permute.xlu0 9
    %3452 = vperm.xlu0 %3451, %v51
    %v3453 = vpop.permute.xlu0 %3452
    %v3455 = vmul.f32 %v3439, %v3449
    %v3456 = vmul.f32 %v3440, %v3449
    %v3457 = vmul.f32 %v3441, %v3449
    %v3458 = vmul.f32 %v3442, %v3449
    %v3459 = vmul.f32 %v3443, %v3453
    %v3460 = vmul.f32 %v3444, %v3453
    %v3461 = vmul.f32 %v3445, %v3453
    %v3462 = vmul.f32 %v3446, %v3453
    %3463 = vset.pattern.permute.xlu0 10
    %3464 = vperm.xlu0 %3463, %v50
    %v3465 = vpop.permute.xlu0 %3464
    %3467 = vset.pattern.permute.xlu0 10
    %3468 = vperm.xlu0 %3467, %v51
    %v3469 = vpop.permute.xlu0 %3468
    %v3471 = vadd.f32 %v3455, %v3465
    %v3472 = vadd.f32 %v3456, %v3465
    %v3473 = vadd.f32 %v3457, %v3465
    %v3474 = vadd.f32 %v3458, %v3465
    %v3475 = vadd.f32 %v3459, %v3469
    %v3476 = vadd.f32 %v3460, %v3469
    %v3477 = vadd.f32 %v3461, %v3469
    %v3478 = vadd.f32 %v3462, %v3469
    %3479 = vset.pattern.permute.xlu0 11
    %3480 = vperm.xlu0 %3479, %v50
    %v3481 = vpop.permute.xlu0 %3480
    %3483 = vset.pattern.permute.xlu0 11
    %3484 = vperm.xlu0 %3483, %v51
    %v3485 = vpop.permute.xlu0 %3484
    %3487 = vset.pattern.permute.xlu0 11
    %3488 = vperm.xlu0 %3487, %v52
    %v3489 = vpop.permute.xlu0 %3488
    %3491 = vset.pattern.permute.xlu0 11
    %3492 = vperm.xlu0 %3491, %v53
    %v3493 = vpop.permute.xlu0 %3492
    %v3496 = vsel %vm938, %v68, 0
    %v3499 = vsel %vm938, %v69, 0
    %v3502 = vsel %vm938, %v70, 0
    %v3505 = vsel %vm938, %v71, 0
    %3507 = vmatprep.subr.mxu0 %v3472
    %3508 = vmatpush1.msra.mxu0 %v3471
    %3509 = vmatprep.subr.mxu0 %v3476
    %3510 = vmatpush1.msra.mxu0 %v3475
    %3511 = vmatprep.subr.mxu0 0.0
    %3512 = vmatpush1.msra.mxu0 0.0
    %3513 = vmatprep.subr.mxu0 0.0
    %3514 = vmatpush1.msra.mxu0 0.0
    %3515 = vmatprep.subr.mxu0 0.0
    %3516 = vmatpush1.msra.mxu0 0.0
    %3517 = vmatprep.subr.mxu0 0.0
    %3518 = vmatpush1.msra.mxu0 0.0
    %3519 = vmatprep.subr.mxu0 0.0
    %3520 = vmatpush1.msra.mxu0 0.0
    %3521 = vmatprep.subr.mxu0 0.0
    %3522 = vmatpush1.msra.mxu0 0.0
    %3523 = vmatprep.subr.mxu0 0.0
    %3524 = vmatpush1.msra.mxu0 0.0
    %3525 = vmatprep.subr.mxu0 0.0
    %3526 = vmatpush1.msra.mxu0 0.0
    %3527 = vmatprep.subr.mxu0 0.0
    %3528 = vmatpush1.msra.mxu0 0.0
    %3529 = vmatprep.subr.mxu0 0.0
    %3530 = vmatpush1.msra.mxu0 0.0
    %3531 = vmatprep.subr.mxu0 0.0
    %3532 = vmatpush1.msra.mxu0 0.0
    %3533 = vmatprep.subr.mxu0 0.0
    %3534 = vmatpush1.msra.mxu0 0.0
    %3535 = vmatprep.subr.mxu0 0.0
    %3536 = vmatpush1.msra.mxu0 0.0
    %3537 = vmatprep.subr.mxu0 0.0
    %3538 = vmatpush1.msra.mxu0 0.0
    %3539 = vmatprep.subr.mxu0 0.0
    %3540 = vmatpush1.msra.mxu0 0.0
    %3541 = vmatprep.subr.mxu0 0.0
    %3542 = vmatpush1.msra.mxu0 0.0
    %3543 = vmatprep.subr.mxu0 0.0
    %3544 = vmatpush1.msra.mxu0 0.0
    %3545 = vmatprep.subr.mxu0 0.0
    %3546 = vmatpush1.msra.mxu0 0.0
    %3547 = vmatprep.subr.mxu0 0.0
    %3548 = vmatpush1.msra.mxu0 0.0
    %3549 = vmatprep.subr.mxu0 0.0
    %3550 = vmatpush1.msra.mxu0 0.0
    %3551 = vmatprep.subr.mxu0 0.0
    %3552 = vmatpush1.msra.mxu0 0.0
    %3553 = vmatprep.subr.mxu0 0.0
    %3554 = vmatpush1.msra.mxu0 0.0
    %3555 = vmatprep.subr.mxu0 0.0
    %3556 = vmatpush1.msra.mxu0 0.0
    %3557 = vmatprep.subr.mxu0 0.0
    %3558 = vmatpush1.msra.mxu0 0.0
    %3559 = vmatprep.subr.mxu0 0.0
    %3560 = vmatpush1.msra.mxu0 0.0
    %3561 = vmatprep.subr.mxu0 0.0
    %3562 = vmatpush1.msra.mxu0 0.0
    %3563 = vmatprep.subr.mxu0 0.0
    %3564 = vmatpush1.msra.mxu0 0.0
    %3565 = vmatprep.subr.mxu0 0.0
    %3566 = vmatpush1.msra.mxu0 0.0
    %3567 = vmatprep.subr.mxu0 0.0
    %3568 = vmatpush1.msra.mxu0 0.0
    %3569 = vmatprep.subr.mxu0 0.0
    %3570 = vmatpush1.msra.mxu0 0.0
    %3571 = vmatprep.mubr.f32.mxu0 0.0
    %3572 = vmatmul.mubr.f32.gmra.mrb[0].mxu0 %v3496
    %v3573 = vpop.f32.mrb[0].mxu0
    %v3574 = vadd.f32 %v3481, %v3573
    %v3575 = vpop.f32.mrb[0].mxu0
    %v3576 = vadd.f32 %v3481, %v3575
    %3577 = vmatprep.mubr.f32.mxu0 0.0
    %3578 = vmatmul.mubr.f32.gmra.mrb[0].mxu0 %v3499
    %v3579 = vpop.f32.mrb[0].mxu0
    %v3580 = vadd.f32 %v3485, %v3579
    %v3581 = vpop.f32.mrb[0].mxu0
    %v3582 = vadd.f32 %v3485, %v3581
    %3583 = vmatprep.mubr.f32.mxu0 0.0
    %3584 = vmatmul.mubr.f32.gmra.mrb[0].mxu0 %v3502
    %v3585 = vpop.f32.mrb[0].mxu0
    %v3586 = vadd.f32 %v3489, %v3585
    %v3587 = vpop.f32.mrb[0].mxu0
    %v3588 = vadd.f32 %v3489, %v3587
    %3589 = vmatprep.mubr.f32.mxu0 0.0
    %3590 = vmatmul.mubr.f32.gmra.mrb[0].mxu0 %v3505
    %v3591 = vpop.f32.mrb[0].mxu0
    %v3592 = vadd.f32 %v3493, %v3591
    %v3593 = vpop.f32.mrb[0].mxu0
    %v3594 = vadd.f32 %v3493, %v3593
    %3595 = vdwg.mxu0
    %3596 = vmatprep.subr.mxu0 %v3474
    %3597 = vmatpush1.msra.mxu0 %v3473
    %3598 = vmatprep.subr.mxu0 %v3478
    %3599 = vmatpush1.msra.mxu0 %v3477
    %3600 = vmatprep.subr.mxu0 0.0
    %3601 = vmatpush1.msra.mxu0 0.0
    %3602 = vmatprep.subr.mxu0 0.0
    %3603 = vmatpush1.msra.mxu0 0.0
    %3604 = vmatprep.subr.mxu0 0.0
    %3605 = vmatpush1.msra.mxu0 0.0
    %3606 = vmatprep.subr.mxu0 0.0
    %3607 = vmatpush1.msra.mxu0 0.0
    %3608 = vmatprep.subr.mxu0 0.0
    %3609 = vmatpush1.msra.mxu0 0.0
    %3610 = vmatprep.subr.mxu0 0.0
    %3611 = vmatpush1.msra.mxu0 0.0
    %3612 = vmatprep.subr.mxu0 0.0
    %3613 = vmatpush1.msra.mxu0 0.0
    %3614 = vmatprep.subr.mxu0 0.0
    %3615 = vmatpush1.msra.mxu0 0.0
    %3616 = vmatprep.subr.mxu0 0.0
    %3617 = vmatpush1.msra.mxu0 0.0
    %3618 = vmatprep.subr.mxu0 0.0
    %3619 = vmatpush1.msra.mxu0 0.0
    %3620 = vmatprep.subr.mxu0 0.0
    %3621 = vmatpush1.msra.mxu0 0.0
    %3622 = vmatprep.subr.mxu0 0.0
    %3623 = vmatpush1.msra.mxu0 0.0
    %3624 = vmatprep.subr.mxu0 0.0
    %3625 = vmatpush1.msra.mxu0 0.0
    %3626 = vmatprep.subr.mxu0 0.0
    %3627 = vmatpush1.msra.mxu0 0.0
    %3628 = vmatprep.subr.mxu0 0.0
    %3629 = vmatpush1.msra.mxu0 0.0
    %3630 = vmatprep.subr.mxu0 0.0
    %3631 = vmatpush1.msra.mxu0 0.0
    %3632 = vmatprep.subr.mxu0 0.0
    %3633 = vmatpush1.msra.mxu0 0.0
    %3634 = vmatprep.subr.mxu0 0.0
    %3635 = vmatpush1.msra.mxu0 0.0
    %3636 = vmatprep.subr.mxu0 0.0
    %3637 = vmatpush1.msra.mxu0 0.0
    %3638 = vmatprep.subr.mxu0 0.0
    %3639 = vmatpush1.msra.mxu0 0.0
    %3640 = vmatprep.subr.mxu0 0.0
    %3641 = vmatpush1.msra.mxu0 0.0
    %3642 = vmatprep.subr.mxu0 0.0
    %3643 = vmatpush1.msra.mxu0 0.0
    %3644 = vmatprep.subr.mxu0 0.0
    %3645 = vmatpush1.msra.mxu0 0.0
    %3646 = vmatprep.subr.mxu0 0.0
    %3647 = vmatpush1.msra.mxu0 0.0
    %3648 = vmatprep.subr.mxu0 0.0
    %3649 = vmatpush1.msra.mxu0 0.0
    %3650 = vmatprep.subr.mxu0 0.0
    %3651 = vmatpush1.msra.mxu0 0.0
    %3652 = vmatprep.subr.mxu0 0.0
    %3653 = vmatpush1.msra.mxu0 0.0
    %3654 = vmatprep.subr.mxu0 0.0
    %3655 = vmatpush1.msra.mxu0 0.0
    %3656 = vmatprep.subr.mxu0 0.0
    %3657 = vmatpush1.msra.mxu0 0.0
    %3658 = vmatprep.subr.mxu0 0.0
    %3659 = vmatpush1.msra.mxu0 0.0
    %3660 = vmatprep.mubr.f32.mxu0 0.0
    %3661 = vmatmul.mubr.f32.gmra.mrb[0].mxu0 %v3496
    %v3662 = vpop.f32.mrb[0].mxu0
    %v3663 = vadd.f32 %v3481, %v3662
    %v3664 = vpop.f32.mrb[0].mxu0
    %v3665 = vadd.f32 %v3481, %v3664
    %3666 = vmatprep.mubr.f32.mxu0 0.0
    %3667 = vmatmul.mubr.f32.gmra.mrb[0].mxu0 %v3499
    %v3668 = vpop.f32.mrb[0].mxu0
    %v3669 = vadd.f32 %v3485, %v3668
    %v3670 = vpop.f32.mrb[0].mxu0
    %v3671 = vadd.f32 %v3485, %v3670
    %3672 = vmatprep.mubr.f32.mxu0 0.0
    %3673 = vmatmul.mubr.f32.gmra.mrb[0].mxu0 %v3502
    %v3674 = vpop.f32.mrb[0].mxu0
    %v3675 = vadd.f32 %v3489, %v3674
    %v3676 = vpop.f32.mrb[0].mxu0
    %v3677 = vadd.f32 %v3489, %v3676
    %3678 = vmatprep.mubr.f32.mxu0 0.0
    %3679 = vmatmul.mubr.f32.gmra.mrb[0].mxu0 %v3505
    %v3680 = vpop.f32.mrb[0].mxu0
    %v3681 = vadd.f32 %v3493, %v3680
    %v3682 = vpop.f32.mrb[0].mxu0
    %v3683 = vadd.f32 %v3493, %v3682
    %3684 = vdwg.mxu0
    %v3685 = vmul.f32 %v3574, %v3586
    %v3686 = vmul.f32 %v3576, %v3588
    %v3687 = vmul.f32 %v3663, %v3675
    %v3688 = vmul.f32 %v3665, %v3677
    %v3689 = vmul.f32 %v3580, %v3592
    %v3690 = vmul.f32 %v3582, %v3594
    %v3691 = vmul.f32 %v3669, %v3681
    %v3692 = vmul.f32 %v3671, %v3683
    %3693 = vset.pattern.permute.xlu0 12
    %3694 = vperm.xlu0 %3693, %v50
    %v3695 = vpop.permute.xlu0 %3694
    %3697 = vset.pattern.permute.xlu0 12
    %3698 = vperm.xlu0 %3697, %v51
    %v3699 = vpop.permute.xlu0 %3698
    %v3702 = vsel %vm938, %v72, 0
    %v3705 = vsel %vm938, %v73, 0
    %3707 = vmatprep.subr.mxu0 %v3686
    %3708 = vmatpush1.msra.mxu0 %v3685
    %3709 = vmatprep.subr.mxu0 %v3690
    %3710 = vmatpush1.msra.mxu0 %v3689
    %3711 = vmatprep.subr.mxu0 0.0
    %3712 = vmatpush1.msra.mxu0 0.0
    %3713 = vmatprep.subr.mxu0 0.0
    %3714 = vmatpush1.msra.mxu0 0.0
    %3715 = vmatprep.subr.mxu0 0.0
    %3716 = vmatpush1.msra.mxu0 0.0
    %3717 = vmatprep.subr.mxu0 0.0
    %3718 = vmatpush1.msra.mxu0 0.0
    %3719 = vmatprep.subr.mxu0 0.0
    %3720 = vmatpush1.msra.mxu0 0.0
    %3721 = vmatprep.subr.mxu0 0.0
    %3722 = vmatpush1.msra.mxu0 0.0
    %3723 = vmatprep.subr.mxu0 0.0
    %3724 = vmatpush1.msra.mxu0 0.0
    %3725 = vmatprep.subr.mxu0 0.0
    %3726 = vmatpush1.msra.mxu0 0.0
    %3727 = vmatprep.subr.mxu0 0.0
    %3728 = vmatpush1.msra.mxu0 0.0
    %3729 = vmatprep.subr.mxu0 0.0
    %3730 = vmatpush1.msra.mxu0 0.0
    %3731 = vmatprep.subr.mxu0 0.0
    %3732 = vmatpush1.msra.mxu0 0.0
    %3733 = vmatprep.subr.mxu0 0.0
    %3734 = vmatpush1.msra.mxu0 0.0
    %3735 = vmatprep.subr.mxu0 0.0
    %3736 = vmatpush1.msra.mxu0 0.0
    %3737 = vmatprep.subr.mxu0 0.0
    %3738 = vmatpush1.msra.mxu0 0.0
    %3739 = vmatprep.subr.mxu0 0.0
    %3740 = vmatpush1.msra.mxu0 0.0
    %3741 = vmatprep.subr.mxu0 0.0
    %3742 = vmatpush1.msra.mxu0 0.0
    %3743 = vmatprep.subr.mxu0 0.0
    %3744 = vmatpush1.msra.mxu0 0.0
    %3745 = vmatprep.subr.mxu0 0.0
    %3746 = vmatpush1.msra.mxu0 0.0
    %3747 = vmatprep.subr.mxu0 0.0
    %3748 = vmatpush1.msra.mxu0 0.0
    %3749 = vmatprep.subr.mxu0 0.0
    %3750 = vmatpush1.msra.mxu0 0.0
    %3751 = vmatprep.subr.mxu0 0.0
    %3752 = vmatpush1.msra.mxu0 0.0
    %3753 = vmatprep.subr.mxu0 0.0
    %3754 = vmatpush1.msra.mxu0 0.0
    %3755 = vmatprep.subr.mxu0 0.0
    %3756 = vmatpush1.msra.mxu0 0.0
    %3757 = vmatprep.subr.mxu0 0.0
    %3758 = vmatpush1.msra.mxu0 0.0
    %3759 = vmatprep.subr.mxu0 0.0
    %3760 = vmatpush1.msra.mxu0 0.0
    %3761 = vmatprep.subr.mxu0 0.0
    %3762 = vmatpush1.msra.mxu0 0.0
    %3763 = vmatprep.subr.mxu0 0.0
    %3764 = vmatpush1.msra.mxu0 0.0
    %3765 = vmatprep.subr.mxu0 0.0
    %3766 = vmatpush1.msra.mxu0 0.0
    %3767 = vmatprep.subr.mxu0 0.0
    %3768 = vmatpush1.msra.mxu0 0.0
    %3769 = vmatprep.subr.mxu0 0.0
    %3770 = vmatpush1.msra.mxu0 0.0
    %3771 = vmatprep.mubr.f32.mxu0 0.0
    %3772 = vmatmul.mubr.f32.gmra.mrb[0].mxu0 %v3702
    %v3773 = vpop.f32.mrb[0].mxu0
    %v3774 = vadd.f32 %v3695, %v3773
    %v3775 = vpop.f32.mrb[0].mxu0
    %v3776 = vadd.f32 %v3695, %v3775
    %3777 = vmatprep.mubr.f32.mxu0 0.0
    %3778 = vmatmul.mubr.f32.gmra.mrb[0].mxu0 %v3705
    %v3779 = vpop.f32.mrb[0].mxu0
    %v3780 = vadd.f32 %v3699, %v3779
    %v3781 = vpop.f32.mrb[0].mxu0
    %v3782 = vadd.f32 %v3699, %v3781
    %3783 = vdwg.mxu0
    %3784 = vmatprep.subr.mxu0 %v3688
    %3785 = vmatpush1.msra.mxu0 %v3687
    %3786 = vmatprep.subr.mxu0 %v3692
    %3787 = vmatpush1.msra.mxu0 %v3691
    %3788 = vmatprep.subr.mxu0 0.0
    %3789 = vmatpush1.msra.mxu0 0.0
    %3790 = vmatprep.subr.mxu0 0.0
    %3791 = vmatpush1.msra.mxu0 0.0
    %3792 = vmatprep.subr.mxu0 0.0
    %3793 = vmatpush1.msra.mxu0 0.0
    %3794 = vmatprep.subr.mxu0 0.0
    %3795 = vmatpush1.msra.mxu0 0.0
    %3796 = vmatprep.subr.mxu0 0.0
    %3797 = vmatpush1.msra.mxu0 0.0
    %3798 = vmatprep.subr.mxu0 0.0
    %3799 = vmatpush1.msra.mxu0 0.0
    %3800 = vmatprep.subr.mxu0 0.0
    %3801 = vmatpush1.msra.mxu0 0.0
    %3802 = vmatprep.subr.mxu0 0.0
    %3803 = vmatpush1.msra.mxu0 0.0
    %3804 = vmatprep.subr.mxu0 0.0
    %3805 = vmatpush1.msra.mxu0 0.0
    %3806 = vmatprep.subr.mxu0 0.0
    %3807 = vmatpush1.msra.mxu0 0.0
    %3808 = vmatprep.subr.mxu0 0.0
    %3809 = vmatpush1.msra.mxu0 0.0
    %3810 = vmatprep.subr.mxu0 0.0
    %3811 = vmatpush1.msra.mxu0 0.0
    %3812 = vmatprep.subr.mxu0 0.0
    %3813 = vmatpush1.msra.mxu0 0.0
    %3814 = vmatprep.subr.mxu0 0.0
    %3815 = vmatpush1.msra.mxu0 0.0
    %3816 = vmatprep.subr.mxu0 0.0
    %3817 = vmatpush1.msra.mxu0 0.0
    %3818 = vmatprep.subr.mxu0 0.0
    %3819 = vmatpush1.msra.mxu0 0.0
    %3820 = vmatprep.subr.mxu0 0.0
    %3821 = vmatpush1.msra.mxu0 0.0
    %3822 = vmatprep.subr.mxu0 0.0
    %3823 = vmatpush1.msra.mxu0 0.0
    %3824 = vmatprep.subr.mxu0 0.0
    %3825 = vmatpush1.msra.mxu0 0.0
    %3826 = vmatprep.subr.mxu0 0.0
    %3827 = vmatpush1.msra.mxu0 0.0
    %3828 = vmatprep.subr.mxu0 0.0
    %3829 = vmatpush1.msra.mxu0 0.0
    %3830 = vmatprep.subr.mxu0 0.0
    %3831 = vmatpush1.msra.mxu0 0.0
    %3832 = vmatprep.subr.mxu0 0.0
    %3833 = vmatpush1.msra.mxu0 0.0
    %3834 = vmatprep.subr.mxu0 0.0
    %3835 = vmatpush1.msra.mxu0 0.0
    %3836 = vmatprep.subr.mxu0 0.0
    %3837 = vmatpush1.msra.mxu0 0.0
    %3838 = vmatprep.subr.mxu0 0.0
    %3839 = vmatpush1.msra.mxu0 0.0
    %3840 = vmatprep.subr.mxu0 0.0
    %3841 = vmatpush1.msra.mxu0 0.0
    %3842 = vmatprep.subr.mxu0 0.0
    %3843 = vmatpush1.msra.mxu0 0.0
    %3844 = vmatprep.subr.mxu0 0.0
    %3845 = vmatpush1.msra.mxu0 0.0
    %3846 = vmatprep.subr.mxu0 0.0
    %3847 = vmatpush1.msra.mxu0 0.0
    %3848 = vmatprep.mubr.f32.mxu0 0.0
    %3849 = vmatmul.mubr.f32.gmra.mrb[0].mxu0 %v3702
    %v3850 = vpop.f32.mrb[0].mxu0
    %v3851 = vadd.f32 %v3695, %v3850
    %v3852 = vpop.f32.mrb[0].mxu0
    %v3853 = vadd.f32 %v3695, %v3852
    %3854 = vmatprep.mubr.f32.mxu0 0.0
    %3855 = vmatmul.mubr.f32.gmra.mrb[0].mxu0 %v3705
    %v3856 = vpop.f32.mrb[0].mxu0
    %v3857 = vadd.f32 %v3699, %v3856
    %v3858 = vpop.f32.mrb[0].mxu0
    %v3859 = vadd.f32 %v3699, %v3858
    %3860 = vdwg.mxu0
    %3861 = vset.pattern.permute.xlu0 13
    %3862 = vperm.xlu0 %3861, %v50
    %v3863 = vpop.permute.xlu0 %3862
    %3865 = vset.pattern.permute.xlu0 13
    %3866 = vperm.xlu0 %3865, %v51
    %v3867 = vpop.permute.xlu0 %3866
    %v3869 = vmul.f32 %v3774, %v3863
    %v3870 = vmul.f32 %v3776, %v3863
    %v3871 = vmul.f32 %v3851, %v3863
    %v3872 = vmul.f32 %v3853, %v3863
    %v3873 = vmul.f32 %v3780, %v3867
    %v3874 = vmul.f32 %v3782, %v3867
    %v3875 = vmul.f32 %v3857, %v3867
    %v3876 = vmul.f32 %v3859, %v3867
    %v3877 = vadd.f32 %v3343, %v3869
    %v3878 = vadd.f32 %v3344, %v3870
    %v3879 = vadd.f32 %v3345, %v3871
    %v3880 = vadd.f32 %v3346, %v3872
    %v3881 = vadd.f32 %v3347, %v3873
    %v3882 = vadd.f32 %v3348, %v3874
    %v3883 = vadd.f32 %v3349, %v3875
    %v3884 = vadd.f32 %v3350, %v3876
    %3885 = vrot.lane.b32.xlu0 %v3877, 16
    %v3886 = vpop.permute.xlu0 %3885
    %3887 = vrot.lane.b32.xlu0 %v3881, 16
    %v3888 = vpop.permute.xlu0 %3887
    %3889 = vrot.lane.b32.xlu0 %v3878, 16
    %v3890 = vpop.permute.xlu0 %3889
    %3891 = vrot.lane.b32.xlu0 %v3882, 16
    %v3892 = vpop.permute.xlu0 %3891
    %3893 = vrot.lane.b32.xlu0 %v3879, 16
    %v3894 = vpop.permute.xlu0 %3893
    %3895 = vrot.lane.b32.xlu0 %v3883, 16
    %v3896 = vpop.permute.xlu0 %3895
    %3897 = vrot.lane.b32.xlu0 %v3880, 16
    %v3898 = vpop.permute.xlu0 %3897
    %3899 = vrot.lane.b32.xlu0 %v3884, 16
    %v3900 = vpop.permute.xlu0 %3899
    %v3901 = vsel %vm88, %v3894, %v3898
    %v3902 = vsel %vm88, %v3896, %v3900
    %v3903 = vsel %vm88, %v3890, %v3894
    %v3904 = vsel %vm88, %v3892, %v3896
    %v3905 = vsel %vm88, %v3886, %v3890
    %v3906 = vsel %vm88, %v3888, %v3892
    %v3907 = vsel %vm88, %v3898, %v3886
    %v3908 = vsel %vm88, %v3900, %v3888
    %v3909 = vmul.f32 %v3907, %v96
    %v3910 = vmul.f32 %v3905, %v100
    %v3911 = vmul.f32 %v3903, %v104
    %v3912 = vmul.f32 %v3901, %v108
    %v3913 = vmul.f32 %v3908, %v96
    %v3914 = vmul.f32 %v3906, %v100
    %v3915 = vmul.f32 %v3904, %v104
    %v3916 = vmul.f32 %v3902, %v108
    %3917 = vrot.lane.b32.xlu0 %v3877, 112
    %v3918 = vpop.permute.xlu0 %3917
    %3919 = vrot.lane.b32.xlu0 %v3881, 112
    %v3920 = vpop.permute.xlu0 %3919
    %3921 = vrot.lane.b32.xlu0 %v3878, 112
    %v3922 = vpop.permute.xlu0 %3921
    %3923 = vrot.lane.b32.xlu0 %v3882, 112
    %v3924 = vpop.permute.xlu0 %3923
    %3925 = vrot.lane.b32.xlu0 %v3879, 112
    %v3926 = vpop.permute.xlu0 %3925
    %3927 = vrot.lane.b32.xlu0 %v3883, 112
    %v3928 = vpop.permute.xlu0 %3927
    %3929 = vrot.lane.b32.xlu0 %v3880, 112
    %v3930 = vpop.permute.xlu0 %3929
    %3931 = vrot.lane.b32.xlu0 %v3884, 112
    %v3932 = vpop.permute.xlu0 %3931
    %v3933 = vsel %vm121, %v3926, %v3930
    %v3934 = vsel %vm121, %v3928, %v3932
    %v3935 = vsel %vm121, %v3922, %v3926
    %v3936 = vsel %vm121, %v3924, %v3928
    %v3937 = vsel %vm121, %v3918, %v3922
    %v3938 = vsel %vm121, %v3920, %v3924
    %v3939 = vsel %vm121, %v3930, %v3918
    %v3940 = vsel %vm121, %v3932, %v3920
    %v3941 = vmul.f32 %v3937, %v129
    %v3942 = vmul.f32 %v3935, %v133
    %v3943 = vmul.f32 %v3933, %v137
    %v3944 = vmul.f32 %v3939, %v141
    %v3945 = vmul.f32 %v3938, %v129
    %v3946 = vmul.f32 %v3936, %v133
    %v3947 = vmul.f32 %v3934, %v137
    %v3948 = vmul.f32 %v3940, %v141
    %3949 = vrot.lane.b32.xlu0 %v3909, 1
    %v3950 = vpop.permute.xlu0 %3949
    %3951 = vrot.lane.b32.xlu0 %v3913, 1
    %v3952 = vpop.permute.xlu0 %3951
    %3953 = vrot.lane.b32.xlu0 %v3877, 1
    %v3954 = vpop.permute.xlu0 %3953
    %3955 = vrot.lane.b32.xlu0 %v3881, 1
    %v3956 = vpop.permute.xlu0 %3955
    %3957 = vrot.lane.b32.xlu0 %v3941, 1
    %v3958 = vpop.permute.xlu0 %3957
    %3959 = vrot.lane.b32.xlu0 %v3945, 1
    %v3960 = vpop.permute.xlu0 %3959
    %3961 = vrot.lane.b32.xlu0 %v3910, 1
    %v3962 = vpop.permute.xlu0 %3961
    %3963 = vrot.lane.b32.xlu0 %v3914, 1
    %v3964 = vpop.permute.xlu0 %3963
    %3965 = vrot.lane.b32.xlu0 %v3878, 1
    %v3966 = vpop.permute.xlu0 %3965
    %3967 = vrot.lane.b32.xlu0 %v3882, 1
    %v3968 = vpop.permute.xlu0 %3967
    %3969 = vrot.lane.b32.xlu0 %v3942, 1
    %v3970 = vpop.permute.xlu0 %3969
    %3971 = vrot.lane.b32.xlu0 %v3946, 1
    %v3972 = vpop.permute.xlu0 %3971
    %3973 = vrot.lane.b32.xlu0 %v3911, 1
    %v3974 = vpop.permute.xlu0 %3973
    %3975 = vrot.lane.b32.xlu0 %v3915, 1
    %v3976 = vpop.permute.xlu0 %3975
    %3977 = vrot.lane.b32.xlu0 %v3879, 1
    %v3978 = vpop.permute.xlu0 %3977
    %3979 = vrot.lane.b32.xlu0 %v3883, 1
    %v3980 = vpop.permute.xlu0 %3979
    %3981 = vrot.lane.b32.xlu0 %v3943, 1
    %v3982 = vpop.permute.xlu0 %3981
    %3983 = vrot.lane.b32.xlu0 %v3947, 1
    %v3984 = vpop.permute.xlu0 %3983
    %3985 = vrot.lane.b32.xlu0 %v3912, 1
    %v3986 = vpop.permute.xlu0 %3985
    %3987 = vrot.lane.b32.xlu0 %v3916, 1
    %v3988 = vpop.permute.xlu0 %3987
    %3989 = vrot.lane.b32.xlu0 %v3880, 1
    %v3990 = vpop.permute.xlu0 %3989
    %3991 = vrot.lane.b32.xlu0 %v3884, 1
    %v3992 = vpop.permute.xlu0 %3991
    %3993 = vrot.lane.b32.xlu0 %v3944, 1
    %v3994 = vpop.permute.xlu0 %3993
    %3995 = vrot.lane.b32.xlu0 %v3948, 1
    %v3996 = vpop.permute.xlu0 %3995
    %v3997 = vsel %vm170, %v3974, %v3986
    %v3998 = vsel %vm170, %v3976, %v3988
    %v3999 = vsel %vm170, %v3978, %v3990
    %v4000 = vsel %vm170, %v3980, %v3992
    %v4001 = vsel %vm170, %v3982, %v3994
    %v4002 = vsel %vm170, %v3984, %v3996
    %v4003 = vsel %vm170, %v3962, %v3974
    %v4004 = vsel %vm170, %v3964, %v3976
    %v4005 = vsel %vm170, %v3966, %v3978
    %v4006 = vsel %vm170, %v3968, %v3980
    %v4007 = vsel %vm170, %v3970, %v3982
    %v4008 = vsel %vm170, %v3972, %v3984
    %v4009 = vsel %vm170, %v3950, %v3962
    %v4010 = vsel %vm170, %v3952, %v3964
    %v4011 = vsel %vm170, %v3954, %v3966
    %v4012 = vsel %vm170, %v3956, %v3968
    %v4013 = vsel %vm170, %v3958, %v3970
    %v4014 = vsel %vm170, %v3960, %v3972
    %v4015 = vsel %vm170, %v3986, %v3950
    %v4016 = vsel %vm170, %v3988, %v3952
    %v4017 = vsel %vm170, %v3990, %v3954
    %v4018 = vsel %vm170, %v3992, %v3956
    %v4019 = vsel %vm170, %v3994, %v3958
    %v4020 = vsel %vm170, %v3996, %v3960
    %v4021 = vmul.f32 %v4015, %v186
    %v4022 = vmul.f32 %v4009, %v190
    %v4023 = vmul.f32 %v4003, %v194
    %v4024 = vmul.f32 %v3997, %v198
    %v4025 = vmul.f32 %v4016, %v186
    %v4026 = vmul.f32 %v4010, %v190
    %v4027 = vmul.f32 %v4004, %v194
    %v4028 = vmul.f32 %v3998, %v198
    %v4029 = vmul.f32 %v4017, %v186
    %v4030 = vmul.f32 %v4011, %v190
    %v4031 = vmul.f32 %v4005, %v194
    %v4032 = vmul.f32 %v3999, %v198
    %v4033 = vmul.f32 %v4018, %v186
    %v4034 = vmul.f32 %v4012, %v190
    %v4035 = vmul.f32 %v4006, %v194
    %v4036 = vmul.f32 %v4000, %v198
    %v4037 = vmul.f32 %v4019, %v186
    %v4038 = vmul.f32 %v4013, %v190
    %v4039 = vmul.f32 %v4007, %v194
    %v4040 = vmul.f32 %v4001, %v198
    %v4041 = vmul.f32 %v4020, %v186
    %v4042 = vmul.f32 %v4014, %v190
    %v4043 = vmul.f32 %v4008, %v194
    %v4044 = vmul.f32 %v4002, %v198
    %v4045 = vld [vmem:[%s11] sm:$0x1f]
    %s4046 = scalar_lea.vmem %s11, 8
    %v4047 = vld [vmem:[%s4046] sm:$0x1f]
    %vm4048 = vcmask 392192
    %v4050 = vsel %vm4048, %v4047, 0
    %4052 = vmatprep.subr.mxu0 %v3910
    %4053 = vmatpush1.msra.mxu0 %v3909
    %4054 = vmatprep.subr.mxu0 %v3914
    %4055 = vmatpush1.msra.mxu0 %v3913
    %4056 = vmatprep.subr.mxu0 %v3878
    %4057 = vmatpush1.msra.mxu0 %v3877
    %4058 = vmatprep.subr.mxu0 %v3882
    %4059 = vmatpush1.msra.mxu0 %v3881
    %4060 = vmatprep.subr.mxu0 %v3942
    %4061 = vmatpush1.msra.mxu0 %v3941
    %4062 = vmatprep.subr.mxu0 %v3946
    %4063 = vmatpush1.msra.mxu0 %v3945
    %4064 = vmatprep.subr.mxu0 0.0
    %4065 = vmatpush1.msra.mxu0 0.0
    %4066 = vmatprep.subr.mxu0 0.0
    %4067 = vmatpush1.msra.mxu0 0.0
    %4068 = vmatprep.subr.mxu0 0.0
    %4069 = vmatpush1.msra.mxu0 0.0
    %4070 = vmatprep.subr.mxu0 0.0
    %4071 = vmatpush1.msra.mxu0 0.0
    %4072 = vmatprep.subr.mxu0 0.0
    %4073 = vmatpush1.msra.mxu0 0.0
    %4074 = vmatprep.subr.mxu0 0.0
    %4075 = vmatpush1.msra.mxu0 0.0
    %4076 = vmatprep.subr.mxu0 0.0
    %4077 = vmatpush1.msra.mxu0 0.0
    %4078 = vmatprep.subr.mxu0 0.0
    %4079 = vmatpush1.msra.mxu0 0.0
    %4080 = vmatprep.subr.mxu0 0.0
    %4081 = vmatpush1.msra.mxu0 0.0
    %4082 = vmatprep.subr.mxu0 0.0
    %4083 = vmatpush1.msra.mxu0 0.0
    %4084 = vmatprep.subr.mxu0 0.0
    %4085 = vmatpush1.msra.mxu0 0.0
    %4086 = vmatprep.subr.mxu0 0.0
    %4087 = vmatpush1.msra.mxu0 0.0
    %4088 = vmatprep.subr.mxu0 0.0
    %4089 = vmatpush1.msra.mxu0 0.0
    %4090 = vmatprep.subr.mxu0 0.0
    %4091 = vmatpush1.msra.mxu0 0.0
    %4092 = vmatprep.subr.mxu0 0.0
    %4093 = vmatpush1.msra.mxu0 0.0
    %4094 = vmatprep.subr.mxu0 0.0
    %4095 = vmatpush1.msra.mxu0 0.0
    %4096 = vmatprep.subr.mxu0 0.0
    %4097 = vmatpush1.msra.mxu0 0.0
    %4098 = vmatprep.subr.mxu0 0.0
    %4099 = vmatpush1.msra.mxu0 0.0
    %4100 = vmatprep.subr.mxu0 0.0
    %4101 = vmatpush1.msra.mxu0 0.0
    %4102 = vmatprep.subr.mxu0 0.0
    %4103 = vmatpush1.msra.mxu0 0.0
    %4104 = vmatprep.subr.mxu0 0.0
    %4105 = vmatpush1.msra.mxu0 0.0
    %4106 = vmatprep.subr.mxu0 0.0
    %4107 = vmatpush1.msra.mxu0 0.0
    %4108 = vmatprep.subr.mxu0 0.0
    %4109 = vmatpush1.msra.mxu0 0.0
    %4110 = vmatprep.subr.mxu0 0.0
    %4111 = vmatpush1.msra.mxu0 0.0
    %4112 = vmatprep.subr.mxu0 0.0
    %4113 = vmatpush1.msra.mxu0 0.0
    %4114 = vmatprep.subr.mxu0 0.0
    %4115 = vmatpush1.msra.mxu0 0.0
    %4116 = vmatprep.mubr.f32.mxu0 0.0
    %4117 = vmatmul.mubr.f32.gmra.mrb[0].mxu0 %v4050
    %v4118 = vpop.f32.mrb[0].mxu0
    %v4119 = vadd.f32 0.0, %v4118
    %v4120 = vpop.f32.mrb[0].mxu0
    %v4121 = vadd.f32 0.0, %v4120
    %4122 = vdwg.mxu0
    %4123 = vmatprep.subr.mxu0 %v3912
    %4124 = vmatpush1.msra.mxu0 %v3911
    %4125 = vmatprep.subr.mxu0 %v3916
    %4126 = vmatpush1.msra.mxu0 %v3915
    %4127 = vmatprep.subr.mxu0 %v3880
    %4128 = vmatpush1.msra.mxu0 %v3879
    %4129 = vmatprep.subr.mxu0 %v3884
    %4130 = vmatpush1.msra.mxu0 %v3883
    %4131 = vmatprep.subr.mxu0 %v3944
    %4132 = vmatpush1.msra.mxu0 %v3943
    %4133 = vmatprep.subr.mxu0 %v3948
    %4134 = vmatpush1.msra.mxu0 %v3947
    %4135 = vmatprep.subr.mxu0 0.0
    %4136 = vmatpush1.msra.mxu0 0.0
    %4137 = vmatprep.subr.mxu0 0.0
    %4138 = vmatpush1.msra.mxu0 0.0
    %4139 = vmatprep.subr.mxu0 0.0
    %4140 = vmatpush1.msra.mxu0 0.0
    %4141 = vmatprep.subr.mxu0 0.0
    %4142 = vmatpush1.msra.mxu0 0.0
    %4143 = vmatprep.subr.mxu0 0.0
    %4144 = vmatpush1.msra.mxu0 0.0
    %4145 = vmatprep.subr.mxu0 0.0
    %4146 = vmatpush1.msra.mxu0 0.0
    %4147 = vmatprep.subr.mxu0 0.0
    %4148 = vmatpush1.msra.mxu0 0.0
    %4149 = vmatprep.subr.mxu0 0.0
    %4150 = vmatpush1.msra.mxu0 0.0
    %4151 = vmatprep.subr.mxu0 0.0
    %4152 = vmatpush1.msra.mxu0 0.0
    %4153 = vmatprep.subr.mxu0 0.0
    %4154 = vmatpush1.msra.mxu0 0.0
    %4155 = vmatprep.subr.mxu0 0.0
    %4156 = vmatpush1.msra.mxu0 0.0
    %4157 = vmatprep.subr.mxu0 0.0
    %4158 = vmatpush1.msra.mxu0 0.0
    %4159 = vmatprep.subr.mxu0 0.0
    %4160 = vmatpush1.msra.mxu0 0.0
    %4161 = vmatprep.subr.mxu0 0.0
    %4162 = vmatpush1.msra.mxu0 0.0
    %4163 = vmatprep.subr.mxu0 0.0
    %4164 = vmatpush1.msra.mxu0 0.0
    %4165 = vmatprep.subr.mxu0 0.0
    %4166 = vmatpush1.msra.mxu0 0.0
    %4167 = vmatprep.subr.mxu0 0.0
    %4168 = vmatpush1.msra.mxu0 0.0
    %4169 = vmatprep.subr.mxu0 0.0
    %4170 = vmatpush1.msra.mxu0 0.0
    %4171 = vmatprep.subr.mxu0 0.0
    %4172 = vmatpush1.msra.mxu0 0.0
    %4173 = vmatprep.subr.mxu0 0.0
    %4174 = vmatpush1.msra.mxu0 0.0
    %4175 = vmatprep.subr.mxu0 0.0
    %4176 = vmatpush1.msra.mxu0 0.0
    %4177 = vmatprep.subr.mxu0 0.0
    %4178 = vmatpush1.msra.mxu0 0.0
    %4179 = vmatprep.subr.mxu0 0.0
    %4180 = vmatpush1.msra.mxu0 0.0
    %4181 = vmatprep.subr.mxu0 0.0
    %4182 = vmatpush1.msra.mxu0 0.0
    %4183 = vmatprep.subr.mxu0 0.0
    %4184 = vmatpush1.msra.mxu0 0.0
    %4185 = vmatprep.subr.mxu0 0.0
    %4186 = vmatpush1.msra.mxu0 0.0
    %4187 = vmatprep.mubr.f32.mxu0 0.0
    %4188 = vmatmul.mubr.f32.gmra.mrb[0].mxu0 %v4050
    %v4189 = vpop.f32.mrb[0].mxu0
    %v4190 = vadd.f32 0.0, %v4189
    %v4191 = vpop.f32.mrb[0].mxu0
    %v4192 = vadd.f32 0.0, %v4191
    %4193 = vdwg.mxu0
    %v4195 = vsel %vm4048, %v4045, 0
    %4197 = vmatprep.subr.mxu0 %v4022
    %4198 = vmatpush1.msra.mxu0 %v4021
    %4199 = vmatprep.subr.mxu0 %v4026
    %4200 = vmatpush1.msra.mxu0 %v4025
    %4201 = vmatprep.subr.mxu0 %v4030
    %4202 = vmatpush1.msra.mxu0 %v4029
    %4203 = vmatprep.subr.mxu0 %v4034
    %4204 = vmatpush1.msra.mxu0 %v4033
    %4205 = vmatprep.subr.mxu0 %v4038
    %4206 = vmatpush1.msra.mxu0 %v4037
    %4207 = vmatprep.subr.mxu0 %v4042
    %4208 = vmatpush1.msra.mxu0 %v4041
    %4209 = vmatprep.subr.mxu0 0.0
    %4210 = vmatpush1.msra.mxu0 0.0
    %4211 = vmatprep.subr.mxu0 0.0
    %4212 = vmatpush1.msra.mxu0 0.0
    %4213 = vmatprep.subr.mxu0 0.0
    %4214 = vmatpush1.msra.mxu0 0.0
    %4215 = vmatprep.subr.mxu0 0.0
    %4216 = vmatpush1.msra.mxu0 0.0
    %4217 = vmatprep.subr.mxu0 0.0
    %4218 = vmatpush1.msra.mxu0 0.0
    %4219 = vmatprep.subr.mxu0 0.0
    %4220 = vmatpush1.msra.mxu0 0.0
    %4221 = vmatprep.subr.mxu0 0.0
    %4222 = vmatpush1.msra.mxu0 0.0
    %4223 = vmatprep.subr.mxu0 0.0
    %4224 = vmatpush1.msra.mxu0 0.0
    %4225 = vmatprep.subr.mxu0 0.0
    %4226 = vmatpush1.msra.mxu0 0.0
    %4227 = vmatprep.subr.mxu0 0.0
    %4228 = vmatpush1.msra.mxu0 0.0
    %4229 = vmatprep.subr.mxu0 0.0
    %4230 = vmatpush1.msra.mxu0 0.0
    %4231 = vmatprep.subr.mxu0 0.0
    %4232 = vmatpush1.msra.mxu0 0.0
    %4233 = vmatprep.subr.mxu0 0.0
    %4234 = vmatpush1.msra.mxu0 0.0
    %4235 = vmatprep.subr.mxu0 0.0
    %4236 = vmatpush1.msra.mxu0 0.0
    %4237 = vmatprep.subr.mxu0 0.0
    %4238 = vmatpush1.msra.mxu0 0.0
    %4239 = vmatprep.subr.mxu0 0.0
    %4240 = vmatpush1.msra.mxu0 0.0
    %4241 = vmatprep.subr.mxu0 0.0
    %4242 = vmatpush1.msra.mxu0 0.0
    %4243 = vmatprep.subr.mxu0 0.0
    %4244 = vmatpush1.msra.mxu0 0.0
    %4245 = vmatprep.subr.mxu0 0.0
    %4246 = vmatpush1.msra.mxu0 0.0
    %4247 = vmatprep.subr.mxu0 0.0
    %4248 = vmatpush1.msra.mxu0 0.0
    %4249 = vmatprep.subr.mxu0 0.0
    %4250 = vmatpush1.msra.mxu0 0.0
    %4251 = vmatprep.subr.mxu0 0.0
    %4252 = vmatpush1.msra.mxu0 0.0
    %4253 = vmatprep.subr.mxu0 0.0
    %4254 = vmatpush1.msra.mxu0 0.0
    %4255 = vmatprep.subr.mxu0 0.0
    %4256 = vmatpush1.msra.mxu0 0.0
    %4257 = vmatprep.subr.mxu0 0.0
    %4258 = vmatpush1.msra.mxu0 0.0
    %4259 = vmatprep.subr.mxu0 0.0
    %4260 = vmatpush1.msra.mxu0 0.0
    %4261 = vmatprep.mubr.f32.mxu0 0.0
    %4262 = vmatmul.mubr.f32.gmra.mrb[0].mxu0 %v4195
    %v4263 = vpop.f32.mrb[0].mxu0
    %v4264 = vadd.f32 %v4119, %v4263
    %v4265 = vpop.f32.mrb[0].mxu0
    %v4266 = vadd.f32 %v4121, %v4265
    %4267 = vdwg.mxu0
    %4268 = vmatprep.subr.mxu0 %v4024
    %4269 = vmatpush1.msra.mxu0 %v4023
    %4270 = vmatprep.subr.mxu0 %v4028
    %4271 = vmatpush1.msra.mxu0 %v4027
    %4272 = vmatprep.subr.mxu0 %v4032
    %4273 = vmatpush1.msra.mxu0 %v4031
    %4274 = vmatprep.subr.mxu0 %v4036
    %4275 = vmatpush1.msra.mxu0 %v4035
    %4276 = vmatprep.subr.mxu0 %v4040
    %4277 = vmatpush1.msra.mxu0 %v4039
    %4278 = vmatprep.subr.mxu0 %v4044
    %4279 = vmatpush1.msra.mxu0 %v4043
    %4280 = vmatprep.subr.mxu0 0.0
    %4281 = vmatpush1.msra.mxu0 0.0
    %4282 = vmatprep.subr.mxu0 0.0
    %4283 = vmatpush1.msra.mxu0 0.0
    %4284 = vmatprep.subr.mxu0 0.0
    %4285 = vmatpush1.msra.mxu0 0.0
    %4286 = vmatprep.subr.mxu0 0.0
    %4287 = vmatpush1.msra.mxu0 0.0
    %4288 = vmatprep.subr.mxu0 0.0
    %4289 = vmatpush1.msra.mxu0 0.0
    %4290 = vmatprep.subr.mxu0 0.0
    %4291 = vmatpush1.msra.mxu0 0.0
    %4292 = vmatprep.subr.mxu0 0.0
    %4293 = vmatpush1.msra.mxu0 0.0
    %4294 = vmatprep.subr.mxu0 0.0
    %4295 = vmatpush1.msra.mxu0 0.0
    %4296 = vmatprep.subr.mxu0 0.0
    %4297 = vmatpush1.msra.mxu0 0.0
    %4298 = vmatprep.subr.mxu0 0.0
    %4299 = vmatpush1.msra.mxu0 0.0
    %4300 = vmatprep.subr.mxu0 0.0
    %4301 = vmatpush1.msra.mxu0 0.0
    %4302 = vmatprep.subr.mxu0 0.0
    %4303 = vmatpush1.msra.mxu0 0.0
    %4304 = vmatprep.subr.mxu0 0.0
    %4305 = vmatpush1.msra.mxu0 0.0
    %4306 = vmatprep.subr.mxu0 0.0
    %4307 = vmatpush1.msra.mxu0 0.0
    %4308 = vmatprep.subr.mxu0 0.0
    %4309 = vmatpush1.msra.mxu0 0.0
    %4310 = vmatprep.subr.mxu0 0.0
    %4311 = vmatpush1.msra.mxu0 0.0
    %4312 = vmatprep.subr.mxu0 0.0
    %4313 = vmatpush1.msra.mxu0 0.0
    %4314 = vmatprep.subr.mxu0 0.0
    %4315 = vmatpush1.msra.mxu0 0.0
    %4316 = vmatprep.subr.mxu0 0.0
    %4317 = vmatpush1.msra.mxu0 0.0
    %4318 = vmatprep.subr.mxu0 0.0
    %4319 = vmatpush1.msra.mxu0 0.0
    %4320 = vmatprep.subr.mxu0 0.0
    %4321 = vmatpush1.msra.mxu0 0.0
    %4322 = vmatprep.subr.mxu0 0.0
    %4323 = vmatpush1.msra.mxu0 0.0
    %4324 = vmatprep.subr.mxu0 0.0
    %4325 = vmatpush1.msra.mxu0 0.0
    %4326 = vmatprep.subr.mxu0 0.0
    %4327 = vmatpush1.msra.mxu0 0.0
    %4328 = vmatprep.subr.mxu0 0.0
    %4329 = vmatpush1.msra.mxu0 0.0
    %4330 = vmatprep.subr.mxu0 0.0
    %4331 = vmatpush1.msra.mxu0 0.0
    %4332 = vmatprep.mubr.f32.mxu0 0.0
    %4333 = vmatmul.mubr.f32.gmra.mrb[0].mxu0 %v4195
    %v4334 = vpop.f32.mrb[0].mxu0
    %v4335 = vadd.f32 %v4190, %v4334
    %v4336 = vpop.f32.mrb[0].mxu0
    %v4337 = vadd.f32 %v4192, %v4336
    %4338 = vdwg.mxu0
    %4339 = vrot.lane.b32.xlu0 %v3909, 127
    %v4340 = vpop.permute.xlu0 %4339
    %4341 = vrot.lane.b32.xlu0 %v3913, 127
    %v4342 = vpop.permute.xlu0 %4341
    %4343 = vrot.lane.b32.xlu0 %v3877, 127
    %v4344 = vpop.permute.xlu0 %4343
    %4345 = vrot.lane.b32.xlu0 %v3881, 127
    %v4346 = vpop.permute.xlu0 %4345
    %4347 = vrot.lane.b32.xlu0 %v3941, 127
    %v4348 = vpop.permute.xlu0 %4347
    %4349 = vrot.lane.b32.xlu0 %v3945, 127
    %v4350 = vpop.permute.xlu0 %4349
    %4351 = vrot.lane.b32.xlu0 %v3910, 127
    %v4352 = vpop.permute.xlu0 %4351
    %4353 = vrot.lane.b32.xlu0 %v3914, 127
    %v4354 = vpop.permute.xlu0 %4353
    %4355 = vrot.lane.b32.xlu0 %v3878, 127
    %v4356 = vpop.permute.xlu0 %4355
    %4357 = vrot.lane.b32.xlu0 %v3882, 127
    %v4358 = vpop.permute.xlu0 %4357
    %4359 = vrot.lane.b32.xlu0 %v3942, 127
    %v4360 = vpop.permute.xlu0 %4359
    %4361 = vrot.lane.b32.xlu0 %v3946, 127
    %v4362 = vpop.permute.xlu0 %4361
    %4363 = vrot.lane.b32.xlu0 %v3911, 127
    %v4364 = vpop.permute.xlu0 %4363
    %4365 = vrot.lane.b32.xlu0 %v3915, 127
    %v4366 = vpop.permute.xlu0 %4365
    %4367 = vrot.lane.b32.xlu0 %v3879, 127
    %v4368 = vpop.permute.xlu0 %4367
    %4369 = vrot.lane.b32.xlu0 %v3883, 127
    %v4370 = vpop.permute.xlu0 %4369
    %4371 = vrot.lane.b32.xlu0 %v3943, 127
    %v4372 = vpop.permute.xlu0 %4371
    %4373 = vrot.lane.b32.xlu0 %v3947, 127
    %v4374 = vpop.permute.xlu0 %4373
    %4375 = vrot.lane.b32.xlu0 %v3912, 127
    %v4376 = vpop.permute.xlu0 %4375
    %4377 = vrot.lane.b32.xlu0 %v3916, 127
    %v4378 = vpop.permute.xlu0 %4377
    %4379 = vrot.lane.b32.xlu0 %v3880, 127
    %v4380 = vpop.permute.xlu0 %4379
    %4381 = vrot.lane.b32.xlu0 %v3884, 127
    %v4382 = vpop.permute.xlu0 %4381
    %4383 = vrot.lane.b32.xlu0 %v3944, 127
    %v4384 = vpop.permute.xlu0 %4383
    %4385 = vrot.lane.b32.xlu0 %v3948, 127
    %v4386 = vpop.permute.xlu0 %4385
    %v4387 = vsel %vm561, %v4364, %v4376
    %v4388 = vsel %vm561, %v4366, %v4378
    %v4389 = vsel %vm561, %v4368, %v4380
    %v4390 = vsel %vm561, %v4370, %v4382
    %v4391 = vsel %vm561, %v4372, %v4384
    %v4392 = vsel %vm561, %v4374, %v4386
    %v4393 = vsel %vm561, %v4352, %v4364
    %v4394 = vsel %vm561, %v4354, %v4366
    %v4395 = vsel %vm561, %v4356, %v4368
    %v4396 = vsel %vm561, %v4358, %v4370
    %v4397 = vsel %vm561, %v4360, %v4372
    %v4398 = vsel %vm561, %v4362, %v4374
    %v4399 = vsel %vm561, %v4340, %v4352
    %v4400 = vsel %vm561, %v4342, %v4354
    %v4401 = vsel %vm561, %v4344, %v4356
    %v4402 = vsel %vm561, %v4346, %v4358
    %v4403 = vsel %vm561, %v4348, %v4360
    %v4404 = vsel %vm561, %v4350, %v4362
    %v4405 = vsel %vm561, %v4376, %v4340
    %v4406 = vsel %vm561, %v4378, %v4342
    %v4407 = vsel %vm561, %v4380, %v4344
    %v4408 = vsel %vm561, %v4382, %v4346
    %v4409 = vsel %vm561, %v4384, %v4348
    %v4410 = vsel %vm561, %v4386, %v4350
    %v4411 = vmul.f32 %v4399, %v577
    %v4412 = vmul.f32 %v4393, %v581
    %v4413 = vmul.f32 %v4387, %v585
    %v4414 = vmul.f32 %v4405, %v589
    %v4415 = vmul.f32 %v4400, %v577
    %v4416 = vmul.f32 %v4394, %v581
    %v4417 = vmul.f32 %v4388, %v585
    %v4418 = vmul.f32 %v4406, %v589
    %v4419 = vmul.f32 %v4401, %v577
    %v4420 = vmul.f32 %v4395, %v581
    %v4421 = vmul.f32 %v4389, %v585
    %v4422 = vmul.f32 %v4407, %v589
    %v4423 = vmul.f32 %v4402, %v577
    %v4424 = vmul.f32 %v4396, %v581
    %v4425 = vmul.f32 %v4390, %v585
    %v4426 = vmul.f32 %v4408, %v589
    %v4427 = vmul.f32 %v4403, %v577
    %v4428 = vmul.f32 %v4397, %v581
    %v4429 = vmul.f32 %v4391, %v585
    %v4430 = vmul.f32 %v4409, %v589
    %v4431 = vmul.f32 %v4404, %v577
    %v4432 = vmul.f32 %v4398, %v581
    %v4433 = vmul.f32 %v4392, %v585
    %v4434 = vmul.f32 %v4410, %v589
    %s4435 = scalar_lea.vmem %s11, 16
    %v4436 = vld [vmem:[%s4435] sm:$0x1f]
    %v4438 = vsel %vm4048, %v4436, 0
    %4440 = vmatprep.subr.mxu0 %v4412
    %4441 = vmatpush1.msra.mxu0 %v4411
    %4442 = vmatprep.subr.mxu0 %v4416
    %4443 = vmatpush1.msra.mxu0 %v4415
    %4444 = vmatprep.subr.mxu0 %v4420
    %4445 = vmatpush1.msra.mxu0 %v4419
    %4446 = vmatprep.subr.mxu0 %v4424
    %4447 = vmatpush1.msra.mxu0 %v4423
    %4448 = vmatprep.subr.mxu0 %v4428
    %4449 = vmatpush1.msra.mxu0 %v4427
    %4450 = vmatprep.subr.mxu0 %v4432
    %4451 = vmatpush1.msra.mxu0 %v4431
    %4452 = vmatprep.subr.mxu0 0.0
    %4453 = vmatpush1.msra.mxu0 0.0
    %4454 = vmatprep.subr.mxu0 0.0
    %4455 = vmatpush1.msra.mxu0 0.0
    %4456 = vmatprep.subr.mxu0 0.0
    %4457 = vmatpush1.msra.mxu0 0.0
    %4458 = vmatprep.subr.mxu0 0.0
    %4459 = vmatpush1.msra.mxu0 0.0
    %4460 = vmatprep.subr.mxu0 0.0
    %4461 = vmatpush1.msra.mxu0 0.0
    %4462 = vmatprep.subr.mxu0 0.0
    %4463 = vmatpush1.msra.mxu0 0.0
    %4464 = vmatprep.subr.mxu0 0.0
    %4465 = vmatpush1.msra.mxu0 0.0
    %4466 = vmatprep.subr.mxu0 0.0
    %4467 = vmatpush1.msra.mxu0 0.0
    %4468 = vmatprep.subr.mxu0 0.0
    %4469 = vmatpush1.msra.mxu0 0.0
    %4470 = vmatprep.subr.mxu0 0.0
    %4471 = vmatpush1.msra.mxu0 0.0
    %4472 = vmatprep.subr.mxu0 0.0
    %4473 = vmatpush1.msra.mxu0 0.0
    %4474 = vmatprep.subr.mxu0 0.0
    %4475 = vmatpush1.msra.mxu0 0.0
    %4476 = vmatprep.subr.mxu0 0.0
    %4477 = vmatpush1.msra.mxu0 0.0
    %4478 = vmatprep.subr.mxu0 0.0
    %4479 = vmatpush1.msra.mxu0 0.0
    %4480 = vmatprep.subr.mxu0 0.0
    %4481 = vmatpush1.msra.mxu0 0.0
    %4482 = vmatprep.subr.mxu0 0.0
    %4483 = vmatpush1.msra.mxu0 0.0
    %4484 = vmatprep.subr.mxu0 0.0
    %4485 = vmatpush1.msra.mxu0 0.0
    %4486 = vmatprep.subr.mxu0 0.0
    %4487 = vmatpush1.msra.mxu0 0.0
    %4488 = vmatprep.subr.mxu0 0.0
    %4489 = vmatpush1.msra.mxu0 0.0
    %4490 = vmatprep.subr.mxu0 0.0
    %4491 = vmatpush1.msra.mxu0 0.0
    %4492 = vmatprep.subr.mxu0 0.0
    %4493 = vmatpush1.msra.mxu0 0.0
    %4494 = vmatprep.subr.mxu0 0.0
    %4495 = vmatpush1.msra.mxu0 0.0
    %4496 = vmatprep.subr.mxu0 0.0
    %4497 = vmatpush1.msra.mxu0 0.0
    %4498 = vmatprep.subr.mxu0 0.0
    %4499 = vmatpush1.msra.mxu0 0.0
    %4500 = vmatprep.subr.mxu0 0.0
    %4501 = vmatpush1.msra.mxu0 0.0
    %4502 = vmatprep.subr.mxu0 0.0
    %4503 = vmatpush1.msra.mxu0 0.0
    %4504 = vmatprep.mubr.f32.mxu0 0.0
    %4505 = vmatmul.mubr.f32.gmra.mrb[0].mxu0 %v4438
    %v4506 = vpop.f32.mrb[0].mxu0
    %v4507 = vadd.f32 0.0, %v4506
    %v4508 = vpop.f32.mrb[0].mxu0
    %v4509 = vadd.f32 0.0, %v4508
    %4510 = vdwg.mxu0
    %4511 = vmatprep.subr.mxu0 %v4414
    %4512 = vmatpush1.msra.mxu0 %v4413
    %4513 = vmatprep.subr.mxu0 %v4418
    %4514 = vmatpush1.msra.mxu0 %v4417
    %4515 = vmatprep.subr.mxu0 %v4422
    %4516 = vmatpush1.msra.mxu0 %v4421
    %4517 = vmatprep.subr.mxu0 %v4426
    %4518 = vmatpush1.msra.mxu0 %v4425
    %4519 = vmatprep.subr.mxu0 %v4430
    %4520 = vmatpush1.msra.mxu0 %v4429
    %4521 = vmatprep.subr.mxu0 %v4434
    %4522 = vmatpush1.msra.mxu0 %v4433
    %4523 = vmatprep.subr.mxu0 0.0
    %4524 = vmatpush1.msra.mxu0 0.0
    %4525 = vmatprep.subr.mxu0 0.0
    %4526 = vmatpush1.msra.mxu0 0.0
    %4527 = vmatprep.subr.mxu0 0.0
    %4528 = vmatpush1.msra.mxu0 0.0
    %4529 = vmatprep.subr.mxu0 0.0
    %4530 = vmatpush1.msra.mxu0 0.0
    %4531 = vmatprep.subr.mxu0 0.0
    %4532 = vmatpush1.msra.mxu0 0.0
    %4533 = vmatprep.subr.mxu0 0.0
    %4534 = vmatpush1.msra.mxu0 0.0
    %4535 = vmatprep.subr.mxu0 0.0
    %4536 = vmatpush1.msra.mxu0 0.0
    %4537 = vmatprep.subr.mxu0 0.0
    %4538 = vmatpush1.msra.mxu0 0.0
    %4539 = vmatprep.subr.mxu0 0.0
    %4540 = vmatpush1.msra.mxu0 0.0
    %4541 = vmatprep.subr.mxu0 0.0
    %4542 = vmatpush1.msra.mxu0 0.0
    %4543 = vmatprep.subr.mxu0 0.0
    %4544 = vmatpush1.msra.mxu0 0.0
    %4545 = vmatprep.subr.mxu0 0.0
    %4546 = vmatpush1.msra.mxu0 0.0
    %4547 = vmatprep.subr.mxu0 0.0
    %4548 = vmatpush1.msra.mxu0 0.0
    %4549 = vmatprep.subr.mxu0 0.0
    %4550 = vmatpush1.msra.mxu0 0.0
    %4551 = vmatprep.subr.mxu0 0.0
    %4552 = vmatpush1.msra.mxu0 0.0
    %4553 = vmatprep.subr.mxu0 0.0
    %4554 = vmatpush1.msra.mxu0 0.0
    %4555 = vmatprep.subr.mxu0 0.0
    %4556 = vmatpush1.msra.mxu0 0.0
    %4557 = vmatprep.subr.mxu0 0.0
    %4558 = vmatpush1.msra.mxu0 0.0
    %4559 = vmatprep.subr.mxu0 0.0
    %4560 = vmatpush1.msra.mxu0 0.0
    %4561 = vmatprep.subr.mxu0 0.0
    %4562 = vmatpush1.msra.mxu0 0.0
    %4563 = vmatprep.subr.mxu0 0.0
    %4564 = vmatpush1.msra.mxu0 0.0
    %4565 = vmatprep.subr.mxu0 0.0
    %4566 = vmatpush1.msra.mxu0 0.0
    %4567 = vmatprep.subr.mxu0 0.0
    %4568 = vmatpush1.msra.mxu0 0.0
    %4569 = vmatprep.subr.mxu0 0.0
    %4570 = vmatpush1.msra.mxu0 0.0
    %4571 = vmatprep.subr.mxu0 0.0
    %4572 = vmatpush1.msra.mxu0 0.0
    %4573 = vmatprep.subr.mxu0 0.0
    %4574 = vmatpush1.msra.mxu0 0.0
    %4575 = vmatprep.mubr.f32.mxu0 0.0
    %4576 = vmatmul.mubr.f32.gmra.mrb[0].mxu0 %v4438
    %v4577 = vpop.f32.mrb[0].mxu0
    %v4578 = vadd.f32 0.0, %v4577
    %v4579 = vpop.f32.mrb[0].mxu0
    %v4580 = vadd.f32 0.0, %v4579
    %4581 = vdwg.mxu0
    %v4582 = vadd.f32 %v4264, %v4507
    %v4583 = vadd.f32 %v4266, %v4509
    %v4584 = vadd.f32 %v4335, %v4578
    %v4585 = vadd.f32 %v4337, %v4580
    %4586 = vset.pattern.permute.xlu0 14
    %4587 = vperm.xlu0 %4586, %v50
    %v4588 = vpop.permute.xlu0 %4587
    %v4590 = vadd.f32 %v4582, %v4588
    %v4591 = vadd.f32 %v4583, %v4588
    %v4592 = vadd.f32 %v4584, %v4588
    %v4593 = vadd.f32 %v4585, %v4588
    %4594 = vst [vmem:[#allocation2] sm:$0x1f] %v4590
    %4595 = vst [vmem:[#allocation2 + $0x8] sm:$0x1f] %v4591
    %4596 = vst [vmem:[#allocation2 + $0x10] sm:$0x1f] %v4592
    %4597 = vst [vmem:[#allocation2 + $0x18] sm:$0x1f] %v4593
    // Predicated region
    $region50: #{tpu_custom_call.1} parent=1 // pred_check
      _
    $region51: #{tpu_custom_call.1} parent=1 // pred_check_branch
      %4599 = sbr.rel (0) target = $region53
    $region52: #{tpu_custom_call.1} parent=1 // pred_region
      %s4601 = ssub.s32 512, 512
      %4602 = vsyncadd [#allocation3], %s4601
      %s4604 = sshll.u32 [#allocation2], 4
      %s4605 = int_to_ptr.vmem [resolvable:$true] %s4604
      %4607 = dma.vmem_to_hbm [thread:$0]  %s4605, 512, %s12, [#allocation3]
    $region53: #{tpu_custom_call.1} parent=1 // pred_fallthru
      _
    // Predicated region
    $region54: #{tpu_custom_call.1} parent=1 // pred_check
      _
    $region55: #{tpu_custom_call.1} parent=1 // pred_check_branch
      %4609 = sbr.rel (0) target = $region57
    $region56: #{tpu_custom_call.1} parent=1 // pred_region
      %4610 = dma.done [#allocation3], 512
    $region57: #{tpu_custom_call.1} parent=1 // pred_fallthru
      _
    %4611 = vsyncpa [#allocation3], 1

</llo_original>
